<compile_context>
chip_gen: v5e
topology: v5e:2x2
jax: 0.10.0
libtpu: 0.0.40
codegen_flags: <defaults>
</compile_context>

<pallas_src>
from functools import partial

import jax
import jax.numpy as jnp
from jax.experimental import pallas as pl
from jax.experimental.pallas import tpu as pltpu

EPS = 1e-5


# ----------------------------------------------------------------------------
# kernels
# ----------------------------------------------------------------------------
def _conv1_kernel(x_ref, w1_ref, y_ref, st_ref):
    """1x1 conv (channel matmul) on a row tile + partial batch statistics."""
    y = jnp.dot(x_ref[...].astype(jnp.bfloat16), w1_ref[...],
                preferred_element_type=jnp.float32)
    y_ref[...] = y
    s = jnp.sum(y, axis=0, keepdims=True)
    sq = jnp.sum(y * y, axis=0, keepdims=True)
    st_ref[0] = jnp.concatenate([s, sq], axis=0)


def _conv2_kernel(H, W, C,
                  y1_ref, sc_ref, sh_ref, w2_ref, y2_ref, st_ref, pad_ref):
    """bn1(affine)+relu, halo pad, im2col, single 3x3-conv matmul, stats."""
    y1 = y1_ref[0]                                            # (H, W, C) f32
    a = jnp.maximum(y1 * sc_ref[...] + sh_ref[...], 0.0)      # fused bn + relu

    # zero-padded halo scratch; interior overwritten every grid step
    pad_ref[...] = jnp.zeros_like(pad_ref)
    pad_ref[pl.ds(1, H), pl.ds(1, W), :] = a

    # im2col: 9 static-slice taps concatenated on the channel (lane) axis
    taps = [pad_ref[pl.ds(dy, H), pl.ds(dx, W), :]
            for dy in range(3) for dx in range(3)]
    slab = jnp.concatenate(taps, axis=-1).reshape(H * W, 9 * C)

    y2 = jnp.dot(slab.astype(jnp.bfloat16), w2_ref[...],
                 preferred_element_type=jnp.float32)          # (H*W, C)
    y2_ref[0] = y2
    s = jnp.sum(y2, axis=0, keepdims=True)
    sq = jnp.sum(y2 * y2, axis=0, keepdims=True)
    st_ref[0] = jnp.concatenate([s, sq], axis=0)


def _conv3_kernel(y2_ref, sc_ref, sh_ref, w3_ref, y3_ref, st_ref):
    """bn2(affine)+relu then 1x1 expansion conv on a row tile + stats."""
    a = jnp.maximum(y2_ref[...] * sc_ref[...] + sh_ref[...], 0.0)
    y3 = jnp.dot(a.astype(jnp.bfloat16), w3_ref[...],
                 preferred_element_type=jnp.float32)
    y3_ref[...] = y3
    s = jnp.sum(y3, axis=0, keepdims=True)
    sq = jnp.sum(y3 * y3, axis=0, keepdims=True)
    st_ref[0] = jnp.concatenate([s, sq], axis=0)


def _residual_kernel(y3_ref, x_ref, sc_ref, sh_ref, o_ref):
    """bn3(affine)+relu, residual add (identity), final relu (row tile)."""
    a = jnp.maximum(y3_ref[...] * sc_ref[...] + sh_ref[...], 0.0)
    o_ref[...] = jnp.maximum(a + x_ref[...], 0.0)


# ----------------------------------------------------------------------------
# wrapper
# ----------------------------------------------------------------------------
def _pick_row_tile(nhw):
    for tr in (256, 512, 128, 1024, 64, 32, 16, 8):
        if nhw % tr == 0 and tr <= nhw:
            return tr
    return nhw


def _finalize_stats(partial_stats, gamma, beta, count):
    """Fold partial (sum, sum_sq) into fused BN affine: y*scale + shift."""
    tot = jnp.sum(partial_stats, axis=0)                      # (2, C)
    mean = tot[0] / count
    var = jnp.maximum(tot[1] / count - mean * mean, 0.0)      # clamp cancellation
    scale = gamma.reshape(1, -1) * jax.lax.rsqrt(var + EPS)
    shift = beta.reshape(1, -1) - mean * scale
    return scale.astype(jnp.float32), shift.astype(jnp.float32)


@jax.jit
def bottleneck_forward(x_nchw, params):
    w1, g1, b1, w2, g2, b2, w3, g3, b3 = params
    N, Cin, H, W = x_nchw.shape
    Cmid = w1.shape[1]
    C3 = w3.shape[1]
    nhw = N * H * W

    # NCHW -> NHWC rows (channels on the lane axis).
    # TODO(synk): if the surrounding model stays NHWC these transposes vanish.
    x_rows = jnp.transpose(x_nchw, (0, 2, 3, 1)).reshape(nhw, Cin)
    x_rows = x_rows.astype(jnp.float32)

    w1_b = w1.astype(jnp.bfloat16)                            # (Cin, Cmid)
    w2_flat = w2.reshape(9 * Cmid, Cmid).astype(jnp.bfloat16)  # (kh*kw*ci, co)
    w3_b = w3.astype(jnp.bfloat16)                            # (Cmid, C3)

    TR = _pick_row_tile(nhw)
    nt = nhw // TR
    par = pltpu.CompilerParams(dimension_semantics=("parallel",))

    def tiled(c):
        return pl.BlockSpec((TR, c), lambda i: (i, 0))

    def full(shape):
        nd = len(shape)
        return pl.BlockSpec(shape, lambda i, _nd=nd: (0,) * _nd)

    # --- stage 1: conv1 (1x1) + partial stats (row-tiled) --------------------
    y1_raw, st1 = pl.pallas_call(
        _conv1_kernel,
        out_shape=(jax.ShapeDtypeStruct((nhw, Cmid), jnp.float32),
                   jax.ShapeDtypeStruct((nt, 2, Cmid), jnp.float32)),
        grid=(nt,),
        in_specs=[tiled(Cin), full(w1_b.shape)],
        out_specs=(tiled(Cmid),
                   pl.BlockSpec((1, 2, Cmid), lambda i: (i, 0, 0))),
        compiler_params=par,
    )(x_rows, w1_b)
    sc1, sh1 = _finalize_stats(st1, g1, b1, nhw)

    # --- stage 2: bn1+relu, im2col, conv2 (3x3) + partial stats (per sample) -
    y1_4d = y1_raw.reshape(N, H, W, Cmid)
    y2_raw, st2 = pl.pallas_call(
        partial(_conv2_kernel, H, W, Cmid),
        out_shape=(jax.ShapeDtypeStruct((N, H * W, Cmid), jnp.float32),
                   jax.ShapeDtypeStruct((N, 2, Cmid), jnp.float32)),
        grid=(N,),
        in_specs=[pl.BlockSpec((1, H, W, Cmid), lambda n: (n, 0, 0, 0)),
                  full((1, Cmid)), full((1, Cmid)), full(w2_flat.shape)],
        out_specs=(pl.BlockSpec((1, H * W, Cmid), lambda n: (n, 0, 0)),
                   pl.BlockSpec((1, 2, Cmid), lambda n: (n, 0, 0))),
        scratch_shapes=[pltpu.VMEM((H + 2, W + 2, Cmid), jnp.float32)],
        compiler_params=par,
    )(y1_4d, sc1, sh1, w2_flat)
    sc2, sh2 = _finalize_stats(st2, g2, b2, nhw)

    # --- stage 3: bn2+relu + conv3 (1x1 expansion) + partial stats -----------
    y2_rows = y2_raw.reshape(nhw, Cmid)
    y3_raw, st3 = pl.pallas_call(
        _conv3_kernel,
        out_shape=(jax.ShapeDtypeStruct((nhw, C3), jnp.float32),
                   jax.ShapeDtypeStruct((nt, 2, C3), jnp.float32)),
        grid=(nt,),
        in_specs=[tiled(Cmid), full((1, Cmid)), full((1, Cmid)),
                  full(w3_b.shape)],
        out_specs=(tiled(C3),
                   pl.BlockSpec((1, 2, C3), lambda i: (i, 0, 0))),
        compiler_params=par,
    )(y2_rows, sc2, sh2, w3_b)
    sc3, sh3 = _finalize_stats(st3, g3, b3, nhw)

    # --- stage 4: bn3+relu, residual add (identity), final relu --------------
    out_rows = pl.pallas_call(
        _residual_kernel,
        out_shape=jax.ShapeDtypeStruct((nhw, C3), jnp.float32),
        grid=(nt,),
        in_specs=[tiled(C3), tiled(C3), full((1, C3)), full((1, C3))],
        out_specs=tiled(C3),
        input_output_aliases={1: 0},   # residual buffer reused as the output
        compiler_params=par,
    )(y3_raw, x_rows, sc3, sh3)

    return out_rows.reshape(N, H, W, C3).transpose(0, 3, 1, 2)


# ----------------------------------------------------------------------------
# pure-JAX reference (same semantics as the PyTorch module's forward)
# ----------------------------------------------------------------------------
def _reference(x_nchw, params):
    w1, g1, b1, w2, g2, b2, w3, g3, b3 = params
    x = jnp.transpose(x_nchw, (0, 2, 3, 1))

    def bn_relu(y, g, b):
        mean = jnp.mean(y, axis=(0, 1, 2), keepdims=True)
        var = jnp.mean(jnp.square(y - mean), axis=(0, 1, 2), keepdims=True)
        yh = (y - mean) / jnp.sqrt(var + EPS)
        return jnp.maximum(yh * g.reshape(1, 1, 1, -1) + b.reshape(1, 1, 1, -1), 0.0)

    y = bn_relu(jnp.einsum("nhwc,cd->nhwd", x, w1), g1, b1)
    y = bn_relu(jax.lax.conv_general_dilated(
        y, w2, (1, 1), ((1, 1), (1, 1)),
        dimension_numbers=("NHWC", "HWIO", "NHWC")), g2, b2)
    y = bn_relu(jnp.einsum("nhwc,cd->nhwd", y, w3), g3, b3)
    y = jnp.maximum(y + x, 0.0)
    return jnp.transpose(y, (0, 3, 1, 2))


if __name__ == "__main__":
    key = jax.random.PRNGKey(0)
    N, Cin, H, W = 2, 16, 16, 16
    Cmid = 4                    # out_channels
    Cout = Cmid * 4             # out_channels * BottleNeck.extention
    assert Cout == Cin          # required by downsample=None, stride=1 identity residual

    ks = jax.random.split(key, 8)
    x = jax.random.normal(ks[0], (N, Cin, H, W), jnp.float32)

    # conv1 weight: torch (Cmid, Cin, 1, 1) -> ours (Cin, Cmid)
    w1 = 0.1 * jax.random.normal(ks[1], (Cin, Cmid), jnp.float32)
    # conv2 weight: torch (Cmid, Cmid, 3, 3) -> ours HWIO (3, 3, Cin, Cout)
    w2 = 0.1 * jax.random.normal(ks[2], (3, 3, Cmid, Cmid), jnp.float32)
    # conv3 weight: torch (Cout, Cmid, 1, 1) -> ours (Cmid, Cout)
    w3 = 0.1 * jax.random.normal(ks[3], (Cmid, Cout), jnp.float32)

    g1 = 1.0 + 0.1 * jax.random.normal(ks[4], (1, Cmid), jnp.float32)
    b1 = 0.1 * jax.random.normal(ks[5], (1, Cmid), jnp.float32)
    g2 = jnp.ones((1, Cmid), jnp.float32)
    b2 = jnp.zeros((1, Cmid), jnp.float32)
    g3 = 1.0 + 0.1 * jax.random.normal(ks[6], (1, Cout), jnp.float32)
    b3 = 0.1 * jax.random.normal(ks[7], (1, Cout), jnp.float32)

    params = (w1, g1, b1, w2, g2, b2, w3, g3, b3)

    out = bottleneck_forward(x, params)
    jax.block_until_ready(out)
    assert out.shape == (N, Cout, H, W)

    ref = _reference(x, params)
    # bf16 MXU inputs vs. f32 reference -> slightly looser tolerance
    assert jnp.allclose(out, ref, atol=5e-2, rtol=5e-2), "mismatch vs JAX reference"

    print("KERNEL_OK")
</pallas_src>

<mosaic_0001>
module attributes {stable_mosaic.version = 11 : i64} {
  func.func @_conv1_kernel(%arg0: i32, %arg1: memref<256x16xf32, #tpu.memory_space<vmem>>, %arg2: memref<16x4xbf16, #tpu.memory_space<vmem>>, %arg3: memref<256x4xf32, #tpu.memory_space<vmem>>, %arg4: memref<1x2x4xf32, #tpu.memory_space<vmem>>) attributes {dimension_semantics = [#tpu.dimension_semantics<parallel>], iteration_bounds = array<i64: 2>, scalar_prefetch = 0 : i64, scratch_operands = 0 : i64, tpu.core_type = #tpu.core_type<tc>, window_params = [{transform_indices = @transform_0, window_bounds = array<i64: 256, 16>}, {pipeline_mode = #tpu.pipeline_mode<synchronous>, transform_indices = @transform_1, window_bounds = array<i64: 16, 4>}, {transform_indices = @transform_2, window_bounds = array<i64: 256, 4>}, {transform_indices = @transform_3, window_bounds = array<i64: 1, 2, 4>}]} {
    %c0 = arith.constant 0 : index
    %c0_0 = arith.constant 0 : index
    %0 = vector.load %arg1[%c0, %c0_0] : memref<256x16xf32, #tpu.memory_space<vmem>>, vector<256x16xf32>
    %1 = arith.truncf %0 : vector<256x16xf32> to vector<256x16xbf16>
    %c0_1 = arith.constant 0 : index
    %c0_2 = arith.constant 0 : index
    %2 = vector.load %arg2[%c0_1, %c0_2] : memref<16x4xbf16, #tpu.memory_space<vmem>>, vector<16x4xbf16>
    %cst = arith.constant dense<0.000000e+00> : vector<256x4xf32>
    %3 = tpu.matmul %1, %2, %cst {dimension_numbers = #tpu.dot_dimension_numbers<[1], [0], [0], [1], [0, 0, 1, 1], [], []>} : vector<256x16xbf16>, vector<16x4xbf16>, vector<256x4xf32> -> vector<256x4xf32>
    %c0_3 = arith.constant 0 : index
    %c0_4 = arith.constant 0 : index
    %4 = vector.load %arg3[%c0_3, %c0_4] : memref<256x4xf32, #tpu.memory_space<vmem>>, vector<256x4xf32>
    tpu.vector_store %arg3[%c0_3, %c0_4], %3 {strides = array<i32>} : memref<256x4xf32, #tpu.memory_space<vmem>>, vector<256x4xf32>,
    %cst_5 = arith.constant dense<0.000000e+00> : vector<4xf32>
    %5 = vector.multi_reduction <add>, %3, %cst_5 [0] : vector<256x4xf32> to vector<4xf32>
    %6 = vector.shape_cast %5 : vector<4xf32> to vector<1x4xf32>
    %7 = arith.mulf %3, %3 : vector<256x4xf32>
    %cst_6 = arith.constant dense<0.000000e+00> : vector<4xf32>
    %8 = vector.multi_reduction <add>, %7, %cst_6 [0] : vector<256x4xf32> to vector<4xf32>
    %9 = vector.shape_cast %8 : vector<4xf32> to vector<1x4xf32>
    %10 = tpu.concatenate %6, %9 in 0 : vector<1x4xf32>, vector<1x4xf32> -> vector<2x4xf32>
    %c0_7 = arith.constant 0 : index
    %c0_8 = arith.constant 0 : index
    %c0_9 = arith.constant 0 : index
    %11 = vector.load %arg4[%c0_7, %c0_8, %c0_9] : memref<1x2x4xf32, #tpu.memory_space<vmem>>, vector<1x2x4xf32>
    %12 = vector.shape_cast %11 : vector<1x2x4xf32> to vector<2x4xf32>
    %13 = vector.shape_cast %10 : vector<2x4xf32> to vector<1x2x4xf32>
    tpu.vector_store %arg4[%c0_7, %c0_8, %c0_9], %13 {strides = array<i32>} : memref<1x2x4xf32, #tpu.memory_space<vmem>>, vector<1x2x4xf32>,
    return
  }
  func.func @transform_0(%arg0: i32) -> (i32, i32) {
    %c0_i32 = arith.constant 0 : i32
    %c0_i32_0 = arith.constant 0 : i32
    return %arg0, %c0_i32 : i32, i32
  }
  func.func @transform_1(%arg0: i32) -> (i32, i32) {
    %c0_i32 = arith.constant 0 : i32
    %c0_i32_0 = arith.constant 0 : i32
    %c0_i32_1 = arith.constant 0 : i32
    return %c0_i32, %c0_i32_0 : i32, i32
  }
  func.func @transform_2(%arg0: i32) -> (i32, i32) {
    %c0_i32 = arith.constant 0 : i32
    %c0_i32_0 = arith.constant 0 : i32
    return %arg0, %c0_i32 : i32, i32
  }
  func.func @transform_3(%arg0: i32) -> (i32, i32, i32) {
    %c0_i32 = arith.constant 0 : i32
    %c0_i32_0 = arith.constant 0 : i32
    %c0_i32_1 = arith.constant 0 : i32
    return %arg0, %c0_i32, %c0_i32_0 : i32, i32, i32
  }
}

module attributes {stable_mosaic.version = 11 : i64} {
  func.func @_conv2_kernel(%arg0: i32, %arg1: memref<1x16x16x4xf32, #tpu.memory_space<vmem>>, %arg2: memref<1x4xf32, #tpu.memory_space<vmem>>, %arg3: memref<1x4xf32, #tpu.memory_space<vmem>>, %arg4: memref<36x4xbf16, #tpu.memory_space<vmem>>, %arg5: memref<1x256x4xf32, #tpu.memory_space<vmem>>, %arg6: memref<1x2x4xf32, #tpu.memory_space<vmem>>, %arg7: memref<18x18x4xf32, #tpu.memory_space<vmem>>) attributes {dimension_semantics = [#tpu.dimension_semantics<parallel>], iteration_bounds = array<i64: 2>, scalar_prefetch = 0 : i64, scratch_operands = 1 : i64, tpu.core_type = #tpu.core_type<tc>, window_params = [{transform_indices = @transform_0, window_bounds = array<i64: 1, 16, 16, 4>}, {pipeline_mode = #tpu.pipeline_mode<synchronous>, transform_indices = @transform_1, window_bounds = array<i64: 1, 4>}, {pipeline_mode = #tpu.pipeline_mode<synchronous>, transform_indices = @transform_2, window_bounds = array<i64: 1, 4>}, {pipeline_mode = #tpu.pipeline_mode<synchronous>, transform_indices = @transform_3, window_bounds = array<i64: 36, 4>}, {transform_indices = @transform_4, window_bounds = array<i64: 1, 256, 4>}, {transform_indices = @transform_5, window_bounds = array<i64: 1, 2, 4>}]} {
    %c0 = arith.constant 0 : index
    %c0_0 = arith.constant 0 : index
    %c0_1 = arith.constant 0 : index
    %c0_2 = arith.constant 0 : index
    %0 = vector.load %arg1[%c0, %c0_0, %c0_1, %c0_2] : memref<1x16x16x4xf32, #tpu.memory_space<vmem>>, vector<1x16x16x4xf32>
    %1 = vector.shape_cast %0 : vector<1x16x16x4xf32> to vector<16x16x4xf32>
    %c0_3 = arith.constant 0 : index
    %c0_4 = arith.constant 0 : index
    %2 = vector.load %arg2[%c0_3, %c0_4] : memref<1x4xf32, #tpu.memory_space<vmem>>, vector<1x4xf32>
    %3 = vector.shape_cast %2 : vector<1x4xf32> to vector<1x1x4xf32>
    %4 = vector.broadcast %3 : vector<1x1x4xf32> to vector<16x16x4xf32>
    %5 = arith.mulf %1, %4 : vector<16x16x4xf32>
    %c0_5 = arith.constant 0 : index
    %c0_6 = arith.constant 0 : index
    %6 = vector.load %arg3[%c0_5, %c0_6] : memref<1x4xf32, #tpu.memory_space<vmem>>, vector<1x4xf32>
    %7 = vector.shape_cast %6 : vector<1x4xf32> to vector<1x1x4xf32>
    %8 = vector.broadcast %7 : vector<1x1x4xf32> to vector<16x16x4xf32>
    %9 = arith.addf %5, %8 : vector<16x16x4xf32>
    %cst = arith.constant 0.000000e+00 : f32
    %10 = vector.broadcast %cst : f32 to vector<16x16x4xf32>
    %11 = arith.maximumf %9, %10 : vector<16x16x4xf32>
    %cst_7 = arith.constant 0.000000e+00 : f32
    %12 = vector.broadcast %cst_7 : f32 to vector<18x18x4xf32>
    %c0_8 = arith.constant 0 : index
    %c0_9 = arith.constant 0 : index
    %c0_10 = arith.constant 0 : index
    %13 = vector.load %arg7[%c0_8, %c0_9, %c0_10] : memref<18x18x4xf32, #tpu.memory_space<vmem>>, vector<18x18x4xf32>
    tpu.vector_store %arg7[%c0_8, %c0_9, %c0_10], %12 {strides = array<i32>} : memref<18x18x4xf32, #tpu.memory_space<vmem>>, vector<18x18x4xf32>,
    %c1 = arith.constant 1 : index
    %c1_11 = arith.constant 1 : index
    %c0_12 = arith.constant 0 : index
    %14 = vector.load %arg7[%c1, %c1_11, %c0_12] : memref<18x18x4xf32, #tpu.memory_space<vmem>>, vector<16x16x4xf32>
    tpu.vector_store %arg7[%c1, %c1_11, %c0_12], %11 {strides = array<i32>} : memref<18x18x4xf32, #tpu.memory_space<vmem>>, vector<16x16x4xf32>,
    %c0_13 = arith.constant 0 : index
    %c0_14 = arith.constant 0 : index
    %c0_15 = arith.constant 0 : index
    %15 = vector.load %arg7[%c0_13, %c0_14, %c0_15] : memref<18x18x4xf32, #tpu.memory_space<vmem>>, vector<16x16x4xf32>
    %c0_16 = arith.constant 0 : index
    %c1_17 = arith.constant 1 : index
    %c0_18 = arith.constant 0 : index
    %16 = vector.load %arg7[%c0_16, %c1_17, %c0_18] : memref<18x18x4xf32, #tpu.memory_space<vmem>>, vector<16x16x4xf32>
    %c0_19 = arith.constant 0 : index
    %c2 = arith.constant 2 : index
    %c0_20 = arith.constant 0 : index
    %17 = vector.load %arg7[%c0_19, %c2, %c0_20] : memref<18x18x4xf32, #tpu.memory_space<vmem>>, vector<16x16x4xf32>
    %c1_21 = arith.constant 1 : index
    %c0_22 = arith.constant 0 : index
    %c0_23 = arith.constant 0 : index
    %18 = vector.load %arg7[%c1_21, %c0_22, %c0_23] : memref<18x18x4xf32, #tpu.memory_space<vmem>>, vector<16x16x4xf32>
    %c1_24 = arith.constant 1 : index
    %c1_25 = arith.constant 1 : index
    %c0_26 = arith.constant 0 : index
    %19 = vector.load %arg7[%c1_24, %c1_25, %c0_26] : memref<18x18x4xf32, #tpu.memory_space<vmem>>, vector<16x16x4xf32>
    %c1_27 = arith.constant 1 : index
    %c2_28 = arith.constant 2 : index
    %c0_29 = arith.constant 0 : index
    %20 = vector.load %arg7[%c1_27, %c2_28, %c0_29] : memref<18x18x4xf32, #tpu.memory_space<vmem>>, vector<16x16x4xf32>
    %c2_30 = arith.constant 2 : index
    %c0_31 = arith.constant 0 : index
    %c0_32 = arith.constant 0 : index
    %21 = vector.load %arg7[%c2_30, %c0_31, %c0_32] : memref<18x18x4xf32, #tpu.memory_space<vmem>>, vector<16x16x4xf32>
    %c2_33 = arith.constant 2 : index
    %c1_34 = arith.constant 1 : index
    %c0_35 = arith.constant 0 : index
    %22 = vector.load %arg7[%c2_33, %c1_34, %c0_35] : memref<18x18x4xf32, #tpu.memory_space<vmem>>, vector<16x16x4xf32>
    %c2_36 = arith.constant 2 : index
    %c2_37 = arith.constant 2 : index
    %c0_38 = arith.constant 0 : index
    %23 = vector.load %arg7[%c2_36, %c2_37, %c0_38] : memref<18x18x4xf32, #tpu.memory_space<vmem>>, vector<16x16x4xf32>
    %24 = tpu.concatenate %15, %16, %17, %18, %19, %20, %21, %22, %23 in 2 : vector<16x16x4xf32>, vector<16x16x4xf32>, vector<16x16x4xf32>, vector<16x16x4xf32>, vector<16x16x4xf32>, vector<16x16x4xf32>, vector<16x16x4xf32>, vector<16x16x4xf32>, vector<16x16x4xf32> -> vector<16x16x36xf32>
    %25 = vector.shape_cast %24 : vector<16x16x36xf32> to vector<256x36xf32>
    %26 = arith.truncf %25 : vector<256x36xf32> to vector<256x36xbf16>
    %c0_39 = arith.constant 0 : index
    %c0_40 = arith.constant 0 : index
    %27 = vector.load %arg4[%c0_39, %c0_40] : memref<36x4xbf16, #tpu.memory_space<vmem>>, vector<36x4xbf16>
    %cst_41 = arith.constant dense<0.000000e+00> : vector<256x4xf32>
    %28 = tpu.matmul %26, %27, %cst_41 {dimension_numbers = #tpu.dot_dimension_numbers<[1], [0], [0], [1], [0, 0, 1, 1], [], []>} : vector<256x36xbf16>, vector<36x4xbf16>, vector<256x4xf32> -> vector<256x4xf32>
    %c0_42 = arith.constant 0 : index
    %c0_43 = arith.constant 0 : index
    %c0_44 = arith.constant 0 : index
    %29 = vector.load %arg5[%c0_42, %c0_43, %c0_44] : memref<1x256x4xf32, #tpu.memory_space<vmem>>, vector<1x256x4xf32>
    %30 = vector.shape_cast %29 : vector<1x256x4xf32> to vector<256x4xf32>
    %31 = vector.shape_cast %28 : vector<256x4xf32> to vector<1x256x4xf32>
    tpu.vector_store %arg5[%c0_42, %c0_43, %c0_44], %31 {strides = array<i32>} : memref<1x256x4xf32, #tpu.memory_space<vmem>>, vector<1x256x4xf32>,
    %cst_45 = arith.constant dense<0.000000e+00> : vector<4xf32>
    %32 = vector.multi_reduction <add>, %28, %cst_45 [0] : vector<256x4xf32> to vector<4xf32>
    %33 = vector.shape_cast %32 : vector<4xf32> to vector<1x4xf32>
    %34 = arith.mulf %28, %28 : vector<256x4xf32>
    %cst_46 = arith.constant dense<0.000000e+00> : vector<4xf32>
    %35 = vector.multi_reduction <add>, %34, %cst_46 [0] : vector<256x4xf32> to vector<4xf32>
    %36 = vector.shape_cast %35 : vector<4xf32> to vector<1x4xf32>
    %37 = tpu.concatenate %33, %36 in 0 : vector<1x4xf32>, vector<1x4xf32> -> vector<2x4xf32>
    %c0_47 = arith.constant 0 : index
    %c0_48 = arith.constant 0 : index
    %c0_49 = arith.constant 0 : index
    %38 = vector.load %arg6[%c0_47, %c0_48, %c0_49] : memref<1x2x4xf32, #tpu.memory_space<vmem>>, vector<1x2x4xf32>
    %39 = vector.shape_cast %38 : vector<1x2x4xf32> to vector<2x4xf32>
    %40 = vector.shape_cast %37 : vector<2x4xf32> to vector<1x2x4xf32>
    tpu.vector_store %arg6[%c0_47, %c0_48, %c0_49], %40 {strides = array<i32>} : memref<1x2x4xf32, #tpu.memory_space<vmem>>, vector<1x2x4xf32>,
    return
  }
  func.func @transform_0(%arg0: i32) -> (i32, i32, i32, i32) {
    %c0_i32 = arith.constant 0 : i32
    %c0_i32_0 = arith.constant 0 : i32
    %c0_i32_1 = arith.constant 0 : i32
    %c0_i32_2 = arith.constant 0 : i32
    return %arg0, %c0_i32, %c0_i32_0, %c0_i32_1 : i32, i32, i32, i32
  }
  func.func @transform_1(%arg0: i32) -> (i32, i32) {
    %c0_i32 = arith.constant 0 : i32
    %c0_i32_0 = arith.constant 0 : i32
    %c0_i32_1 = arith.constant 0 : i32
    return %c0_i32, %c0_i32_0 : i32, i32
  }
  func.func @transform_2(%arg0: i32) -> (i32, i32) {
    %c0_i32 = arith.constant 0 : i32
    %c0_i32_0 = arith.constant 0 : i32
    %c0_i32_1 = arith.constant 0 : i32
    return %c0_i32, %c0_i32_0 : i32, i32
  }
  func.func @transform_3(%arg0: i32) -> (i32, i32) {
    %c0_i32 = arith.constant 0 : i32
    %c0_i32_0 = arith.constant 0 : i32
    %c0_i32_1 = arith.constant 0 : i32
    return %c0_i32, %c0_i32_0 : i32, i32
  }
  func.func @transform_4(%arg0: i32) -> (i32, i32, i32) {
    %c0_i32 = arith.constant 0 : i32
    %c0_i32_0 = arith.constant 0 : i32
    %c0_i32_1 = arith.constant 0 : i32
    return %arg0, %c0_i32, %c0_i32_0 : i32, i32, i32
  }
  func.func @transform_5(%arg0: i32) -> (i32, i32, i32) {
    %c0_i32 = arith.constant 0 : i32
    %c0_i32_0 = arith.constant 0 : i32
    %c0_i32_1 = arith.constant 0 : i32
    return %arg0, %c0_i32, %c0_i32_0 : i32, i32, i32
  }
}

module attributes {stable_mosaic.version = 11 : i64} {
  func.func @_conv3_kernel(%arg0: i32, %arg1: memref<256x4xf32, #tpu.memory_space<vmem>>, %arg2: memref<1x4xf32, #tpu.memory_space<vmem>>, %arg3: memref<1x4xf32, #tpu.memory_space<vmem>>, %arg4: memref<4x16xbf16, #tpu.memory_space<vmem>>, %arg5: memref<256x16xf32, #tpu.memory_space<vmem>>, %arg6: memref<1x2x16xf32, #tpu.memory_space<vmem>>) attributes {dimension_semantics = [#tpu.dimension_semantics<parallel>], iteration_bounds = array<i64: 2>, scalar_prefetch = 0 : i64, scratch_operands = 0 : i64, tpu.core_type = #tpu.core_type<tc>, window_params = [{transform_indices = @transform_0, window_bounds = array<i64: 256, 4>}, {pipeline_mode = #tpu.pipeline_mode<synchronous>, transform_indices = @transform_1, window_bounds = array<i64: 1, 4>}, {pipeline_mode = #tpu.pipeline_mode<synchronous>, transform_indices = @transform_2, window_bounds = array<i64: 1, 4>}, {pipeline_mode = #tpu.pipeline_mode<synchronous>, transform_indices = @transform_3, window_bounds = array<i64: 4, 16>}, {transform_indices = @transform_4, window_bounds = array<i64: 256, 16>}, {transform_indices = @transform_5, window_bounds = array<i64: 1, 2, 16>}]} {
    %c0 = arith.constant 0 : index
    %c0_0 = arith.constant 0 : index
    %0 = vector.load %arg1[%c0, %c0_0] : memref<256x4xf32, #tpu.memory_space<vmem>>, vector<256x4xf32>
    %c0_1 = arith.constant 0 : index
    %c0_2 = arith.constant 0 : index
    %1 = vector.load %arg2[%c0_1, %c0_2] : memref<1x4xf32, #tpu.memory_space<vmem>>, vector<1x4xf32>
    %2 = vector.broadcast %1 : vector<1x4xf32> to vector<256x4xf32>
    %3 = arith.mulf %0, %2 : vector<256x4xf32>
    %c0_3 = arith.constant 0 : index
    %c0_4 = arith.constant 0 : index
    %4 = vector.load %arg3[%c0_3, %c0_4] : memref<1x4xf32, #tpu.memory_space<vmem>>, vector<1x4xf32>
    %5 = vector.broadcast %4 : vector<1x4xf32> to vector<256x4xf32>
    %6 = arith.addf %3, %5 : vector<256x4xf32>
    %cst = arith.constant 0.000000e+00 : f32
    %7 = vector.broadcast %cst : f32 to vector<256x4xf32>
    %8 = arith.maximumf %6, %7 : vector<256x4xf32>
    %9 = arith.truncf %8 : vector<256x4xf32> to vector<256x4xbf16>
    %c0_5 = arith.constant 0 : index
    %c0_6 = arith.constant 0 : index
    %10 = vector.load %arg4[%c0_5, %c0_6] : memref<4x16xbf16, #tpu.memory_space<vmem>>, vector<4x16xbf16>
    %cst_7 = arith.constant dense<0.000000e+00> : vector<256x16xf32>
    %11 = tpu.matmul %9, %10, %cst_7 {dimension_numbers = #tpu.dot_dimension_numbers<[1], [0], [0], [1], [0, 0, 1, 1], [], []>} : vector<256x4xbf16>, vector<4x16xbf16>, vector<256x16xf32> -> vector<256x16xf32>
    %c0_8 = arith.constant 0 : index
    %c0_9 = arith.constant 0 : index
    %12 = vector.load %arg5[%c0_8, %c0_9] : memref<256x16xf32, #tpu.memory_space<vmem>>, vector<256x16xf32>
    tpu.vector_store %arg5[%c0_8, %c0_9], %11 {strides = array<i32>} : memref<256x16xf32, #tpu.memory_space<vmem>>, vector<256x16xf32>,
    %cst_10 = arith.constant dense<0.000000e+00> : vector<16xf32>
    %13 = vector.multi_reduction <add>, %11, %cst_10 [0] : vector<256x16xf32> to vector<16xf32>
    %14 = vector.shape_cast %13 : vector<16xf32> to vector<1x16xf32>
    %15 = arith.mulf %11, %11 : vector<256x16xf32>
    %cst_11 = arith.constant dense<0.000000e+00> : vector<16xf32>
    %16 = vector.multi_reduction <add>, %15, %cst_11 [0] : vector<256x16xf32> to vector<16xf32>
    %17 = vector.shape_cast %16 : vector<16xf32> to vector<1x16xf32>
    %18 = tpu.concatenate %14, %17 in 0 : vector<1x16xf32>, vector<1x16xf32> -> vector<2x16xf32>
    %c0_12 = arith.constant 0 : index
    %c0_13 = arith.constant 0 : index
    %c0_14 = arith.constant 0 : index
    %19 = vector.load %arg6[%c0_12, %c0_13, %c0_14] : memref<1x2x16xf32, #tpu.memory_space<vmem>>, vector<1x2x16xf32>
    %20 = vector.shape_cast %19 : vector<1x2x16xf32> to vector<2x16xf32>
    %21 = vector.shape_cast %18 : vector<2x16xf32> to vector<1x2x16xf32>
    tpu.vector_store %arg6[%c0_12, %c0_13, %c0_14], %21 {strides = array<i32>} : memref<1x2x16xf32, #tpu.memory_space<vmem>>, vector<1x2x16xf32>,
    return
  }
  func.func @transform_0(%arg0: i32) -> (i32, i32) {
    %c0_i32 = arith.constant 0 : i32
    %c0_i32_0 = arith.constant 0 : i32
    return %arg0, %c0_i32 : i32, i32
  }
  func.func @transform_1(%arg0: i32) -> (i32, i32) {
    %c0_i32 = arith.constant 0 : i32
    %c0_i32_0 = arith.constant 0 : i32
    %c0_i32_1 = arith.constant 0 : i32
    return %c0_i32, %c0_i32_0 : i32, i32
  }
  func.func @transform_2(%arg0: i32) -> (i32, i32) {
    %c0_i32 = arith.constant 0 : i32
    %c0_i32_0 = arith.constant 0 : i32
    %c0_i32_1 = arith.constant 0 : i32
    return %c0_i32, %c0_i32_0 : i32, i32
  }
  func.func @transform_3(%arg0: i32) -> (i32, i32) {
    %c0_i32 = arith.constant 0 : i32
    %c0_i32_0 = arith.constant 0 : i32
    %c0_i32_1 = arith.constant 0 : i32
    return %c0_i32, %c0_i32_0 : i32, i32
  }
  func.func @transform_4(%arg0: i32) -> (i32, i32) {
    %c0_i32 = arith.constant 0 : i32
    %c0_i32_0 = arith.constant 0 : i32
    return %arg0, %c0_i32 : i32, i32
  }
  func.func @transform_5(%arg0: i32) -> (i32, i32, i32) {
    %c0_i32 = arith.constant 0 : i32
    %c0_i32_0 = arith.constant 0 : i32
    %c0_i32_1 = arith.constant 0 : i32
    return %arg0, %c0_i32, %c0_i32_0 : i32, i32, i32
  }
}

module attributes {stable_mosaic.version = 11 : i64} {
  func.func @_residual_kernel(%arg0: i32, %arg1: memref<256x16xf32, #tpu.memory_space<vmem>>, %arg2: memref<256x16xf32, #tpu.memory_space<vmem>>, %arg3: memref<1x16xf32, #tpu.memory_space<vmem>>, %arg4: memref<1x16xf32, #tpu.memory_space<vmem>>, %arg5: memref<256x16xf32, #tpu.memory_space<vmem>>) attributes {dimension_semantics = [#tpu.dimension_semantics<parallel>], iteration_bounds = array<i64: 2>, scalar_prefetch = 0 : i64, scratch_operands = 0 : i64, tpu.core_type = #tpu.core_type<tc>, window_params = [{transform_indices = @transform_0, window_bounds = array<i64: 256, 16>}, {transform_indices = @transform_1, window_bounds = array<i64: 256, 16>}, {pipeline_mode = #tpu.pipeline_mode<synchronous>, transform_indices = @transform_2, window_bounds = array<i64: 1, 16>}, {pipeline_mode = #tpu.pipeline_mode<synchronous>, transform_indices = @transform_3, window_bounds = array<i64: 1, 16>}, {transform_indices = @transform_4, window_bounds = array<i64: 256, 16>}]} {
    %c0 = arith.constant 0 : index
    %c0_0 = arith.constant 0 : index
    %0 = vector.load %arg1[%c0, %c0_0] : memref<256x16xf32, #tpu.memory_space<vmem>>, vector<256x16xf32>
    %c0_1 = arith.constant 0 : index
    %c0_2 = arith.constant 0 : index
    %1 = vector.load %arg3[%c0_1, %c0_2] : memref<1x16xf32, #tpu.memory_space<vmem>>, vector<1x16xf32>
    %2 = vector.broadcast %1 : vector<1x16xf32> to vector<256x16xf32>
    %3 = arith.mulf %0, %2 : vector<256x16xf32>
    %c0_3 = arith.constant 0 : index
    %c0_4 = arith.constant 0 : index
    %4 = vector.load %arg4[%c0_3, %c0_4] : memref<1x16xf32, #tpu.memory_space<vmem>>, vector<1x16xf32>
    %5 = vector.broadcast %4 : vector<1x16xf32> to vector<256x16xf32>
    %6 = arith.addf %3, %5 : vector<256x16xf32>
    %cst = arith.constant 0.000000e+00 : f32
    %7 = vector.broadcast %cst : f32 to vector<256x16xf32>
    %8 = arith.maximumf %6, %7 : vector<256x16xf32>
    %c0_5 = arith.constant 0 : index
    %c0_6 = arith.constant 0 : index
    %9 = vector.load %arg2[%c0_5, %c0_6] : memref<256x16xf32, #tpu.memory_space<vmem>>, vector<256x16xf32>
    %10 = arith.addf %8, %9 : vector<256x16xf32>
    %cst_7 = arith.constant 0.000000e+00 : f32
    %11 = vector.broadcast %cst_7 : f32 to vector<256x16xf32>
    %12 = arith.maximumf %10, %11 : vector<256x16xf32>
    %c0_8 = arith.constant 0 : index
    %c0_9 = arith.constant 0 : index
    %13 = vector.load %arg5[%c0_8, %c0_9] : memref<256x16xf32, #tpu.memory_space<vmem>>, vector<256x16xf32>
    tpu.vector_store %arg5[%c0_8, %c0_9], %12 {strides = array<i32>} : memref<256x16xf32, #tpu.memory_space<vmem>>, vector<256x16xf32>,
    return
  }
  func.func @transform_0(%arg0: i32) -> (i32, i32) {
    %c0_i32 = arith.constant 0 : i32
    %c0_i32_0 = arith.constant 0 : i32
    return %arg0, %c0_i32 : i32, i32
  }
  func.func @transform_1(%arg0: i32) -> (i32, i32) {
    %c0_i32 = arith.constant 0 : i32
    %c0_i32_0 = arith.constant 0 : i32
    return %arg0, %c0_i32 : i32, i32
  }
  func.func @transform_2(%arg0: i32) -> (i32, i32) {
    %c0_i32 = arith.constant 0 : i32
    %c0_i32_0 = arith.constant 0 : i32
    %c0_i32_1 = arith.constant 0 : i32
    return %c0_i32, %c0_i32_0 : i32, i32
  }
  func.func @transform_3(%arg0: i32) -> (i32, i32) {
    %c0_i32 = arith.constant 0 : i32
    %c0_i32_0 = arith.constant 0 : i32
    %c0_i32_1 = arith.constant 0 : i32
    return %c0_i32, %c0_i32_0 : i32, i32
  }
  func.func @transform_4(%arg0: i32) -> (i32, i32) {
    %c0_i32 = arith.constant 0 : i32
    %c0_i32_0 = arith.constant 0 : i32
    return %arg0, %c0_i32 : i32, i32
  }
}

</mosaic_0001>

<llo_original>
// kernel: bottleneck_forward.4
$region0: #{bottleneck_forward.4}
  #allocation0 [shape = 'u32[]', space=smem, size = 0x4, offset = 0x4, fixed_abs, tag = 'smem constant byte address 0x4 - core index']
  #allocation1 [shape = 'u32[72,128]{1,0:T(1,128)}', space=vmem, size = 0x9000, scoped, tag = 'internal scratch']
  %s0 = inlined_call_operand.vmem [shape: f32[512,16], index: 0, kind: input, shape index: {}]
  %s1 = inlined_call_operand.vmem [shape: bf16[16,4], index: 1, kind: input, shape index: {}]
  %s2 = inlined_call_operand.vmem [shape: f32[512,4], index: 2, kind: output, shape index: {0}]
  %s3 = inlined_call_operand.vmem [shape: f32[2,2,4], index: 3, kind: output, shape index: {1}]
  %4 = xla_tuple %s2, %s3
  %s5 = sld [smem:[#allocation0]]
  $region49: #{bottleneck_forward.4} parent=0
    _
  %s7 = ssub.s32 1, %s5
  %s8 = scalar_select 0, %s7, %s5
  loop: start=0, step=1, limit=4
  $region2: #{bottleneck_forward.4} parent=0 // loop_pre_header
    _
  $region3: #{bottleneck_forward.4} parent=0 // loop_header
    %s10 = sphi 0, %s14
    %p11 = scmp.ge.s32.totalorder %s10, 4
    %s20 = sphi 0, %s22
    %s23 = sphi 0, %s20
    %s24 = sphi 0, %s23
    %s40 = sphi 0, %s24
    %s44 = sphi 0, %s44
    %s46 = sphi 0, %s44
    %s47 = sphi 0, %s46
    %s61 = sphi 0, %s47
    %s67 = sphi 0, %s69
    %s70 = sphi 0, %s67
    %s71 = sphi 0, %s70
    %s87 = sphi 0, %s71
    %s93 = sphi 0, %s95
    %s96 = sphi 0, %s93
    %s97 = sphi 0, %s96
    %s113 = sphi 0, %s97
  $region4: #{bottleneck_forward.4} parent=0 // loop_header_branch
    %13 = sbr.rel (%p11) target = $region8
  $region5: #{bottleneck_forward.4} parent=0 // loop_body
    %s15 = ssub.s32 %s10, 1
    %s16 = ssub.s32 %s10, 2
    %s17 = sadd.s32 %s10, 1
    %s18 = ssub.s32 %s10, %s17
    %p19 = scmp.eq.s32.totalorder %s18, 0
    %s21 = sadd.s32 %s20, 1
    %s22 = scalar_select %p19, %s20, %s21
    %p25 = pneg %p19
    %p26 = scmp.eq.s32.totalorder %s10, 1
    %p27 = por %p25, %p26
    %p28 = scmp.ne.s32.totalorder %s20, %s23
    %p29 = scmp.eq.s32.totalorder %s10, 0
    %p30 = por %p28, %p29
    %p31 = scmp.ne.s32.totalorder %s20, %s23
    %p32 = scmp.eq.s32.totalorder %s15, 1
    %p33 = por %p31, %p32
    %p34 = scmp.ne.s32.totalorder %s23, %s24
    %p35 = scmp.eq.s32.totalorder %s15, 0
    %p36 = por %p34, %p35
    %p37 = scmp.ne.s32.totalorder %s23, %s24
    %p38 = scmp.eq.s32.totalorder %s16, 1
    %p39 = por %p37, %p38
    %p41 = scmp.ne.s32.totalorder %s24, %s40
    %p42 = scmp.eq.s32.totalorder %s16, 0
    %p43 = por %p41, %p42
    %s45 = sadd.s32 %s44, 1
    %p48 = scmp.eq.s32.totalorder %s10, 1
    %p49 = scmp.ne.s32.totalorder %s44, %s46
    %p50 = scmp.eq.s32.totalorder %s10, 0
    %p51 = por %p49, %p50
    %p52 = scmp.ne.s32.totalorder %s44, %s46
    %p53 = scmp.eq.s32.totalorder %s15, 1
    %p54 = por %p52, %p53
    %p55 = scmp.ne.s32.totalorder %s46, %s47
    %p56 = scmp.eq.s32.totalorder %s15, 0
    %p57 = por %p55, %p56
    %p58 = scmp.ne.s32.totalorder %s46, %s47
    %p59 = scmp.eq.s32.totalorder %s16, 1
    %p60 = por %p58, %p59
    %p62 = scmp.ne.s32.totalorder %s47, %s61
    %p63 = scmp.eq.s32.totalorder %s16, 0
    %p64 = por %p62, %p63
    %s65 = ssub.s32 %s10, %s17
    %p66 = scmp.eq.s32.totalorder %s65, 0
    %s68 = sadd.s32 %s67, 1
    %s69 = scalar_select %p66, %s67, %s68
    %p72 = pneg %p66
    %p73 = scmp.eq.s32.totalorder %s10, 1
    %p74 = por %p72, %p73
    %p75 = scmp.ne.s32.totalorder %s67, %s70
    %p76 = scmp.eq.s32.totalorder %s10, 0
    %p77 = por %p75, %p76
    %p78 = scmp.ne.s32.totalorder %s67, %s70
    %p79 = scmp.eq.s32.totalorder %s15, 1
    %p80 = por %p78, %p79
    %p81 = scmp.ne.s32.totalorder %s70, %s71
    %p82 = scmp.eq.s32.totalorder %s15, 0
    %p83 = por %p81, %p82
    %p84 = scmp.ne.s32.totalorder %s70, %s71
    %p85 = scmp.eq.s32.totalorder %s16, 1
    %p86 = por %p84, %p85
    %p88 = scmp.ne.s32.totalorder %s71, %s87
    %p89 = scmp.eq.s32.totalorder %s16, 0
    %p90 = por %p88, %p89
    %s91 = ssub.s32 %s10, %s17
    %p92 = scmp.eq.s32.totalorder %s91, 0
    %s94 = sadd.s32 %s93, 1
    %s95 = scalar_select %p92, %s93, %s94
    %p98 = pneg %p92
    %p99 = scmp.eq.s32.totalorder %s10, 1
    %p100 = por %p98, %p99
    %p101 = scmp.ne.s32.totalorder %s93, %s96
    %p102 = scmp.eq.s32.totalorder %s10, 0
    %p103 = por %p101, %p102
    %p104 = scmp.ne.s32.totalorder %s93, %s96
    %p105 = scmp.eq.s32.totalorder %s15, 1
    %p106 = por %p104, %p105
    %p107 = scmp.ne.s32.totalorder %s96, %s97
    %p108 = scmp.eq.s32.totalorder %s15, 0
    %p109 = por %p107, %p108
    %p110 = scmp.ne.s32.totalorder %s96, %s97
    %p111 = scmp.eq.s32.totalorder %s16, 1
    %p112 = por %p110, %p111
    %p114 = scmp.ne.s32.totalorder %s97, %s113
    %p115 = scmp.eq.s32.totalorder %s16, 0
    %p116 = por %p114, %p115
    %p117 = scmp.le.s32.totalorder 1, %s10
    %p118 = scmp.lt.s32.totalorder %s10, 3
    %p119 = pnand %p117, %p118
    %p120 = pneg %p119
    // Predicated region
    $region9: #{bottleneck_forward.4} parent=5 // pred_check
      _
    $region10: #{bottleneck_forward.4} parent=5 // pred_check_branch
      %122 = sbr.rel (%p119) target = $region12
    $region11: #{bottleneck_forward.4} parent=5 // pred_region
      %s123 = ssub.s32 %s10, 1
      // Predicated region
      $region13: #{bottleneck_forward.4} parent=11 // pred_check
        %p124 = pneg %p57
      $region14: #{bottleneck_forward.4} parent=11 // pred_check_branch
        %126 = sbr.rel (%p124) target = $region16
      $region15: #{bottleneck_forward.4} parent=11 // pred_region
        _
      $region16: #{bottleneck_forward.4} parent=11 // pred_fallthru
        _
    $region12: #{bottleneck_forward.4} parent=5 // pred_fallthru
      _
    %p127 = scmp.lt.s32.totalorder %s10, 2
    // Predicated region
    $region17: #{bottleneck_forward.4} parent=5 // pred_check
      %p128 = pneg %p127
    $region18: #{bottleneck_forward.4} parent=5 // pred_check_branch
      %130 = sbr.rel (%p128) target = $region20
    $region19: #{bottleneck_forward.4} parent=5 // pred_region
      // Predicated region
      $region21: #{bottleneck_forward.4} parent=19 // pred_check
        %p131 = pneg %p30
      $region22: #{bottleneck_forward.4} parent=19 // pred_check_branch
        %133 = sbr.rel (%p131) target = $region24
      $region23: #{bottleneck_forward.4} parent=19 // pred_region
        %s134 = smul.u32 32, %s10
        %p135 = scmp.lt.s32.totalorder %s134, 63
        %s136 = scalar_select %p135, %s134, 63
        %s137 = smul.addr %s136, 8
        %s138 = scalar_lea.vmem %s0, %s137
        %s139 = smul.u32 32, %s10
      $region24: #{bottleneck_forward.4} parent=19 // pred_fallthru
        _
    $region20: #{bottleneck_forward.4} parent=5 // pred_fallthru
      _
    %p140 = scmp.le.s32.totalorder 1, %s10
    %p141 = scmp.lt.s32.totalorder %s10, 3
    %p142 = pnand %p140, %p141
    %p143 = pneg %p142
    // Predicated region
    $region25: #{bottleneck_forward.4} parent=5 // pred_check
      _
    $region26: #{bottleneck_forward.4} parent=5 // pred_check_branch
      %145 = sbr.rel (%p142) target = $region28
    $region27: #{bottleneck_forward.4} parent=5 // pred_region
      %s146 = ssub.s32 %s10, 1
      %s147 = smul.u32 32, %s15
      %p148 = scmp.lt.s32.totalorder %s147, 63
      %s149 = scalar_select %p148, %s147, 63
      %s150 = smul.addr %s149, 8
      %s151 = scalar_lea.vmem %s0, %s150
      %p152 = pneg %p36
      %p153 = pneg %p33
      %p154 = pneg %p57
      %p155 = pneg %p54
      %p156 = pneg %p83
      %p157 = pneg %p80
      %s158 = smul.u32 32, %s15
      %p159 = scmp.lt.s32.totalorder %s158, 63
      %s160 = scalar_select %p159, %s158, 63
      %s161 = smul.addr %s160, 8
      %s162 = scalar_lea.vmem %s2, %s161
      %p163 = pneg %p109
      %p164 = pneg %p106
      %p165 = scmp.lt.s32.totalorder %s15, 1
      %s166 = scalar_select %p165, %s15, 1
      %s167 = smul.addr %s166, 2
      %s168 = scalar_lea.vmem %s3, %s167
      %s169 = smul.u32 32, %s15
      %p170 = scmp.lt.s32.totalorder %s169, 63
      %s171 = scalar_select %p170, %s169, 63
      %s172 = smul.addr %s171, 8
      %s173 = scalar_lea.vmem %s0, %s172
      %s174 = smul.u32 32, %s15
      %s175 = smul.u32 32, %s15
      %p176 = scmp.lt.s32.totalorder %s175, 63
      %s177 = scalar_select %p176, %s175, 63
      %s178 = smul.addr %s177, 8
      %s179 = scalar_lea.vmem %s2, %s178
      %s180 = smul.u32 32, %s15
      %p181 = scmp.lt.s32.totalorder %s15, 1
      %s182 = scalar_select %p181, %s15, 1
      %s183 = smul.addr %s182, 2
      %s184 = scalar_lea.vmem %s3, %s183
      %v186 = vld [vmem:[%s173] sm:$0xff]
      %v187 = vld [vmem:[%s173 + $0x8] sm:$0xff]
      %v188 = vld [vmem:[%s173 + $0x10] sm:$0xff]
      %v189 = vld [vmem:[%s173 + $0x18] sm:$0xff]
      %v190 = vld [vmem:[%s173 + $0x20] sm:$0xff]
      %v191 = vld [vmem:[%s173 + $0x28] sm:$0xff]
      %v192 = vld [vmem:[%s173 + $0x30] sm:$0xff]
      %v193 = vld [vmem:[%s173 + $0x38] sm:$0xff]
      %v194 = vld [vmem:[%s173 + $0x40] sm:$0xff]
      %v195 = vld [vmem:[%s173 + $0x48] sm:$0xff]
      %v196 = vld [vmem:[%s173 + $0x50] sm:$0xff]
      %v197 = vld [vmem:[%s173 + $0x58] sm:$0xff]
      %v198 = vld [vmem:[%s173 + $0x60] sm:$0xff]
      %v199 = vld [vmem:[%s173 + $0x68] sm:$0xff]
      %v200 = vld [vmem:[%s173 + $0x70] sm:$0xff]
      %v201 = vld [vmem:[%s173 + $0x78] sm:$0xff]
      %v202 = vld [vmem:[%s173 + $0x80] sm:$0xff]
      %v203 = vld [vmem:[%s173 + $0x88] sm:$0xff]
      %v204 = vld [vmem:[%s173 + $0x90] sm:$0xff]
      %v205 = vld [vmem:[%s173 + $0x98] sm:$0xff]
      %v206 = vld [vmem:[%s173 + $0xa0] sm:$0xff]
      %v207 = vld [vmem:[%s173 + $0xa8] sm:$0xff]
      %v208 = vld [vmem:[%s173 + $0xb0] sm:$0xff]
      %v209 = vld [vmem:[%s173 + $0xb8] sm:$0xff]
      %v210 = vld [vmem:[%s173 + $0xc0] sm:$0xff]
      %v211 = vld [vmem:[%s173 + $0xc8] sm:$0xff]
      %v212 = vld [vmem:[%s173 + $0xd0] sm:$0xff]
      %v213 = vld [vmem:[%s173 + $0xd8] sm:$0xff]
      %v214 = vld [vmem:[%s173 + $0xe0] sm:$0xff]
      %v215 = vld [vmem:[%s173 + $0xe8] sm:$0xff]
      %v216 = vld [vmem:[%s173 + $0xf0] sm:$0xff]
      %v217 = vld [vmem:[%s173 + $0xf8] sm:$0xff]
      %v218 = vpack.c.bf16 %v187, %v186
      %v219 = vpack.c.bf16 %v189, %v188
      %v220 = vpack.c.bf16 %v191, %v190
      %v221 = vpack.c.bf16 %v193, %v192
      %v222 = vpack.c.bf16 %v195, %v194
      %v223 = vpack.c.bf16 %v197, %v196
      %v224 = vpack.c.bf16 %v199, %v198
      %v225 = vpack.c.bf16 %v201, %v200
      %v226 = vpack.c.bf16 %v203, %v202
      %v227 = vpack.c.bf16 %v205, %v204
      %v228 = vpack.c.bf16 %v207, %v206
      %v229 = vpack.c.bf16 %v209, %v208
      %v230 = vpack.c.bf16 %v211, %v210
      %v231 = vpack.c.bf16 %v213, %v212
      %v232 = vpack.c.bf16 %v215, %v214
      %v233 = vpack.c.bf16 %v217, %v216
      %v234 = vld [vmem:[%s1] sm:$0xf]
      %v235 = vld [vmem:[%s1 + $0x4] sm:$0xf]
      %v238 = vunpack.c.l.b16 %v234
      %v239 = vunpack.c.l.b16 %v235
      %v240 = vpack.c.b16 %v239, %v238
      %vm242 = vcmask 130048
      %v244 = vsel %vm242, %v218, 0
      %v247 = vsel %vm242, %v219, 0
      %v250 = vsel %vm242, %v220, 0
      %v253 = vsel %vm242, %v221, 0
      %v256 = vsel %vm242, %v222, 0
      %v259 = vsel %vm242, %v223, 0
      %v262 = vsel %vm242, %v224, 0
      %v265 = vsel %vm242, %v225, 0
      %v268 = vsel %vm242, %v226, 0
      %v271 = vsel %vm242, %v227, 0
      %v274 = vsel %vm242, %v228, 0
      %v277 = vsel %vm242, %v229, 0
      %v280 = vsel %vm242, %v230, 0
      %v283 = vsel %vm242, %v231, 0
      %v286 = vsel %vm242, %v232, 0
      %v289 = vsel %vm242, %v233, 0
      %291 = vmatpush.bf16.msra.mxu0 0
      %292 = vmatpush.bf16.msra.mxu0 0
      %293 = vmatpush.bf16.msra.mxu0 0
      %294 = vmatpush.bf16.msra.mxu0 0
      %295 = vmatpush.bf16.msra.mxu0 0
      %296 = vmatpush.bf16.msra.mxu0 0
      %297 = vmatpush.bf16.msra.mxu0 0
      %298 = vmatpush.bf16.msra.mxu0 %v240
      %299 = vmatmul.bf16.gmra.mxu0 %v244
      %v300 = vpop.f32.mrf.mxu0
      %v301 = vadd.f32 0.0, %v300
      %v302 = vpop.f32.mrf.mxu0
      %v303 = vadd.f32 0.0, %v302
      %304 = vmatmul.bf16.gmra.mxu0 %v247
      %v305 = vpop.f32.mrf.mxu0
      %v306 = vadd.f32 0.0, %v305
      %v307 = vpop.f32.mrf.mxu0
      %v308 = vadd.f32 0.0, %v307
      %309 = vmatmul.bf16.gmra.mxu0 %v250
      %v310 = vpop.f32.mrf.mxu0
      %v311 = vadd.f32 0.0, %v310
      %v312 = vpop.f32.mrf.mxu0
      %v313 = vadd.f32 0.0, %v312
      %314 = vmatmul.bf16.gmra.mxu0 %v253
      %v315 = vpop.f32.mrf.mxu0
      %v316 = vadd.f32 0.0, %v315
      %v317 = vpop.f32.mrf.mxu0
      %v318 = vadd.f32 0.0, %v317
      %319 = vmatmul.bf16.gmra.mxu0 %v256
      %v320 = vpop.f32.mrf.mxu0
      %v321 = vadd.f32 0.0, %v320
      %v322 = vpop.f32.mrf.mxu0
      %v323 = vadd.f32 0.0, %v322
      %324 = vmatmul.bf16.gmra.mxu0 %v259
      %v325 = vpop.f32.mrf.mxu0
      %v326 = vadd.f32 0.0, %v325
      %v327 = vpop.f32.mrf.mxu0
      %v328 = vadd.f32 0.0, %v327
      %329 = vmatmul.bf16.gmra.mxu0 %v262
      %v330 = vpop.f32.mrf.mxu0
      %v331 = vadd.f32 0.0, %v330
      %v332 = vpop.f32.mrf.mxu0
      %v333 = vadd.f32 0.0, %v332
      %334 = vmatmul.bf16.gmra.mxu0 %v265
      %v335 = vpop.f32.mrf.mxu0
      %v336 = vadd.f32 0.0, %v335
      %v337 = vpop.f32.mrf.mxu0
      %v338 = vadd.f32 0.0, %v337
      %339 = vmatmul.bf16.gmra.mxu0 %v268
      %v340 = vpop.f32.mrf.mxu0
      %v341 = vadd.f32 0.0, %v340
      %v342 = vpop.f32.mrf.mxu0
      %v343 = vadd.f32 0.0, %v342
      %344 = vmatmul.bf16.gmra.mxu0 %v271
      %v345 = vpop.f32.mrf.mxu0
      %v346 = vadd.f32 0.0, %v345
      %v347 = vpop.f32.mrf.mxu0
      %v348 = vadd.f32 0.0, %v347
      %349 = vmatmul.bf16.gmra.mxu0 %v274
      %v350 = vpop.f32.mrf.mxu0
      %v351 = vadd.f32 0.0, %v350
      %v352 = vpop.f32.mrf.mxu0
      %v353 = vadd.f32 0.0, %v352
      %354 = vmatmul.bf16.gmra.mxu0 %v277
      %v355 = vpop.f32.mrf.mxu0
      %v356 = vadd.f32 0.0, %v355
      %v357 = vpop.f32.mrf.mxu0
      %v358 = vadd.f32 0.0, %v357
      %359 = vmatmul.bf16.gmra.mxu0 %v280
      %v360 = vpop.f32.mrf.mxu0
      %v361 = vadd.f32 0.0, %v360
      %v362 = vpop.f32.mrf.mxu0
      %v363 = vadd.f32 0.0, %v362
      %364 = vmatmul.bf16.gmra.mxu0 %v283
      %v365 = vpop.f32.mrf.mxu0
      %v366 = vadd.f32 0.0, %v365
      %v367 = vpop.f32.mrf.mxu0
      %v368 = vadd.f32 0.0, %v367
      %369 = vmatmul.bf16.gmra.mxu0 %v286
      %v370 = vpop.f32.mrf.mxu0
      %v371 = vadd.f32 0.0, %v370
      %v372 = vpop.f32.mrf.mxu0
      %v373 = vadd.f32 0.0, %v372
      %374 = vmatmul.bf16.gmra.mxu0 %v289
      %v375 = vpop.f32.mrf.mxu0
      %v376 = vadd.f32 0.0, %v375
      %v377 = vpop.f32.mrf.mxu0
      %v378 = vadd.f32 0.0, %v377
      %379 = vdwg.mxu0
      %vm380 = vcmask 31744
      %381 = vst.msk [vmem:[%s179] sm:$0xff] %vm380, %v301
      %382 = vst.msk [vmem:[%s179 + $0x8] sm:$0xff] %vm380, %v303
      %383 = vst.msk [vmem:[%s179 + $0x10] sm:$0xff] %vm380, %v306
      %384 = vst.msk [vmem:[%s179 + $0x18] sm:$0xff] %vm380, %v308
      %385 = vst.msk [vmem:[%s179 + $0x20] sm:$0xff] %vm380, %v311
      %386 = vst.msk [vmem:[%s179 + $0x28] sm:$0xff] %vm380, %v313
      %387 = vst.msk [vmem:[%s179 + $0x30] sm:$0xff] %vm380, %v316
      %388 = vst.msk [vmem:[%s179 + $0x38] sm:$0xff] %vm380, %v318
      %389 = vst.msk [vmem:[%s179 + $0x40] sm:$0xff] %vm380, %v321
      %390 = vst.msk [vmem:[%s179 + $0x48] sm:$0xff] %vm380, %v323
      %391 = vst.msk [vmem:[%s179 + $0x50] sm:$0xff] %vm380, %v326
      %392 = vst.msk [vmem:[%s179 + $0x58] sm:$0xff] %vm380, %v328
      %393 = vst.msk [vmem:[%s179 + $0x60] sm:$0xff] %vm380, %v331
      %394 = vst.msk [vmem:[%s179 + $0x68] sm:$0xff] %vm380, %v333
      %395 = vst.msk [vmem:[%s179 + $0x70] sm:$0xff] %vm380, %v336
      %396 = vst.msk [vmem:[%s179 + $0x78] sm:$0xff] %vm380, %v338
      %397 = vst.msk [vmem:[%s179 + $0x80] sm:$0xff] %vm380, %v341
      %398 = vst.msk [vmem:[%s179 + $0x88] sm:$0xff] %vm380, %v343
      %399 = vst.msk [vmem:[%s179 + $0x90] sm:$0xff] %vm380, %v346
      %400 = vst.msk [vmem:[%s179 + $0x98] sm:$0xff] %vm380, %v348
      %401 = vst.msk [vmem:[%s179 + $0xa0] sm:$0xff] %vm380, %v351
      %402 = vst.msk [vmem:[%s179 + $0xa8] sm:$0xff] %vm380, %v353
      %403 = vst.msk [vmem:[%s179 + $0xb0] sm:$0xff] %vm380, %v356
      %404 = vst.msk [vmem:[%s179 + $0xb8] sm:$0xff] %vm380, %v358
      %405 = vst.msk [vmem:[%s179 + $0xc0] sm:$0xff] %vm380, %v361
      %406 = vst.msk [vmem:[%s179 + $0xc8] sm:$0xff] %vm380, %v363
      %407 = vst.msk [vmem:[%s179 + $0xd0] sm:$0xff] %vm380, %v366
      %408 = vst.msk [vmem:[%s179 + $0xd8] sm:$0xff] %vm380, %v368
      %409 = vst.msk [vmem:[%s179 + $0xe0] sm:$0xff] %vm380, %v371
      %410 = vst.msk [vmem:[%s179 + $0xe8] sm:$0xff] %vm380, %v373
      %411 = vst.msk [vmem:[%s179 + $0xf0] sm:$0xff] %vm380, %v376
      %412 = vst.msk [vmem:[%s179 + $0xf8] sm:$0xff] %vm380, %v378
      %v413 = vsel %vm380, %v301, 0.0
      %v414 = vsel %vm380, %v303, 0.0
      %v415 = vadd.f32 %v413, %v414
      %v416 = vsel %vm380, %v306, 0.0
      %v417 = vadd.f32 %v415, %v416
      %v418 = vsel %vm380, %v308, 0.0
      %v419 = vadd.f32 %v417, %v418
      %v420 = vsel %vm380, %v311, 0.0
      %v421 = vadd.f32 %v419, %v420
      %v422 = vsel %vm380, %v313, 0.0
      %v423 = vadd.f32 %v421, %v422
      %v424 = vsel %vm380, %v316, 0.0
      %v425 = vadd.f32 %v423, %v424
      %v426 = vsel %vm380, %v318, 0.0
      %v427 = vadd.f32 %v425, %v426
      %v428 = vsel %vm380, %v321, 0.0
      %v429 = vadd.f32 %v427, %v428
      %v430 = vsel %vm380, %v323, 0.0
      %v431 = vadd.f32 %v429, %v430
      %v432 = vsel %vm380, %v326, 0.0
      %v433 = vadd.f32 %v431, %v432
      %v434 = vsel %vm380, %v328, 0.0
      %v435 = vadd.f32 %v433, %v434
      %v436 = vsel %vm380, %v331, 0.0
      %v437 = vadd.f32 %v435, %v436
      %v438 = vsel %vm380, %v333, 0.0
      %v439 = vadd.f32 %v437, %v438
      %v440 = vsel %vm380, %v336, 0.0
      %v441 = vadd.f32 %v439, %v440
      %v442 = vsel %vm380, %v338, 0.0
      %v443 = vadd.f32 %v441, %v442
      %v444 = vsel %vm380, %v341, 0.0
      %v445 = vadd.f32 %v443, %v444
      %v446 = vsel %vm380, %v343, 0.0
      %v447 = vadd.f32 %v445, %v446
      %v448 = vsel %vm380, %v346, 0.0
      %v449 = vadd.f32 %v447, %v448
      %v450 = vsel %vm380, %v348, 0.0
      %v451 = vadd.f32 %v449, %v450
      %v452 = vsel %vm380, %v351, 0.0
      %v453 = vadd.f32 %v451, %v452
      %v454 = vsel %vm380, %v353, 0.0
      %v455 = vadd.f32 %v453, %v454
      %v456 = vsel %vm380, %v356, 0.0
      %v457 = vadd.f32 %v455, %v456
      %v458 = vsel %vm380, %v358, 0.0
      %v459 = vadd.f32 %v457, %v458
      %v460 = vsel %vm380, %v361, 0.0
      %v461 = vadd.f32 %v459, %v460
      %v462 = vsel %vm380, %v363, 0.0
      %v463 = vadd.f32 %v461, %v462
      %v464 = vsel %vm380, %v366, 0.0
      %v465 = vadd.f32 %v463, %v464
      %v466 = vsel %vm380, %v368, 0.0
      %v467 = vadd.f32 %v465, %v466
      %v468 = vsel %vm380, %v371, 0.0
      %v469 = vadd.f32 %v467, %v468
      %v470 = vsel %vm380, %v373, 0.0
      %v471 = vadd.f32 %v469, %v470
      %v472 = vsel %vm380, %v376, 0.0
      %v473 = vadd.f32 %v471, %v472
      %v474 = vsel %vm380, %v378, 0.0
      %v475 = vadd.f32 %v473, %v474
      %v476 = vrot.slane %v475, 4
      %v477 = vadd.f32 %v475, %v476
      %v478 = vrot.slane %v477, 2
      %v479 = vadd.f32 %v477, %v478
      %v480 = vrot.slane %v479, 1
      %v481 = vadd.f32 %v479, %v480
      %v482 = vmul.f32 %v301, %v301
      %v483 = vmul.f32 %v303, %v303
      %v484 = vmul.f32 %v306, %v306
      %v485 = vmul.f32 %v308, %v308
      %v486 = vmul.f32 %v311, %v311
      %v487 = vmul.f32 %v313, %v313
      %v488 = vmul.f32 %v316, %v316
      %v489 = vmul.f32 %v318, %v318
      %v490 = vmul.f32 %v321, %v321
      %v491 = vmul.f32 %v323, %v323
      %v492 = vmul.f32 %v326, %v326
      %v493 = vmul.f32 %v328, %v328
      %v494 = vmul.f32 %v331, %v331
      %v495 = vmul.f32 %v333, %v333
      %v496 = vmul.f32 %v336, %v336
      %v497 = vmul.f32 %v338, %v338
      %v498 = vmul.f32 %v341, %v341
      %v499 = vmul.f32 %v343, %v343
      %v500 = vmul.f32 %v346, %v346
      %v501 = vmul.f32 %v348, %v348
      %v502 = vmul.f32 %v351, %v351
      %v503 = vmul.f32 %v353, %v353
      %v504 = vmul.f32 %v356, %v356
      %v505 = vmul.f32 %v358, %v358
      %v506 = vmul.f32 %v361, %v361
      %v507 = vmul.f32 %v363, %v363
      %v508 = vmul.f32 %v366, %v366
      %v509 = vmul.f32 %v368, %v368
      %v510 = vmul.f32 %v371, %v371
      %v511 = vmul.f32 %v373, %v373
      %v512 = vmul.f32 %v376, %v376
      %v513 = vmul.f32 %v378, %v378
      %v514 = vsel %vm380, %v482, 0.0
      %v515 = vsel %vm380, %v483, 0.0
      %v516 = vadd.f32 %v514, %v515
      %v517 = vsel %vm380, %v484, 0.0
      %v518 = vadd.f32 %v516, %v517
      %v519 = vsel %vm380, %v485, 0.0
      %v520 = vadd.f32 %v518, %v519
      %v521 = vsel %vm380, %v486, 0.0
      %v522 = vadd.f32 %v520, %v521
      %v523 = vsel %vm380, %v487, 0.0
      %v524 = vadd.f32 %v522, %v523
      %v525 = vsel %vm380, %v488, 0.0
      %v526 = vadd.f32 %v524, %v525
      %v527 = vsel %vm380, %v489, 0.0
      %v528 = vadd.f32 %v526, %v527
      %v529 = vsel %vm380, %v490, 0.0
      %v530 = vadd.f32 %v528, %v529
      %v531 = vsel %vm380, %v491, 0.0
      %v532 = vadd.f32 %v530, %v531
      %v533 = vsel %vm380, %v492, 0.0
      %v534 = vadd.f32 %v532, %v533
      %v535 = vsel %vm380, %v493, 0.0
      %v536 = vadd.f32 %v534, %v535
      %v537 = vsel %vm380, %v494, 0.0
      %v538 = vadd.f32 %v536, %v537
      %v539 = vsel %vm380, %v495, 0.0
      %v540 = vadd.f32 %v538, %v539
      %v541 = vsel %vm380, %v496, 0.0
      %v542 = vadd.f32 %v540, %v541
      %v543 = vsel %vm380, %v497, 0.0
      %v544 = vadd.f32 %v542, %v543
      %v545 = vsel %vm380, %v498, 0.0
      %v546 = vadd.f32 %v544, %v545
      %v547 = vsel %vm380, %v499, 0.0
      %v548 = vadd.f32 %v546, %v547
      %v549 = vsel %vm380, %v500, 0.0
      %v550 = vadd.f32 %v548, %v549
      %v551 = vsel %vm380, %v501, 0.0
      %v552 = vadd.f32 %v550, %v551
      %v553 = vsel %vm380, %v502, 0.0
      %v554 = vadd.f32 %v552, %v553
      %v555 = vsel %vm380, %v503, 0.0
      %v556 = vadd.f32 %v554, %v555
      %v557 = vsel %vm380, %v504, 0.0
      %v558 = vadd.f32 %v556, %v557
      %v559 = vsel %vm380, %v505, 0.0
      %v560 = vadd.f32 %v558, %v559
      %v561 = vsel %vm380, %v506, 0.0
      %v562 = vadd.f32 %v560, %v561
      %v563 = vsel %vm380, %v507, 0.0
      %v564 = vadd.f32 %v562, %v563
      %v565 = vsel %vm380, %v508, 0.0
      %v566 = vadd.f32 %v564, %v565
      %v567 = vsel %vm380, %v509, 0.0
      %v568 = vadd.f32 %v566, %v567
      %v569 = vsel %vm380, %v510, 0.0
      %v570 = vadd.f32 %v568, %v569
      %v571 = vsel %vm380, %v511, 0.0
      %v572 = vadd.f32 %v570, %v571
      %v573 = vsel %vm380, %v512, 0.0
      %v574 = vadd.f32 %v572, %v573
      %v575 = vsel %vm380, %v513, 0.0
      %v576 = vadd.f32 %v574, %v575
      %v577 = vrot.slane %v576, 4
      %v578 = vadd.f32 %v576, %v577
      %v579 = vrot.slane %v578, 2
      %v580 = vadd.f32 %v578, %v579
      %v581 = vrot.slane %v580, 1
      %v582 = vadd.f32 %v580, %v581
      %vm583 = vcmask 1040384
      %v584 = vsel %vm583, %v481, %v582
      %vm585 = vcmask 25600
      %586 = vst.msk [vmem:[%s184] sm:$0x3] %vm585, %v584
      %s587 = smul.u32 32, %s15
      %p588 = scmp.lt.s32.totalorder %s587, 63
      %s589 = scalar_select %p588, %s587, 63
      %s590 = smul.addr %s589, 8
      %s591 = scalar_lea.vmem %s2, %s590
      %p592 = scmp.lt.s32.totalorder %s15, 1
      %s593 = scalar_select %p592, %s15, 1
      %s594 = smul.addr %s593, 2
      %s595 = scalar_lea.vmem %s3, %s594
      // Predicated region
      $region29: #{bottleneck_forward.4} parent=27 // pred_check
        %p596 = pneg %p80
      $region30: #{bottleneck_forward.4} parent=27 // pred_check_branch
        %598 = sbr.rel (%p596) target = $region32
      $region31: #{bottleneck_forward.4} parent=27 // pred_region
        %s599 = smul.u32 32, %s15
      $region32: #{bottleneck_forward.4} parent=27 // pred_fallthru
        _
      // Predicated region
      $region33: #{bottleneck_forward.4} parent=27 // pred_check
        %p600 = pneg %p106
      $region34: #{bottleneck_forward.4} parent=27 // pred_check_branch
        %602 = sbr.rel (%p600) target = $region36
      $region35: #{bottleneck_forward.4} parent=27 // pred_region
        _
      $region36: #{bottleneck_forward.4} parent=27 // pred_fallthru
        _
    $region28: #{bottleneck_forward.4} parent=5 // pred_fallthru
      _
    %p603 = scmp.le.s32.totalorder 2, %s10
    // Predicated region
    $region37: #{bottleneck_forward.4} parent=5 // pred_check
      %p604 = pneg %p603
    $region38: #{bottleneck_forward.4} parent=5 // pred_check_branch
      %606 = sbr.rel (%p604) target = $region40
    $region39: #{bottleneck_forward.4} parent=5 // pred_region
      %s607 = ssub.s32 %s10, 2
      // Predicated region
      $region41: #{bottleneck_forward.4} parent=39 // pred_check
        %p608 = pneg %p86
      $region42: #{bottleneck_forward.4} parent=39 // pred_check_branch
        %610 = sbr.rel (%p608) target = $region44
      $region43: #{bottleneck_forward.4} parent=39 // pred_region
        %s611 = smul.u32 32, %s16
        %p612 = scmp.lt.s32.totalorder %s611, 63
        %s613 = scalar_select %p612, %s611, 63
        %s614 = smul.addr %s613, 8
        %s615 = scalar_lea.vmem %s2, %s614
      $region44: #{bottleneck_forward.4} parent=39 // pred_fallthru
        _
      // Predicated region
      $region45: #{bottleneck_forward.4} parent=39 // pred_check
        %p616 = pneg %p112
      $region46: #{bottleneck_forward.4} parent=39 // pred_check_branch
        %618 = sbr.rel (%p616) target = $region48
      $region47: #{bottleneck_forward.4} parent=39 // pred_region
        %p619 = scmp.lt.s32.totalorder %s16, 1
        %s620 = scalar_select %p619, %s16, 1
        %s621 = smul.addr %s620, 2
        %s622 = scalar_lea.vmem %s3, %s621
      $region48: #{bottleneck_forward.4} parent=39 // pred_fallthru
        _
    $region40: #{bottleneck_forward.4} parent=5 // pred_fallthru
      _
  $region6: #{bottleneck_forward.4} parent=0 // loop_footer
    %s14 = sadd.s32 1, %s10
  $region7: #{bottleneck_forward.4} parent=0 // loop_footer_branch
    %9 = sbr.rel target = $region3
  $region8: #{bottleneck_forward.4} parent=0 // loop_exit
    _

// kernel: bottleneck_forward.6
$region0: #{bottleneck_forward.6}
  #allocation0 [shape = 'u32[]', space=smem, size = 0x4, offset = 0x4, fixed_abs, tag = 'smem constant byte address 0x4 - core index']
  #allocation1 [shape = 'u32[72,128]{1,0:T(1,128)}', space=vmem, size = 0x9000, scoped, tag = 'internal scratch']
  %s0 = inlined_call_operand.vmem [shape: f32[512,4], index: 0, kind: input, shape index: {}]
  %s1 = inlined_call_operand.vmem [shape: f32[1,4], index: 1, kind: input, shape index: {}]
  %s2 = inlined_call_operand.vmem [shape: f32[1,4], index: 2, kind: input, shape index: {}]
  %s3 = inlined_call_operand.vmem [shape: bf16[4,16], index: 3, kind: input, shape index: {}]
  %s4 = inlined_call_operand.vmem [shape: f32[512,16], index: 4, kind: output, shape index: {0}]
  %s5 = inlined_call_operand.vmem [shape: f32[2,2,16], index: 5, kind: output, shape index: {1}]
  %6 = xla_tuple %s4, %s5
  %s7 = sld [smem:[#allocation0]]
  $region57: #{bottleneck_forward.6} parent=0
    _
  %s9 = ssub.s32 1, %s7
  %s10 = scalar_select 0, %s9, %s7
  loop: start=0, step=1, limit=4
  $region2: #{bottleneck_forward.6} parent=0 // loop_pre_header
    _
  $region3: #{bottleneck_forward.6} parent=0 // loop_header
    %s12 = sphi 0, %s16
    %p13 = scmp.ge.s32.totalorder %s12, 4
    %s22 = sphi 0, %s24
    %s25 = sphi 0, %s22
    %s26 = sphi 0, %s25
    %s42 = sphi 0, %s26
    %s46 = sphi 0, %s46
    %s48 = sphi 0, %s46
    %s49 = sphi 0, %s48
    %s63 = sphi 0, %s49
    %s67 = sphi 0, %s67
    %s69 = sphi 0, %s67
    %s70 = sphi 0, %s69
    %s84 = sphi 0, %s70
    %s88 = sphi 0, %s88
    %s90 = sphi 0, %s88
    %s91 = sphi 0, %s90
    %s105 = sphi 0, %s91
    %s111 = sphi 0, %s113
    %s114 = sphi 0, %s111
    %s115 = sphi 0, %s114
    %s131 = sphi 0, %s115
    %s137 = sphi 0, %s139
    %s140 = sphi 0, %s137
    %s141 = sphi 0, %s140
    %s157 = sphi 0, %s141
  $region4: #{bottleneck_forward.6} parent=0 // loop_header_branch
    %15 = sbr.rel (%p13) target = $region8
  $region5: #{bottleneck_forward.6} parent=0 // loop_body
    %s17 = ssub.s32 %s12, 1
    %s18 = ssub.s32 %s12, 2
    %s19 = sadd.s32 %s12, 1
    %s20 = ssub.s32 %s12, %s19
    %p21 = scmp.eq.s32.totalorder %s20, 0
    %s23 = sadd.s32 %s22, 1
    %s24 = scalar_select %p21, %s22, %s23
    %p27 = pneg %p21
    %p28 = scmp.eq.s32.totalorder %s12, 1
    %p29 = por %p27, %p28
    %p30 = scmp.ne.s32.totalorder %s22, %s25
    %p31 = scmp.eq.s32.totalorder %s12, 0
    %p32 = por %p30, %p31
    %p33 = scmp.ne.s32.totalorder %s22, %s25
    %p34 = scmp.eq.s32.totalorder %s17, 1
    %p35 = por %p33, %p34
    %p36 = scmp.ne.s32.totalorder %s25, %s26
    %p37 = scmp.eq.s32.totalorder %s17, 0
    %p38 = por %p36, %p37
    %p39 = scmp.ne.s32.totalorder %s25, %s26
    %p40 = scmp.eq.s32.totalorder %s18, 1
    %p41 = por %p39, %p40
    %p43 = scmp.ne.s32.totalorder %s26, %s42
    %p44 = scmp.eq.s32.totalorder %s18, 0
    %p45 = por %p43, %p44
    %s47 = sadd.s32 %s46, 1
    %p50 = scmp.eq.s32.totalorder %s12, 1
    %p51 = scmp.ne.s32.totalorder %s46, %s48
    %p52 = scmp.eq.s32.totalorder %s12, 0
    %p53 = por %p51, %p52
    %p54 = scmp.ne.s32.totalorder %s46, %s48
    %p55 = scmp.eq.s32.totalorder %s17, 1
    %p56 = por %p54, %p55
    %p57 = scmp.ne.s32.totalorder %s48, %s49
    %p58 = scmp.eq.s32.totalorder %s17, 0
    %p59 = por %p57, %p58
    %p60 = scmp.ne.s32.totalorder %s48, %s49
    %p61 = scmp.eq.s32.totalorder %s18, 1
    %p62 = por %p60, %p61
    %p64 = scmp.ne.s32.totalorder %s49, %s63
    %p65 = scmp.eq.s32.totalorder %s18, 0
    %p66 = por %p64, %p65
    %s68 = sadd.s32 %s67, 1
    %p71 = scmp.eq.s32.totalorder %s12, 1
    %p72 = scmp.ne.s32.totalorder %s67, %s69
    %p73 = scmp.eq.s32.totalorder %s12, 0
    %p74 = por %p72, %p73
    %p75 = scmp.ne.s32.totalorder %s67, %s69
    %p76 = scmp.eq.s32.totalorder %s17, 1
    %p77 = por %p75, %p76
    %p78 = scmp.ne.s32.totalorder %s69, %s70
    %p79 = scmp.eq.s32.totalorder %s17, 0
    %p80 = por %p78, %p79
    %p81 = scmp.ne.s32.totalorder %s69, %s70
    %p82 = scmp.eq.s32.totalorder %s18, 1
    %p83 = por %p81, %p82
    %p85 = scmp.ne.s32.totalorder %s70, %s84
    %p86 = scmp.eq.s32.totalorder %s18, 0
    %p87 = por %p85, %p86
    %s89 = sadd.s32 %s88, 1
    %p92 = scmp.eq.s32.totalorder %s12, 1
    %p93 = scmp.ne.s32.totalorder %s88, %s90
    %p94 = scmp.eq.s32.totalorder %s12, 0
    %p95 = por %p93, %p94
    %p96 = scmp.ne.s32.totalorder %s88, %s90
    %p97 = scmp.eq.s32.totalorder %s17, 1
    %p98 = por %p96, %p97
    %p99 = scmp.ne.s32.totalorder %s90, %s91
    %p100 = scmp.eq.s32.totalorder %s17, 0
    %p101 = por %p99, %p100
    %p102 = scmp.ne.s32.totalorder %s90, %s91
    %p103 = scmp.eq.s32.totalorder %s18, 1
    %p104 = por %p102, %p103
    %p106 = scmp.ne.s32.totalorder %s91, %s105
    %p107 = scmp.eq.s32.totalorder %s18, 0
    %p108 = por %p106, %p107
    %s109 = ssub.s32 %s12, %s19
    %p110 = scmp.eq.s32.totalorder %s109, 0
    %s112 = sadd.s32 %s111, 1
    %s113 = scalar_select %p110, %s111, %s112
    %p116 = pneg %p110
    %p117 = scmp.eq.s32.totalorder %s12, 1
    %p118 = por %p116, %p117
    %p119 = scmp.ne.s32.totalorder %s111, %s114
    %p120 = scmp.eq.s32.totalorder %s12, 0
    %p121 = por %p119, %p120
    %p122 = scmp.ne.s32.totalorder %s111, %s114
    %p123 = scmp.eq.s32.totalorder %s17, 1
    %p124 = por %p122, %p123
    %p125 = scmp.ne.s32.totalorder %s114, %s115
    %p126 = scmp.eq.s32.totalorder %s17, 0
    %p127 = por %p125, %p126
    %p128 = scmp.ne.s32.totalorder %s114, %s115
    %p129 = scmp.eq.s32.totalorder %s18, 1
    %p130 = por %p128, %p129
    %p132 = scmp.ne.s32.totalorder %s115, %s131
    %p133 = scmp.eq.s32.totalorder %s18, 0
    %p134 = por %p132, %p133
    %s135 = ssub.s32 %s12, %s19
    %p136 = scmp.eq.s32.totalorder %s135, 0
    %s138 = sadd.s32 %s137, 1
    %s139 = scalar_select %p136, %s137, %s138
    %p142 = pneg %p136
    %p143 = scmp.eq.s32.totalorder %s12, 1
    %p144 = por %p142, %p143
    %p145 = scmp.ne.s32.totalorder %s137, %s140
    %p146 = scmp.eq.s32.totalorder %s12, 0
    %p147 = por %p145, %p146
    %p148 = scmp.ne.s32.totalorder %s137, %s140
    %p149 = scmp.eq.s32.totalorder %s17, 1
    %p150 = por %p148, %p149
    %p151 = scmp.ne.s32.totalorder %s140, %s141
    %p152 = scmp.eq.s32.totalorder %s17, 0
    %p153 = por %p151, %p152
    %p154 = scmp.ne.s32.totalorder %s140, %s141
    %p155 = scmp.eq.s32.totalorder %s18, 1
    %p156 = por %p154, %p155
    %p158 = scmp.ne.s32.totalorder %s141, %s157
    %p159 = scmp.eq.s32.totalorder %s18, 0
    %p160 = por %p158, %p159
    %p161 = scmp.le.s32.totalorder 1, %s12
    %p162 = scmp.lt.s32.totalorder %s12, 3
    %p163 = pnand %p161, %p162
    %p164 = pneg %p163
    // Predicated region
    $region9: #{bottleneck_forward.6} parent=5 // pred_check
      _
    $region10: #{bottleneck_forward.6} parent=5 // pred_check_branch
      %166 = sbr.rel (%p163) target = $region12
    $region11: #{bottleneck_forward.6} parent=5 // pred_region
      %s167 = ssub.s32 %s12, 1
      // Predicated region
      $region13: #{bottleneck_forward.6} parent=11 // pred_check
        %p168 = pneg %p59
      $region14: #{bottleneck_forward.6} parent=11 // pred_check_branch
        %170 = sbr.rel (%p168) target = $region16
      $region15: #{bottleneck_forward.6} parent=11 // pred_region
        _
      $region16: #{bottleneck_forward.6} parent=11 // pred_fallthru
        _
      // Predicated region
      $region17: #{bottleneck_forward.6} parent=11 // pred_check
        %p171 = pneg %p80
      $region18: #{bottleneck_forward.6} parent=11 // pred_check_branch
        %173 = sbr.rel (%p171) target = $region20
      $region19: #{bottleneck_forward.6} parent=11 // pred_region
        _
      $region20: #{bottleneck_forward.6} parent=11 // pred_fallthru
        _
      // Predicated region
      $region21: #{bottleneck_forward.6} parent=11 // pred_check
        %p174 = pneg %p101
      $region22: #{bottleneck_forward.6} parent=11 // pred_check_branch
        %176 = sbr.rel (%p174) target = $region24
      $region23: #{bottleneck_forward.6} parent=11 // pred_region
        _
      $region24: #{bottleneck_forward.6} parent=11 // pred_fallthru
        _
    $region12: #{bottleneck_forward.6} parent=5 // pred_fallthru
      _
    %p177 = scmp.lt.s32.totalorder %s12, 2
    // Predicated region
    $region25: #{bottleneck_forward.6} parent=5 // pred_check
      %p178 = pneg %p177
    $region26: #{bottleneck_forward.6} parent=5 // pred_check_branch
      %180 = sbr.rel (%p178) target = $region28
    $region27: #{bottleneck_forward.6} parent=5 // pred_region
      // Predicated region
      $region29: #{bottleneck_forward.6} parent=27 // pred_check
        %p181 = pneg %p32
      $region30: #{bottleneck_forward.6} parent=27 // pred_check_branch
        %183 = sbr.rel (%p181) target = $region32
      $region31: #{bottleneck_forward.6} parent=27 // pred_region
        %s184 = smul.u32 32, %s12
        %p185 = scmp.lt.s32.totalorder %s184, 63
        %s186 = scalar_select %p185, %s184, 63
        %s187 = smul.addr %s186, 8
        %s188 = scalar_lea.vmem %s0, %s187
        %s189 = smul.u32 32, %s12
      $region32: #{bottleneck_forward.6} parent=27 // pred_fallthru
        _
    $region28: #{bottleneck_forward.6} parent=5 // pred_fallthru
      _
    %p190 = scmp.le.s32.totalorder 1, %s12
    %p191 = scmp.lt.s32.totalorder %s12, 3
    %p192 = pnand %p190, %p191
    %p193 = pneg %p192
    // Predicated region
    $region33: #{bottleneck_forward.6} parent=5 // pred_check
      _
    $region34: #{bottleneck_forward.6} parent=5 // pred_check_branch
      %195 = sbr.rel (%p192) target = $region36
    $region35: #{bottleneck_forward.6} parent=5 // pred_region
      %s196 = ssub.s32 %s12, 1
      %s197 = smul.u32 32, %s17
      %p198 = scmp.lt.s32.totalorder %s197, 63
      %s199 = scalar_select %p198, %s197, 63
      %s200 = smul.addr %s199, 8
      %s201 = scalar_lea.vmem %s0, %s200
      %p202 = pneg %p38
      %p203 = pneg %p35
      %p204 = pneg %p59
      %p205 = pneg %p56
      %p206 = pneg %p80
      %p207 = pneg %p77
      %p208 = pneg %p101
      %p209 = pneg %p98
      %p210 = pneg %p127
      %p211 = pneg %p124
      %s212 = smul.u32 32, %s17
      %p213 = scmp.lt.s32.totalorder %s212, 63
      %s214 = scalar_select %p213, %s212, 63
      %s215 = smul.addr %s214, 8
      %s216 = scalar_lea.vmem %s4, %s215
      %p217 = pneg %p153
      %p218 = pneg %p150
      %p219 = scmp.lt.s32.totalorder %s17, 1
      %s220 = scalar_select %p219, %s17, 1
      %s221 = smul.addr %s220, 2
      %s222 = scalar_lea.vmem %s5, %s221
      %s223 = smul.u32 32, %s17
      %p224 = scmp.lt.s32.totalorder %s223, 63
      %s225 = scalar_select %p224, %s223, 63
      %s226 = smul.addr %s225, 8
      %s227 = scalar_lea.vmem %s0, %s226
      %s228 = smul.u32 32, %s17
      %s229 = smul.u32 32, %s17
      %p230 = scmp.lt.s32.totalorder %s229, 63
      %s231 = scalar_select %p230, %s229, 63
      %s232 = smul.addr %s231, 8
      %s233 = scalar_lea.vmem %s4, %s232
      %s234 = smul.u32 32, %s17
      %p235 = scmp.lt.s32.totalorder %s17, 1
      %s236 = scalar_select %p235, %s17, 1
      %s237 = smul.addr %s236, 2
      %s238 = scalar_lea.vmem %s5, %s237
      %v240 = vld [vmem:[%s227] sm:$0xff]
      %v241 = vld [vmem:[%s227 + $0x8] sm:$0xff]
      %v242 = vld [vmem:[%s227 + $0x10] sm:$0xff]
      %v243 = vld [vmem:[%s227 + $0x18] sm:$0xff]
      %v244 = vld [vmem:[%s227 + $0x20] sm:$0xff]
      %v245 = vld [vmem:[%s227 + $0x28] sm:$0xff]
      %v246 = vld [vmem:[%s227 + $0x30] sm:$0xff]
      %v247 = vld [vmem:[%s227 + $0x38] sm:$0xff]
      %v248 = vld [vmem:[%s227 + $0x40] sm:$0xff]
      %v249 = vld [vmem:[%s227 + $0x48] sm:$0xff]
      %v250 = vld [vmem:[%s227 + $0x50] sm:$0xff]
      %v251 = vld [vmem:[%s227 + $0x58] sm:$0xff]
      %v252 = vld [vmem:[%s227 + $0x60] sm:$0xff]
      %v253 = vld [vmem:[%s227 + $0x68] sm:$0xff]
      %v254 = vld [vmem:[%s227 + $0x70] sm:$0xff]
      %v255 = vld [vmem:[%s227 + $0x78] sm:$0xff]
      %v256 = vld [vmem:[%s227 + $0x80] sm:$0xff]
      %v257 = vld [vmem:[%s227 + $0x88] sm:$0xff]
      %v258 = vld [vmem:[%s227 + $0x90] sm:$0xff]
      %v259 = vld [vmem:[%s227 + $0x98] sm:$0xff]
      %v260 = vld [vmem:[%s227 + $0xa0] sm:$0xff]
      %v261 = vld [vmem:[%s227 + $0xa8] sm:$0xff]
      %v262 = vld [vmem:[%s227 + $0xb0] sm:$0xff]
      %v263 = vld [vmem:[%s227 + $0xb8] sm:$0xff]
      %v264 = vld [vmem:[%s227 + $0xc0] sm:$0xff]
      %v265 = vld [vmem:[%s227 + $0xc8] sm:$0xff]
      %v266 = vld [vmem:[%s227 + $0xd0] sm:$0xff]
      %v267 = vld [vmem:[%s227 + $0xd8] sm:$0xff]
      %v268 = vld [vmem:[%s227 + $0xe0] sm:$0xff]
      %v269 = vld [vmem:[%s227 + $0xe8] sm:$0xff]
      %v270 = vld [vmem:[%s227 + $0xf0] sm:$0xff]
      %v271 = vld [vmem:[%s227 + $0xf8] sm:$0xff]
      %v272 = vld [vmem:[%s1] sm:$0x1]
      %v274 = vperm.slane %v272, 0
      %v276 = vmul.f32 %v240, %v274
      %v277 = vmul.f32 %v241, %v274
      %v278 = vmul.f32 %v242, %v274
      %v279 = vmul.f32 %v243, %v274
      %v280 = vmul.f32 %v244, %v274
      %v281 = vmul.f32 %v245, %v274
      %v282 = vmul.f32 %v246, %v274
      %v283 = vmul.f32 %v247, %v274
      %v284 = vmul.f32 %v248, %v274
      %v285 = vmul.f32 %v249, %v274
      %v286 = vmul.f32 %v250, %v274
      %v287 = vmul.f32 %v251, %v274
      %v288 = vmul.f32 %v252, %v274
      %v289 = vmul.f32 %v253, %v274
      %v290 = vmul.f32 %v254, %v274
      %v291 = vmul.f32 %v255, %v274
      %v292 = vmul.f32 %v256, %v274
      %v293 = vmul.f32 %v257, %v274
      %v294 = vmul.f32 %v258, %v274
      %v295 = vmul.f32 %v259, %v274
      %v296 = vmul.f32 %v260, %v274
      %v297 = vmul.f32 %v261, %v274
      %v298 = vmul.f32 %v262, %v274
      %v299 = vmul.f32 %v263, %v274
      %v300 = vmul.f32 %v264, %v274
      %v301 = vmul.f32 %v265, %v274
      %v302 = vmul.f32 %v266, %v274
      %v303 = vmul.f32 %v267, %v274
      %v304 = vmul.f32 %v268, %v274
      %v305 = vmul.f32 %v269, %v274
      %v306 = vmul.f32 %v270, %v274
      %v307 = vmul.f32 %v271, %v274
      %v308 = vld [vmem:[%s2] sm:$0x1]
      %v310 = vperm.slane %v308, 0
      %v312 = vadd.f32 %v276, %v310
      %v313 = vadd.f32 %v277, %v310
      %v314 = vadd.f32 %v278, %v310
      %v315 = vadd.f32 %v279, %v310
      %v316 = vadd.f32 %v280, %v310
      %v317 = vadd.f32 %v281, %v310
      %v318 = vadd.f32 %v282, %v310
      %v319 = vadd.f32 %v283, %v310
      %v320 = vadd.f32 %v284, %v310
      %v321 = vadd.f32 %v285, %v310
      %v322 = vadd.f32 %v286, %v310
      %v323 = vadd.f32 %v287, %v310
      %v324 = vadd.f32 %v288, %v310
      %v325 = vadd.f32 %v289, %v310
      %v326 = vadd.f32 %v290, %v310
      %v327 = vadd.f32 %v291, %v310
      %v328 = vadd.f32 %v292, %v310
      %v329 = vadd.f32 %v293, %v310
      %v330 = vadd.f32 %v294, %v310
      %v331 = vadd.f32 %v295, %v310
      %v332 = vadd.f32 %v296, %v310
      %v333 = vadd.f32 %v297, %v310
      %v334 = vadd.f32 %v298, %v310
      %v335 = vadd.f32 %v299, %v310
      %v336 = vadd.f32 %v300, %v310
      %v337 = vadd.f32 %v301, %v310
      %v338 = vadd.f32 %v302, %v310
      %v339 = vadd.f32 %v303, %v310
      %v340 = vadd.f32 %v304, %v310
      %v341 = vadd.f32 %v305, %v310
      %v342 = vadd.f32 %v306, %v310
      %v343 = vadd.f32 %v307, %v310
      %v344 = vmax.f32 %v312, 0.0
      %v345 = vmax.f32 %v313, 0.0
      %v346 = vmax.f32 %v314, 0.0
      %v347 = vmax.f32 %v315, 0.0
      %v348 = vmax.f32 %v316, 0.0
      %v349 = vmax.f32 %v317, 0.0
      %v350 = vmax.f32 %v318, 0.0
      %v351 = vmax.f32 %v319, 0.0
      %v352 = vmax.f32 %v320, 0.0
      %v353 = vmax.f32 %v321, 0.0
      %v354 = vmax.f32 %v322, 0.0
      %v355 = vmax.f32 %v323, 0.0
      %v356 = vmax.f32 %v324, 0.0
      %v357 = vmax.f32 %v325, 0.0
      %v358 = vmax.f32 %v326, 0.0
      %v359 = vmax.f32 %v327, 0.0
      %v360 = vmax.f32 %v328, 0.0
      %v361 = vmax.f32 %v329, 0.0
      %v362 = vmax.f32 %v330, 0.0
      %v363 = vmax.f32 %v331, 0.0
      %v364 = vmax.f32 %v332, 0.0
      %v365 = vmax.f32 %v333, 0.0
      %v366 = vmax.f32 %v334, 0.0
      %v367 = vmax.f32 %v335, 0.0
      %v368 = vmax.f32 %v336, 0.0
      %v369 = vmax.f32 %v337, 0.0
      %v370 = vmax.f32 %v338, 0.0
      %v371 = vmax.f32 %v339, 0.0
      %v372 = vmax.f32 %v340, 0.0
      %v373 = vmax.f32 %v341, 0.0
      %v374 = vmax.f32 %v342, 0.0
      %v375 = vmax.f32 %v343, 0.0
      %v376 = vpack.c.bf16 %v345, %v344
      %v377 = vpack.c.bf16 %v347, %v346
      %v378 = vpack.c.bf16 %v349, %v348
      %v379 = vpack.c.bf16 %v351, %v350
      %v380 = vpack.c.bf16 %v353, %v352
      %v381 = vpack.c.bf16 %v355, %v354
      %v382 = vpack.c.bf16 %v357, %v356
      %v383 = vpack.c.bf16 %v359, %v358
      %v384 = vpack.c.bf16 %v361, %v360
      %v385 = vpack.c.bf16 %v363, %v362
      %v386 = vpack.c.bf16 %v365, %v364
      %v387 = vpack.c.bf16 %v367, %v366
      %v388 = vpack.c.bf16 %v369, %v368
      %v389 = vpack.c.bf16 %v371, %v370
      %v390 = vpack.c.bf16 %v373, %v372
      %v391 = vpack.c.bf16 %v375, %v374
      %v392 = vld [vmem:[%s3] sm:$0x3]
      %vm393 = vcmask 31744
      %v395 = vsel %vm393, %v376, 0
      %v398 = vsel %vm393, %v377, 0
      %v401 = vsel %vm393, %v378, 0
      %v404 = vsel %vm393, %v379, 0
      %v407 = vsel %vm393, %v380, 0
      %v410 = vsel %vm393, %v381, 0
      %v413 = vsel %vm393, %v382, 0
      %v416 = vsel %vm393, %v383, 0
      %v419 = vsel %vm393, %v384, 0
      %v422 = vsel %vm393, %v385, 0
      %v425 = vsel %vm393, %v386, 0
      %v428 = vsel %vm393, %v387, 0
      %v431 = vsel %vm393, %v388, 0
      %v434 = vsel %vm393, %v389, 0
      %v437 = vsel %vm393, %v390, 0
      %v440 = vsel %vm393, %v391, 0
      %vm442 = vcmask 1041408
      %v444 = vsel %vm442, %v392, 0
      %446 = vmatpush.bf16.msra.mxu0 0
      %447 = vmatpush.bf16.msra.mxu0 0
      %448 = vmatpush.bf16.msra.mxu0 0
      %449 = vmatpush.bf16.msra.mxu0 0
      %450 = vmatpush.bf16.msra.mxu0 0
      %451 = vmatpush.bf16.msra.mxu0 0
      %452 = vmatpush.bf16.msra.mxu0 0
      %453 = vmatpush.bf16.msra.mxu0 %v444
      %454 = vmatmul.bf16.gmra.mxu0 %v395
      %v455 = vpop.f32.mrf.mxu0
      %v456 = vadd.f32 0.0, %v455
      %v457 = vpop.f32.mrf.mxu0
      %v458 = vadd.f32 0.0, %v457
      %459 = vmatmul.bf16.gmra.mxu0 %v398
      %v460 = vpop.f32.mrf.mxu0
      %v461 = vadd.f32 0.0, %v460
      %v462 = vpop.f32.mrf.mxu0
      %v463 = vadd.f32 0.0, %v462
      %464 = vmatmul.bf16.gmra.mxu0 %v401
      %v465 = vpop.f32.mrf.mxu0
      %v466 = vadd.f32 0.0, %v465
      %v467 = vpop.f32.mrf.mxu0
      %v468 = vadd.f32 0.0, %v467
      %469 = vmatmul.bf16.gmra.mxu0 %v404
      %v470 = vpop.f32.mrf.mxu0
      %v471 = vadd.f32 0.0, %v470
      %v472 = vpop.f32.mrf.mxu0
      %v473 = vadd.f32 0.0, %v472
      %474 = vmatmul.bf16.gmra.mxu0 %v407
      %v475 = vpop.f32.mrf.mxu0
      %v476 = vadd.f32 0.0, %v475
      %v477 = vpop.f32.mrf.mxu0
      %v478 = vadd.f32 0.0, %v477
      %479 = vmatmul.bf16.gmra.mxu0 %v410
      %v480 = vpop.f32.mrf.mxu0
      %v481 = vadd.f32 0.0, %v480
      %v482 = vpop.f32.mrf.mxu0
      %v483 = vadd.f32 0.0, %v482
      %484 = vmatmul.bf16.gmra.mxu0 %v413
      %v485 = vpop.f32.mrf.mxu0
      %v486 = vadd.f32 0.0, %v485
      %v487 = vpop.f32.mrf.mxu0
      %v488 = vadd.f32 0.0, %v487
      %489 = vmatmul.bf16.gmra.mxu0 %v416
      %v490 = vpop.f32.mrf.mxu0
      %v491 = vadd.f32 0.0, %v490
      %v492 = vpop.f32.mrf.mxu0
      %v493 = vadd.f32 0.0, %v492
      %494 = vmatmul.bf16.gmra.mxu0 %v419
      %v495 = vpop.f32.mrf.mxu0
      %v496 = vadd.f32 0.0, %v495
      %v497 = vpop.f32.mrf.mxu0
      %v498 = vadd.f32 0.0, %v497
      %499 = vmatmul.bf16.gmra.mxu0 %v422
      %v500 = vpop.f32.mrf.mxu0
      %v501 = vadd.f32 0.0, %v500
      %v502 = vpop.f32.mrf.mxu0
      %v503 = vadd.f32 0.0, %v502
      %504 = vmatmul.bf16.gmra.mxu0 %v425
      %v505 = vpop.f32.mrf.mxu0
      %v506 = vadd.f32 0.0, %v505
      %v507 = vpop.f32.mrf.mxu0
      %v508 = vadd.f32 0.0, %v507
      %509 = vmatmul.bf16.gmra.mxu0 %v428
      %v510 = vpop.f32.mrf.mxu0
      %v511 = vadd.f32 0.0, %v510
      %v512 = vpop.f32.mrf.mxu0
      %v513 = vadd.f32 0.0, %v512
      %514 = vmatmul.bf16.gmra.mxu0 %v431
      %v515 = vpop.f32.mrf.mxu0
      %v516 = vadd.f32 0.0, %v515
      %v517 = vpop.f32.mrf.mxu0
      %v518 = vadd.f32 0.0, %v517
      %519 = vmatmul.bf16.gmra.mxu0 %v434
      %v520 = vpop.f32.mrf.mxu0
      %v521 = vadd.f32 0.0, %v520
      %v522 = vpop.f32.mrf.mxu0
      %v523 = vadd.f32 0.0, %v522
      %524 = vmatmul.bf16.gmra.mxu0 %v437
      %v525 = vpop.f32.mrf.mxu0
      %v526 = vadd.f32 0.0, %v525
      %v527 = vpop.f32.mrf.mxu0
      %v528 = vadd.f32 0.0, %v527
      %529 = vmatmul.bf16.gmra.mxu0 %v440
      %v530 = vpop.f32.mrf.mxu0
      %v531 = vadd.f32 0.0, %v530
      %v532 = vpop.f32.mrf.mxu0
      %v533 = vadd.f32 0.0, %v532
      %534 = vdwg.mxu0
      %vm535 = vcmask 130048
      %536 = vst.msk [vmem:[%s233] sm:$0xff] %vm535, %v456
      %537 = vst.msk [vmem:[%s233 + $0x8] sm:$0xff] %vm535, %v458
      %538 = vst.msk [vmem:[%s233 + $0x10] sm:$0xff] %vm535, %v461
      %539 = vst.msk [vmem:[%s233 + $0x18] sm:$0xff] %vm535, %v463
      %540 = vst.msk [vmem:[%s233 + $0x20] sm:$0xff] %vm535, %v466
      %541 = vst.msk [vmem:[%s233 + $0x28] sm:$0xff] %vm535, %v468
      %542 = vst.msk [vmem:[%s233 + $0x30] sm:$0xff] %vm535, %v471
      %543 = vst.msk [vmem:[%s233 + $0x38] sm:$0xff] %vm535, %v473
      %544 = vst.msk [vmem:[%s233 + $0x40] sm:$0xff] %vm535, %v476
      %545 = vst.msk [vmem:[%s233 + $0x48] sm:$0xff] %vm535, %v478
      %546 = vst.msk [vmem:[%s233 + $0x50] sm:$0xff] %vm535, %v481
      %547 = vst.msk [vmem:[%s233 + $0x58] sm:$0xff] %vm535, %v483
      %548 = vst.msk [vmem:[%s233 + $0x60] sm:$0xff] %vm535, %v486
      %549 = vst.msk [vmem:[%s233 + $0x68] sm:$0xff] %vm535, %v488
      %550 = vst.msk [vmem:[%s233 + $0x70] sm:$0xff] %vm535, %v491
      %551 = vst.msk [vmem:[%s233 + $0x78] sm:$0xff] %vm535, %v493
      %552 = vst.msk [vmem:[%s233 + $0x80] sm:$0xff] %vm535, %v496
      %553 = vst.msk [vmem:[%s233 + $0x88] sm:$0xff] %vm535, %v498
      %554 = vst.msk [vmem:[%s233 + $0x90] sm:$0xff] %vm535, %v501
      %555 = vst.msk [vmem:[%s233 + $0x98] sm:$0xff] %vm535, %v503
      %556 = vst.msk [vmem:[%s233 + $0xa0] sm:$0xff] %vm535, %v506
      %557 = vst.msk [vmem:[%s233 + $0xa8] sm:$0xff] %vm535, %v508
      %558 = vst.msk [vmem:[%s233 + $0xb0] sm:$0xff] %vm535, %v511
      %559 = vst.msk [vmem:[%s233 + $0xb8] sm:$0xff] %vm535, %v513
      %560 = vst.msk [vmem:[%s233 + $0xc0] sm:$0xff] %vm535, %v516
      %561 = vst.msk [vmem:[%s233 + $0xc8] sm:$0xff] %vm535, %v518
      %562 = vst.msk [vmem:[%s233 + $0xd0] sm:$0xff] %vm535, %v521
      %563 = vst.msk [vmem:[%s233 + $0xd8] sm:$0xff] %vm535, %v523
      %564 = vst.msk [vmem:[%s233 + $0xe0] sm:$0xff] %vm535, %v526
      %565 = vst.msk [vmem:[%s233 + $0xe8] sm:$0xff] %vm535, %v528
      %566 = vst.msk [vmem:[%s233 + $0xf0] sm:$0xff] %vm535, %v531
      %567 = vst.msk [vmem:[%s233 + $0xf8] sm:$0xff] %vm535, %v533
      %v568 = vsel %vm535, %v456, 0.0
      %v569 = vsel %vm535, %v458, 0.0
      %v570 = vadd.f32 %v568, %v569
      %v571 = vsel %vm535, %v461, 0.0
      %v572 = vadd.f32 %v570, %v571
      %v573 = vsel %vm535, %v463, 0.0
      %v574 = vadd.f32 %v572, %v573
      %v575 = vsel %vm535, %v466, 0.0
      %v576 = vadd.f32 %v574, %v575
      %v577 = vsel %vm535, %v468, 0.0
      %v578 = vadd.f32 %v576, %v577
      %v579 = vsel %vm535, %v471, 0.0
      %v580 = vadd.f32 %v578, %v579
      %v581 = vsel %vm535, %v473, 0.0
      %v582 = vadd.f32 %v580, %v581
      %v583 = vsel %vm535, %v476, 0.0
      %v584 = vadd.f32 %v582, %v583
      %v585 = vsel %vm535, %v478, 0.0
      %v586 = vadd.f32 %v584, %v585
      %v587 = vsel %vm535, %v481, 0.0
      %v588 = vadd.f32 %v586, %v587
      %v589 = vsel %vm535, %v483, 0.0
      %v590 = vadd.f32 %v588, %v589
      %v591 = vsel %vm535, %v486, 0.0
      %v592 = vadd.f32 %v590, %v591
      %v593 = vsel %vm535, %v488, 0.0
      %v594 = vadd.f32 %v592, %v593
      %v595 = vsel %vm535, %v491, 0.0
      %v596 = vadd.f32 %v594, %v595
      %v597 = vsel %vm535, %v493, 0.0
      %v598 = vadd.f32 %v596, %v597
      %v599 = vsel %vm535, %v496, 0.0
      %v600 = vadd.f32 %v598, %v599
      %v601 = vsel %vm535, %v498, 0.0
      %v602 = vadd.f32 %v600, %v601
      %v603 = vsel %vm535, %v501, 0.0
      %v604 = vadd.f32 %v602, %v603
      %v605 = vsel %vm535, %v503, 0.0
      %v606 = vadd.f32 %v604, %v605
      %v607 = vsel %vm535, %v506, 0.0
      %v608 = vadd.f32 %v606, %v607
      %v609 = vsel %vm535, %v508, 0.0
      %v610 = vadd.f32 %v608, %v609
      %v611 = vsel %vm535, %v511, 0.0
      %v612 = vadd.f32 %v610, %v611
      %v613 = vsel %vm535, %v513, 0.0
      %v614 = vadd.f32 %v612, %v613
      %v615 = vsel %vm535, %v516, 0.0
      %v616 = vadd.f32 %v614, %v615
      %v617 = vsel %vm535, %v518, 0.0
      %v618 = vadd.f32 %v616, %v617
      %v619 = vsel %vm535, %v521, 0.0
      %v620 = vadd.f32 %v618, %v619
      %v621 = vsel %vm535, %v523, 0.0
      %v622 = vadd.f32 %v620, %v621
      %v623 = vsel %vm535, %v526, 0.0
      %v624 = vadd.f32 %v622, %v623
      %v625 = vsel %vm535, %v528, 0.0
      %v626 = vadd.f32 %v624, %v625
      %v627 = vsel %vm535, %v531, 0.0
      %v628 = vadd.f32 %v626, %v627
      %v629 = vsel %vm535, %v533, 0.0
      %v630 = vadd.f32 %v628, %v629
      %v631 = vrot.slane %v630, 4
      %v632 = vadd.f32 %v630, %v631
      %v633 = vrot.slane %v632, 2
      %v634 = vadd.f32 %v632, %v633
      %v635 = vrot.slane %v634, 1
      %v636 = vadd.f32 %v634, %v635
      %v637 = vmul.f32 %v456, %v456
      %v638 = vmul.f32 %v458, %v458
      %v639 = vmul.f32 %v461, %v461
      %v640 = vmul.f32 %v463, %v463
      %v641 = vmul.f32 %v466, %v466
      %v642 = vmul.f32 %v468, %v468
      %v643 = vmul.f32 %v471, %v471
      %v644 = vmul.f32 %v473, %v473
      %v645 = vmul.f32 %v476, %v476
      %v646 = vmul.f32 %v478, %v478
      %v647 = vmul.f32 %v481, %v481
      %v648 = vmul.f32 %v483, %v483
      %v649 = vmul.f32 %v486, %v486
      %v650 = vmul.f32 %v488, %v488
      %v651 = vmul.f32 %v491, %v491
      %v652 = vmul.f32 %v493, %v493
      %v653 = vmul.f32 %v496, %v496
      %v654 = vmul.f32 %v498, %v498
      %v655 = vmul.f32 %v501, %v501
      %v656 = vmul.f32 %v503, %v503
      %v657 = vmul.f32 %v506, %v506
      %v658 = vmul.f32 %v508, %v508
      %v659 = vmul.f32 %v511, %v511
      %v660 = vmul.f32 %v513, %v513
      %v661 = vmul.f32 %v516, %v516
      %v662 = vmul.f32 %v518, %v518
      %v663 = vmul.f32 %v521, %v521
      %v664 = vmul.f32 %v523, %v523
      %v665 = vmul.f32 %v526, %v526
      %v666 = vmul.f32 %v528, %v528
      %v667 = vmul.f32 %v531, %v531
      %v668 = vmul.f32 %v533, %v533
      %v669 = vsel %vm535, %v637, 0.0
      %v670 = vsel %vm535, %v638, 0.0
      %v671 = vadd.f32 %v669, %v670
      %v672 = vsel %vm535, %v639, 0.0
      %v673 = vadd.f32 %v671, %v672
      %v674 = vsel %vm535, %v640, 0.0
      %v675 = vadd.f32 %v673, %v674
      %v676 = vsel %vm535, %v641, 0.0
      %v677 = vadd.f32 %v675, %v676
      %v678 = vsel %vm535, %v642, 0.0
      %v679 = vadd.f32 %v677, %v678
      %v680 = vsel %vm535, %v643, 0.0
      %v681 = vadd.f32 %v679, %v680
      %v682 = vsel %vm535, %v644, 0.0
      %v683 = vadd.f32 %v681, %v682
      %v684 = vsel %vm535, %v645, 0.0
      %v685 = vadd.f32 %v683, %v684
      %v686 = vsel %vm535, %v646, 0.0
      %v687 = vadd.f32 %v685, %v686
      %v688 = vsel %vm535, %v647, 0.0
      %v689 = vadd.f32 %v687, %v688
      %v690 = vsel %vm535, %v648, 0.0
      %v691 = vadd.f32 %v689, %v690
      %v692 = vsel %vm535, %v649, 0.0
      %v693 = vadd.f32 %v691, %v692
      %v694 = vsel %vm535, %v650, 0.0
      %v695 = vadd.f32 %v693, %v694
      %v696 = vsel %vm535, %v651, 0.0
      %v697 = vadd.f32 %v695, %v696
      %v698 = vsel %vm535, %v652, 0.0
      %v699 = vadd.f32 %v697, %v698
      %v700 = vsel %vm535, %v653, 0.0
      %v701 = vadd.f32 %v699, %v700
      %v702 = vsel %vm535, %v654, 0.0
      %v703 = vadd.f32 %v701, %v702
      %v704 = vsel %vm535, %v655, 0.0
      %v705 = vadd.f32 %v703, %v704
      %v706 = vsel %vm535, %v656, 0.0
      %v707 = vadd.f32 %v705, %v706
      %v708 = vsel %vm535, %v657, 0.0
      %v709 = vadd.f32 %v707, %v708
      %v710 = vsel %vm535, %v658, 0.0
      %v711 = vadd.f32 %v709, %v710
      %v712 = vsel %vm535, %v659, 0.0
      %v713 = vadd.f32 %v711, %v712
      %v714 = vsel %vm535, %v660, 0.0
      %v715 = vadd.f32 %v713, %v714
      %v716 = vsel %vm535, %v661, 0.0
      %v717 = vadd.f32 %v715, %v716
      %v718 = vsel %vm535, %v662, 0.0
      %v719 = vadd.f32 %v717, %v718
      %v720 = vsel %vm535, %v663, 0.0
      %v721 = vadd.f32 %v719, %v720
      %v722 = vsel %vm535, %v664, 0.0
      %v723 = vadd.f32 %v721, %v722
      %v724 = vsel %vm535, %v665, 0.0
      %v725 = vadd.f32 %v723, %v724
      %v726 = vsel %vm535, %v666, 0.0
      %v727 = vadd.f32 %v725, %v726
      %v728 = vsel %vm535, %v667, 0.0
      %v729 = vadd.f32 %v727, %v728
      %v730 = vsel %vm535, %v668, 0.0
      %v731 = vadd.f32 %v729, %v730
      %v732 = vrot.slane %v731, 4
      %v733 = vadd.f32 %v731, %v732
      %v734 = vrot.slane %v733, 2
      %v735 = vadd.f32 %v733, %v734
      %v736 = vrot.slane %v735, 1
      %v737 = vadd.f32 %v735, %v736
      %vm738 = vcmask 1040384
      %v739 = vsel %vm738, %v636, %v737
      %vm740 = vcmask 123904
      %741 = vst.msk [vmem:[%s238] sm:$0x3] %vm740, %v739
      %s742 = smul.u32 32, %s17
      %p743 = scmp.lt.s32.totalorder %s742, 63
      %s744 = scalar_select %p743, %s742, 63
      %s745 = smul.addr %s744, 8
      %s746 = scalar_lea.vmem %s4, %s745
      %p747 = scmp.lt.s32.totalorder %s17, 1
      %s748 = scalar_select %p747, %s17, 1
      %s749 = smul.addr %s748, 2
      %s750 = scalar_lea.vmem %s5, %s749
      // Predicated region
      $region37: #{bottleneck_forward.6} parent=35 // pred_check
        %p751 = pneg %p124
      $region38: #{bottleneck_forward.6} parent=35 // pred_check_branch
        %753 = sbr.rel (%p751) target = $region40
      $region39: #{bottleneck_forward.6} parent=35 // pred_region
        %s754 = smul.u32 32, %s17
      $region40: #{bottleneck_forward.6} parent=35 // pred_fallthru
        _
      // Predicated region
      $region41: #{bottleneck_forward.6} parent=35 // pred_check
        %p755 = pneg %p150
      $region42: #{bottleneck_forward.6} parent=35 // pred_check_branch
        %757 = sbr.rel (%p755) target = $region44
      $region43: #{bottleneck_forward.6} parent=35 // pred_region
        _
      $region44: #{bottleneck_forward.6} parent=35 // pred_fallthru
        _
    $region36: #{bottleneck_forward.6} parent=5 // pred_fallthru
      _
    %p758 = scmp.le.s32.totalorder 2, %s12
    // Predicated region
    $region45: #{bottleneck_forward.6} parent=5 // pred_check
      %p759 = pneg %p758
    $region46: #{bottleneck_forward.6} parent=5 // pred_check_branch
      %761 = sbr.rel (%p759) target = $region48
    $region47: #{bottleneck_forward.6} parent=5 // pred_region
      %s762 = ssub.s32 %s12, 2
      // Predicated region
      $region49: #{bottleneck_forward.6} parent=47 // pred_check
        %p763 = pneg %p130
      $region50: #{bottleneck_forward.6} parent=47 // pred_check_branch
        %765 = sbr.rel (%p763) target = $region52
      $region51: #{bottleneck_forward.6} parent=47 // pred_region
        %s766 = smul.u32 32, %s18
        %p767 = scmp.lt.s32.totalorder %s766, 63
        %s768 = scalar_select %p767, %s766, 63
        %s769 = smul.addr %s768, 8
        %s770 = scalar_lea.vmem %s4, %s769
      $region52: #{bottleneck_forward.6} parent=47 // pred_fallthru
        _
      // Predicated region
      $region53: #{bottleneck_forward.6} parent=47 // pred_check
        %p771 = pneg %p156
      $region54: #{bottleneck_forward.6} parent=47 // pred_check_branch
        %773 = sbr.rel (%p771) target = $region56
      $region55: #{bottleneck_forward.6} parent=47 // pred_region
        %p774 = scmp.lt.s32.totalorder %s18, 1
        %s775 = scalar_select %p774, %s18, 1
        %s776 = smul.addr %s775, 2
        %s777 = scalar_lea.vmem %s5, %s776
      $region56: #{bottleneck_forward.6} parent=47 // pred_fallthru
        _
    $region48: #{bottleneck_forward.6} parent=5 // pred_fallthru
      _
  $region6: #{bottleneck_forward.6} parent=0 // loop_footer
    %s16 = sadd.s32 1, %s12
  $region7: #{bottleneck_forward.6} parent=0 // loop_footer_branch
    %11 = sbr.rel target = $region3
  $region8: #{bottleneck_forward.6} parent=0 // loop_exit
    _

// kernel: bottleneck_forward.7
$region0: #{bottleneck_forward.7}
  #allocation0 [shape = 'u32[]', space=smem, size = 0x4, offset = 0x4, fixed_abs, tag = 'smem constant byte address 0x4 - core index']
  #allocation1 [shape = 'u32[72,128]{1,0:T(1,128)}', space=vmem, size = 0x9000, scoped, tag = 'internal scratch']
  %s0 = inlined_call_operand.vmem [shape: f32[512,16], index: 0, kind: input, shape index: {}]
  %s1 = inlined_call_operand.vmem [shape: f32[512,16], index: 1, kind: input, shape index: {}, may-alias: {1,4}]
  %s2 = inlined_call_operand.vmem [shape: f32[1,16], index: 2, kind: input, shape index: {}]
  %s3 = inlined_call_operand.vmem [shape: f32[1,16], index: 3, kind: input, shape index: {}]
  %s4 = inlined_call_operand.vmem [shape: f32[512,16], index: 4, kind: output, shape index: {}, may-alias: {1,4}]
  %s5 = sld [smem:[#allocation0]]
  $region49: #{bottleneck_forward.7} parent=0
    _
  %s7 = ssub.s32 1, %s5
  %s8 = scalar_select 0, %s7, %s5
  loop: start=0, step=1, limit=4
  $region2: #{bottleneck_forward.7} parent=0 // loop_pre_header
    _
  $region3: #{bottleneck_forward.7} parent=0 // loop_header
    %s10 = sphi 0, %s14
    %p11 = scmp.ge.s32.totalorder %s10, 4
    %s20 = sphi 0, %s22
    %s23 = sphi 0, %s20
    %s24 = sphi 0, %s23
    %s40 = sphi 0, %s24
    %s46 = sphi 0, %s48
    %s49 = sphi 0, %s46
    %s50 = sphi 0, %s49
    %s66 = sphi 0, %s50
    %s70 = sphi 0, %s70
    %s72 = sphi 0, %s70
    %s73 = sphi 0, %s72
    %s87 = sphi 0, %s73
    %s91 = sphi 0, %s91
    %s93 = sphi 0, %s91
    %s94 = sphi 0, %s93
    %s108 = sphi 0, %s94
    %s114 = sphi 0, %s116
    %s117 = sphi 0, %s114
    %s118 = sphi 0, %s117
    %s134 = sphi 0, %s118
  $region4: #{bottleneck_forward.7} parent=0 // loop_header_branch
    %13 = sbr.rel (%p11) target = $region8
  $region5: #{bottleneck_forward.7} parent=0 // loop_body
    %s15 = ssub.s32 %s10, 1
    %s16 = ssub.s32 %s10, 2
    %s17 = sadd.s32 %s10, 1
    %s18 = ssub.s32 %s10, %s17
    %p19 = scmp.eq.s32.totalorder %s18, 0
    %s21 = sadd.s32 %s20, 1
    %s22 = scalar_select %p19, %s20, %s21
    %p25 = pneg %p19
    %p26 = scmp.eq.s32.totalorder %s10, 1
    %p27 = por %p25, %p26
    %p28 = scmp.ne.s32.totalorder %s20, %s23
    %p29 = scmp.eq.s32.totalorder %s10, 0
    %p30 = por %p28, %p29
    %p31 = scmp.ne.s32.totalorder %s20, %s23
    %p32 = scmp.eq.s32.totalorder %s15, 1
    %p33 = por %p31, %p32
    %p34 = scmp.ne.s32.totalorder %s23, %s24
    %p35 = scmp.eq.s32.totalorder %s15, 0
    %p36 = por %p34, %p35
    %p37 = scmp.ne.s32.totalorder %s23, %s24
    %p38 = scmp.eq.s32.totalorder %s16, 1
    %p39 = por %p37, %p38
    %p41 = scmp.ne.s32.totalorder %s24, %s40
    %p42 = scmp.eq.s32.totalorder %s16, 0
    %p43 = por %p41, %p42
    %s44 = ssub.s32 %s10, %s17
    %p45 = scmp.eq.s32.totalorder %s44, 0
    %s47 = sadd.s32 %s46, 1
    %s48 = scalar_select %p45, %s46, %s47
    %p51 = pneg %p45
    %p52 = scmp.eq.s32.totalorder %s10, 1
    %p53 = por %p51, %p52
    %p54 = scmp.ne.s32.totalorder %s46, %s49
    %p55 = scmp.eq.s32.totalorder %s10, 0
    %p56 = por %p54, %p55
    %p57 = scmp.ne.s32.totalorder %s46, %s49
    %p58 = scmp.eq.s32.totalorder %s15, 1
    %p59 = por %p57, %p58
    %p60 = scmp.ne.s32.totalorder %s49, %s50
    %p61 = scmp.eq.s32.totalorder %s15, 0
    %p62 = por %p60, %p61
    %p63 = scmp.ne.s32.totalorder %s49, %s50
    %p64 = scmp.eq.s32.totalorder %s16, 1
    %p65 = por %p63, %p64
    %p67 = scmp.ne.s32.totalorder %s50, %s66
    %p68 = scmp.eq.s32.totalorder %s16, 0
    %p69 = por %p67, %p68
    %s71 = sadd.s32 %s70, 1
    %p74 = scmp.eq.s32.totalorder %s10, 1
    %p75 = scmp.ne.s32.totalorder %s70, %s72
    %p76 = scmp.eq.s32.totalorder %s10, 0
    %p77 = por %p75, %p76
    %p78 = scmp.ne.s32.totalorder %s70, %s72
    %p79 = scmp.eq.s32.totalorder %s15, 1
    %p80 = por %p78, %p79
    %p81 = scmp.ne.s32.totalorder %s72, %s73
    %p82 = scmp.eq.s32.totalorder %s15, 0
    %p83 = por %p81, %p82
    %p84 = scmp.ne.s32.totalorder %s72, %s73
    %p85 = scmp.eq.s32.totalorder %s16, 1
    %p86 = por %p84, %p85
    %p88 = scmp.ne.s32.totalorder %s73, %s87
    %p89 = scmp.eq.s32.totalorder %s16, 0
    %p90 = por %p88, %p89
    %s92 = sadd.s32 %s91, 1
    %p95 = scmp.eq.s32.totalorder %s10, 1
    %p96 = scmp.ne.s32.totalorder %s91, %s93
    %p97 = scmp.eq.s32.totalorder %s10, 0
    %p98 = por %p96, %p97
    %p99 = scmp.ne.s32.totalorder %s91, %s93
    %p100 = scmp.eq.s32.totalorder %s15, 1
    %p101 = por %p99, %p100
    %p102 = scmp.ne.s32.totalorder %s93, %s94
    %p103 = scmp.eq.s32.totalorder %s15, 0
    %p104 = por %p102, %p103
    %p105 = scmp.ne.s32.totalorder %s93, %s94
    %p106 = scmp.eq.s32.totalorder %s16, 1
    %p107 = por %p105, %p106
    %p109 = scmp.ne.s32.totalorder %s94, %s108
    %p110 = scmp.eq.s32.totalorder %s16, 0
    %p111 = por %p109, %p110
    %s112 = ssub.s32 %s10, %s17
    %p113 = scmp.eq.s32.totalorder %s112, 0
    %s115 = sadd.s32 %s114, 1
    %s116 = scalar_select %p113, %s114, %s115
    %p119 = pneg %p113
    %p120 = scmp.eq.s32.totalorder %s10, 1
    %p121 = por %p119, %p120
    %p122 = scmp.ne.s32.totalorder %s114, %s117
    %p123 = scmp.eq.s32.totalorder %s10, 0
    %p124 = por %p122, %p123
    %p125 = scmp.ne.s32.totalorder %s114, %s117
    %p126 = scmp.eq.s32.totalorder %s15, 1
    %p127 = por %p125, %p126
    %p128 = scmp.ne.s32.totalorder %s117, %s118
    %p129 = scmp.eq.s32.totalorder %s15, 0
    %p130 = por %p128, %p129
    %p131 = scmp.ne.s32.totalorder %s117, %s118
    %p132 = scmp.eq.s32.totalorder %s16, 1
    %p133 = por %p131, %p132
    %p135 = scmp.ne.s32.totalorder %s118, %s134
    %p136 = scmp.eq.s32.totalorder %s16, 0
    %p137 = por %p135, %p136
    %p138 = scmp.le.s32.totalorder 1, %s10
    %p139 = scmp.lt.s32.totalorder %s10, 3
    %p140 = pnand %p138, %p139
    %p141 = pneg %p140
    // Predicated region
    $region9: #{bottleneck_forward.7} parent=5 // pred_check
      _
    $region10: #{bottleneck_forward.7} parent=5 // pred_check_branch
      %143 = sbr.rel (%p140) target = $region12
    $region11: #{bottleneck_forward.7} parent=5 // pred_region
      %s144 = ssub.s32 %s10, 1
      // Predicated region
      $region13: #{bottleneck_forward.7} parent=11 // pred_check
        %p145 = pneg %p83
      $region14: #{bottleneck_forward.7} parent=11 // pred_check_branch
        %147 = sbr.rel (%p145) target = $region16
      $region15: #{bottleneck_forward.7} parent=11 // pred_region
        _
      $region16: #{bottleneck_forward.7} parent=11 // pred_fallthru
        _
      // Predicated region
      $region17: #{bottleneck_forward.7} parent=11 // pred_check
        %p148 = pneg %p104
      $region18: #{bottleneck_forward.7} parent=11 // pred_check_branch
        %150 = sbr.rel (%p148) target = $region20
      $region19: #{bottleneck_forward.7} parent=11 // pred_region
        _
      $region20: #{bottleneck_forward.7} parent=11 // pred_fallthru
        _
    $region12: #{bottleneck_forward.7} parent=5 // pred_fallthru
      _
    %p151 = scmp.lt.s32.totalorder %s10, 2
    // Predicated region
    $region21: #{bottleneck_forward.7} parent=5 // pred_check
      %p152 = pneg %p151
    $region22: #{bottleneck_forward.7} parent=5 // pred_check_branch
      %154 = sbr.rel (%p152) target = $region24
    $region23: #{bottleneck_forward.7} parent=5 // pred_region
      // Predicated region
      $region25: #{bottleneck_forward.7} parent=23 // pred_check
        %p155 = pneg %p30
      $region26: #{bottleneck_forward.7} parent=23 // pred_check_branch
        %157 = sbr.rel (%p155) target = $region28
      $region27: #{bottleneck_forward.7} parent=23 // pred_region
        %s158 = smul.u32 32, %s10
        %p159 = scmp.lt.s32.totalorder %s158, 63
        %s160 = scalar_select %p159, %s158, 63
        %s161 = smul.addr %s160, 8
        %s162 = scalar_lea.vmem %s0, %s161
        %s163 = smul.u32 32, %s10
      $region28: #{bottleneck_forward.7} parent=23 // pred_fallthru
        _
      // Predicated region
      $region29: #{bottleneck_forward.7} parent=23 // pred_check
        %p164 = pneg %p56
      $region30: #{bottleneck_forward.7} parent=23 // pred_check_branch
        %166 = sbr.rel (%p164) target = $region32
      $region31: #{bottleneck_forward.7} parent=23 // pred_region
        %s167 = smul.u32 32, %s10
        %p168 = scmp.lt.s32.totalorder %s167, 63
        %s169 = scalar_select %p168, %s167, 63
        %s170 = smul.addr %s169, 8
        %s171 = scalar_lea.vmem %s1, %s170
        %s172 = smul.u32 32, %s10
      $region32: #{bottleneck_forward.7} parent=23 // pred_fallthru
        _
    $region24: #{bottleneck_forward.7} parent=5 // pred_fallthru
      _
    %p173 = scmp.le.s32.totalorder 1, %s10
    %p174 = scmp.lt.s32.totalorder %s10, 3
    %p175 = pnand %p173, %p174
    %p176 = pneg %p175
    // Predicated region
    $region33: #{bottleneck_forward.7} parent=5 // pred_check
      _
    $region34: #{bottleneck_forward.7} parent=5 // pred_check_branch
      %178 = sbr.rel (%p175) target = $region36
    $region35: #{bottleneck_forward.7} parent=5 // pred_region
      %s179 = ssub.s32 %s10, 1
      %s180 = smul.u32 32, %s15
      %p181 = scmp.lt.s32.totalorder %s180, 63
      %s182 = scalar_select %p181, %s180, 63
      %s183 = smul.addr %s182, 8
      %s184 = scalar_lea.vmem %s0, %s183
      %p185 = pneg %p36
      %p186 = pneg %p33
      %s187 = smul.u32 32, %s15
      %p188 = scmp.lt.s32.totalorder %s187, 63
      %s189 = scalar_select %p188, %s187, 63
      %s190 = smul.addr %s189, 8
      %s191 = scalar_lea.vmem %s1, %s190
      %p192 = pneg %p62
      %p193 = pneg %p59
      %p194 = pneg %p83
      %p195 = pneg %p80
      %p196 = pneg %p104
      %p197 = pneg %p101
      %p198 = pneg %p130
      %p199 = pneg %p127
      %s200 = smul.u32 32, %s15
      %p201 = scmp.lt.s32.totalorder %s200, 63
      %s202 = scalar_select %p201, %s200, 63
      %s203 = smul.addr %s202, 8
      %s204 = scalar_lea.vmem %s4, %s203
      %s205 = smul.u32 32, %s15
      %p206 = scmp.lt.s32.totalorder %s205, 63
      %s207 = scalar_select %p206, %s205, 63
      %s208 = smul.addr %s207, 8
      %s209 = scalar_lea.vmem %s0, %s208
      %s210 = smul.u32 32, %s15
      %s211 = smul.u32 32, %s15
      %p212 = scmp.lt.s32.totalorder %s211, 63
      %s213 = scalar_select %p212, %s211, 63
      %s214 = smul.addr %s213, 8
      %s215 = scalar_lea.vmem %s1, %s214
      %s216 = smul.u32 32, %s15
      %s217 = smul.u32 32, %s15
      %p218 = scmp.lt.s32.totalorder %s217, 63
      %s219 = scalar_select %p218, %s217, 63
      %s220 = smul.addr %s219, 8
      %s221 = scalar_lea.vmem %s4, %s220
      %s222 = smul.u32 32, %s15
      %v223 = vld [vmem:[%s209] sm:$0xff]
      %v224 = vld [vmem:[%s209 + $0x8] sm:$0xff]
      %v225 = vld [vmem:[%s209 + $0x10] sm:$0xff]
      %v226 = vld [vmem:[%s209 + $0x18] sm:$0xff]
      %v227 = vld [vmem:[%s209 + $0x20] sm:$0xff]
      %v228 = vld [vmem:[%s209 + $0x28] sm:$0xff]
      %v229 = vld [vmem:[%s209 + $0x30] sm:$0xff]
      %v230 = vld [vmem:[%s209 + $0x38] sm:$0xff]
      %v231 = vld [vmem:[%s209 + $0x40] sm:$0xff]
      %v232 = vld [vmem:[%s209 + $0x48] sm:$0xff]
      %v233 = vld [vmem:[%s209 + $0x50] sm:$0xff]
      %v234 = vld [vmem:[%s209 + $0x58] sm:$0xff]
      %v235 = vld [vmem:[%s209 + $0x60] sm:$0xff]
      %v236 = vld [vmem:[%s209 + $0x68] sm:$0xff]
      %v237 = vld [vmem:[%s209 + $0x70] sm:$0xff]
      %v238 = vld [vmem:[%s209 + $0x78] sm:$0xff]
      %v239 = vld [vmem:[%s209 + $0x80] sm:$0xff]
      %v240 = vld [vmem:[%s209 + $0x88] sm:$0xff]
      %v241 = vld [vmem:[%s209 + $0x90] sm:$0xff]
      %v242 = vld [vmem:[%s209 + $0x98] sm:$0xff]
      %v243 = vld [vmem:[%s209 + $0xa0] sm:$0xff]
      %v244 = vld [vmem:[%s209 + $0xa8] sm:$0xff]
      %v245 = vld [vmem:[%s209 + $0xb0] sm:$0xff]
      %v246 = vld [vmem:[%s209 + $0xb8] sm:$0xff]
      %v247 = vld [vmem:[%s209 + $0xc0] sm:$0xff]
      %v248 = vld [vmem:[%s209 + $0xc8] sm:$0xff]
      %v249 = vld [vmem:[%s209 + $0xd0] sm:$0xff]
      %v250 = vld [vmem:[%s209 + $0xd8] sm:$0xff]
      %v251 = vld [vmem:[%s209 + $0xe0] sm:$0xff]
      %v252 = vld [vmem:[%s209 + $0xe8] sm:$0xff]
      %v253 = vld [vmem:[%s209 + $0xf0] sm:$0xff]
      %v254 = vld [vmem:[%s209 + $0xf8] sm:$0xff]
      %v255 = vld [vmem:[%s2] sm:$0x1]
      %v257 = vperm.slane %v255, 0
      %v259 = vmul.f32 %v223, %v257
      %v260 = vmul.f32 %v224, %v257
      %v261 = vmul.f32 %v225, %v257
      %v262 = vmul.f32 %v226, %v257
      %v263 = vmul.f32 %v227, %v257
      %v264 = vmul.f32 %v228, %v257
      %v265 = vmul.f32 %v229, %v257
      %v266 = vmul.f32 %v230, %v257
      %v267 = vmul.f32 %v231, %v257
      %v268 = vmul.f32 %v232, %v257
      %v269 = vmul.f32 %v233, %v257
      %v270 = vmul.f32 %v234, %v257
      %v271 = vmul.f32 %v235, %v257
      %v272 = vmul.f32 %v236, %v257
      %v273 = vmul.f32 %v237, %v257
      %v274 = vmul.f32 %v238, %v257
      %v275 = vmul.f32 %v239, %v257
      %v276 = vmul.f32 %v240, %v257
      %v277 = vmul.f32 %v241, %v257
      %v278 = vmul.f32 %v242, %v257
      %v279 = vmul.f32 %v243, %v257
      %v280 = vmul.f32 %v244, %v257
      %v281 = vmul.f32 %v245, %v257
      %v282 = vmul.f32 %v246, %v257
      %v283 = vmul.f32 %v247, %v257
      %v284 = vmul.f32 %v248, %v257
      %v285 = vmul.f32 %v249, %v257
      %v286 = vmul.f32 %v250, %v257
      %v287 = vmul.f32 %v251, %v257
      %v288 = vmul.f32 %v252, %v257
      %v289 = vmul.f32 %v253, %v257
      %v290 = vmul.f32 %v254, %v257
      %v291 = vld [vmem:[%s3] sm:$0x1]
      %v293 = vperm.slane %v291, 0
      %v295 = vadd.f32 %v259, %v293
      %v296 = vadd.f32 %v260, %v293
      %v297 = vadd.f32 %v261, %v293
      %v298 = vadd.f32 %v262, %v293
      %v299 = vadd.f32 %v263, %v293
      %v300 = vadd.f32 %v264, %v293
      %v301 = vadd.f32 %v265, %v293
      %v302 = vadd.f32 %v266, %v293
      %v303 = vadd.f32 %v267, %v293
      %v304 = vadd.f32 %v268, %v293
      %v305 = vadd.f32 %v269, %v293
      %v306 = vadd.f32 %v270, %v293
      %v307 = vadd.f32 %v271, %v293
      %v308 = vadd.f32 %v272, %v293
      %v309 = vadd.f32 %v273, %v293
      %v310 = vadd.f32 %v274, %v293
      %v311 = vadd.f32 %v275, %v293
      %v312 = vadd.f32 %v276, %v293
      %v313 = vadd.f32 %v277, %v293
      %v314 = vadd.f32 %v278, %v293
      %v315 = vadd.f32 %v279, %v293
      %v316 = vadd.f32 %v280, %v293
      %v317 = vadd.f32 %v281, %v293
      %v318 = vadd.f32 %v282, %v293
      %v319 = vadd.f32 %v283, %v293
      %v320 = vadd.f32 %v284, %v293
      %v321 = vadd.f32 %v285, %v293
      %v322 = vadd.f32 %v286, %v293
      %v323 = vadd.f32 %v287, %v293
      %v324 = vadd.f32 %v288, %v293
      %v325 = vadd.f32 %v289, %v293
      %v326 = vadd.f32 %v290, %v293
      %v327 = vmax.f32 %v295, 0.0
      %v328 = vmax.f32 %v296, 0.0
      %v329 = vmax.f32 %v297, 0.0
      %v330 = vmax.f32 %v298, 0.0
      %v331 = vmax.f32 %v299, 0.0
      %v332 = vmax.f32 %v300, 0.0
      %v333 = vmax.f32 %v301, 0.0
      %v334 = vmax.f32 %v302, 0.0
      %v335 = vmax.f32 %v303, 0.0
      %v336 = vmax.f32 %v304, 0.0
      %v337 = vmax.f32 %v305, 0.0
      %v338 = vmax.f32 %v306, 0.0
      %v339 = vmax.f32 %v307, 0.0
      %v340 = vmax.f32 %v308, 0.0
      %v341 = vmax.f32 %v309, 0.0
      %v342 = vmax.f32 %v310, 0.0
      %v343 = vmax.f32 %v311, 0.0
      %v344 = vmax.f32 %v312, 0.0
      %v345 = vmax.f32 %v313, 0.0
      %v346 = vmax.f32 %v314, 0.0
      %v347 = vmax.f32 %v315, 0.0
      %v348 = vmax.f32 %v316, 0.0
      %v349 = vmax.f32 %v317, 0.0
      %v350 = vmax.f32 %v318, 0.0
      %v351 = vmax.f32 %v319, 0.0
      %v352 = vmax.f32 %v320, 0.0
      %v353 = vmax.f32 %v321, 0.0
      %v354 = vmax.f32 %v322, 0.0
      %v355 = vmax.f32 %v323, 0.0
      %v356 = vmax.f32 %v324, 0.0
      %v357 = vmax.f32 %v325, 0.0
      %v358 = vmax.f32 %v326, 0.0
      %v359 = vld [vmem:[%s215] sm:$0xff]
      %v360 = vld [vmem:[%s215 + $0x8] sm:$0xff]
      %v361 = vld [vmem:[%s215 + $0x10] sm:$0xff]
      %v362 = vld [vmem:[%s215 + $0x18] sm:$0xff]
      %v363 = vld [vmem:[%s215 + $0x20] sm:$0xff]
      %v364 = vld [vmem:[%s215 + $0x28] sm:$0xff]
      %v365 = vld [vmem:[%s215 + $0x30] sm:$0xff]
      %v366 = vld [vmem:[%s215 + $0x38] sm:$0xff]
      %v367 = vld [vmem:[%s215 + $0x40] sm:$0xff]
      %v368 = vld [vmem:[%s215 + $0x48] sm:$0xff]
      %v369 = vld [vmem:[%s215 + $0x50] sm:$0xff]
      %v370 = vld [vmem:[%s215 + $0x58] sm:$0xff]
      %v371 = vld [vmem:[%s215 + $0x60] sm:$0xff]
      %v372 = vld [vmem:[%s215 + $0x68] sm:$0xff]
      %v373 = vld [vmem:[%s215 + $0x70] sm:$0xff]
      %v374 = vld [vmem:[%s215 + $0x78] sm:$0xff]
      %v375 = vld [vmem:[%s215 + $0x80] sm:$0xff]
      %v376 = vld [vmem:[%s215 + $0x88] sm:$0xff]
      %v377 = vld [vmem:[%s215 + $0x90] sm:$0xff]
      %v378 = vld [vmem:[%s215 + $0x98] sm:$0xff]
      %v379 = vld [vmem:[%s215 + $0xa0] sm:$0xff]
      %v380 = vld [vmem:[%s215 + $0xa8] sm:$0xff]
      %v381 = vld [vmem:[%s215 + $0xb0] sm:$0xff]
      %v382 = vld [vmem:[%s215 + $0xb8] sm:$0xff]
      %v383 = vld [vmem:[%s215 + $0xc0] sm:$0xff]
      %v384 = vld [vmem:[%s215 + $0xc8] sm:$0xff]
      %v385 = vld [vmem:[%s215 + $0xd0] sm:$0xff]
      %v386 = vld [vmem:[%s215 + $0xd8] sm:$0xff]
      %v387 = vld [vmem:[%s215 + $0xe0] sm:$0xff]
      %v388 = vld [vmem:[%s215 + $0xe8] sm:$0xff]
      %v389 = vld [vmem:[%s215 + $0xf0] sm:$0xff]
      %v390 = vld [vmem:[%s215 + $0xf8] sm:$0xff]
      %v391 = vadd.f32 %v327, %v359
      %v392 = vadd.f32 %v328, %v360
      %v393 = vadd.f32 %v329, %v361
      %v394 = vadd.f32 %v330, %v362
      %v395 = vadd.f32 %v331, %v363
      %v396 = vadd.f32 %v332, %v364
      %v397 = vadd.f32 %v333, %v365
      %v398 = vadd.f32 %v334, %v366
      %v399 = vadd.f32 %v335, %v367
      %v400 = vadd.f32 %v336, %v368
      %v401 = vadd.f32 %v337, %v369
      %v402 = vadd.f32 %v338, %v370
      %v403 = vadd.f32 %v339, %v371
      %v404 = vadd.f32 %v340, %v372
      %v405 = vadd.f32 %v341, %v373
      %v406 = vadd.f32 %v342, %v374
      %v407 = vadd.f32 %v343, %v375
      %v408 = vadd.f32 %v344, %v376
      %v409 = vadd.f32 %v345, %v377
      %v410 = vadd.f32 %v346, %v378
      %v411 = vadd.f32 %v347, %v379
      %v412 = vadd.f32 %v348, %v380
      %v413 = vadd.f32 %v349, %v381
      %v414 = vadd.f32 %v350, %v382
      %v415 = vadd.f32 %v351, %v383
      %v416 = vadd.f32 %v352, %v384
      %v417 = vadd.f32 %v353, %v385
      %v418 = vadd.f32 %v354, %v386
      %v419 = vadd.f32 %v355, %v387
      %v420 = vadd.f32 %v356, %v388
      %v421 = vadd.f32 %v357, %v389
      %v422 = vadd.f32 %v358, %v390
      %v423 = vmax.f32 %v391, 0.0
      %v424 = vmax.f32 %v392, 0.0
      %v425 = vmax.f32 %v393, 0.0
      %v426 = vmax.f32 %v394, 0.0
      %v427 = vmax.f32 %v395, 0.0
      %v428 = vmax.f32 %v396, 0.0
      %v429 = vmax.f32 %v397, 0.0
      %v430 = vmax.f32 %v398, 0.0
      %v431 = vmax.f32 %v399, 0.0
      %v432 = vmax.f32 %v400, 0.0
      %v433 = vmax.f32 %v401, 0.0
      %v434 = vmax.f32 %v402, 0.0
      %v435 = vmax.f32 %v403, 0.0
      %v436 = vmax.f32 %v404, 0.0
      %v437 = vmax.f32 %v405, 0.0
      %v438 = vmax.f32 %v406, 0.0
      %v439 = vmax.f32 %v407, 0.0
      %v440 = vmax.f32 %v408, 0.0
      %v441 = vmax.f32 %v409, 0.0
      %v442 = vmax.f32 %v410, 0.0
      %v443 = vmax.f32 %v411, 0.0
      %v444 = vmax.f32 %v412, 0.0
      %v445 = vmax.f32 %v413, 0.0
      %v446 = vmax.f32 %v414, 0.0
      %v447 = vmax.f32 %v415, 0.0
      %v448 = vmax.f32 %v416, 0.0
      %v449 = vmax.f32 %v417, 0.0
      %v450 = vmax.f32 %v418, 0.0
      %v451 = vmax.f32 %v419, 0.0
      %v452 = vmax.f32 %v420, 0.0
      %v453 = vmax.f32 %v421, 0.0
      %v454 = vmax.f32 %v422, 0.0
      %vm455 = vcmask 130048
      %456 = vst.msk [vmem:[%s221] sm:$0xff] %vm455, %v423
      %457 = vst.msk [vmem:[%s221 + $0x8] sm:$0xff] %vm455, %v424
      %458 = vst.msk [vmem:[%s221 + $0x10] sm:$0xff] %vm455, %v425
      %459 = vst.msk [vmem:[%s221 + $0x18] sm:$0xff] %vm455, %v426
      %460 = vst.msk [vmem:[%s221 + $0x20] sm:$0xff] %vm455, %v427
      %461 = vst.msk [vmem:[%s221 + $0x28] sm:$0xff] %vm455, %v428
      %462 = vst.msk [vmem:[%s221 + $0x30] sm:$0xff] %vm455, %v429
      %463 = vst.msk [vmem:[%s221 + $0x38] sm:$0xff] %vm455, %v430
      %464 = vst.msk [vmem:[%s221 + $0x40] sm:$0xff] %vm455, %v431
      %465 = vst.msk [vmem:[%s221 + $0x48] sm:$0xff] %vm455, %v432
      %466 = vst.msk [vmem:[%s221 + $0x50] sm:$0xff] %vm455, %v433
      %467 = vst.msk [vmem:[%s221 + $0x58] sm:$0xff] %vm455, %v434
      %468 = vst.msk [vmem:[%s221 + $0x60] sm:$0xff] %vm455, %v435
      %469 = vst.msk [vmem:[%s221 + $0x68] sm:$0xff] %vm455, %v436
      %470 = vst.msk [vmem:[%s221 + $0x70] sm:$0xff] %vm455, %v437
      %471 = vst.msk [vmem:[%s221 + $0x78] sm:$0xff] %vm455, %v438
      %472 = vst.msk [vmem:[%s221 + $0x80] sm:$0xff] %vm455, %v439
      %473 = vst.msk [vmem:[%s221 + $0x88] sm:$0xff] %vm455, %v440
      %474 = vst.msk [vmem:[%s221 + $0x90] sm:$0xff] %vm455, %v441
      %475 = vst.msk [vmem:[%s221 + $0x98] sm:$0xff] %vm455, %v442
      %476 = vst.msk [vmem:[%s221 + $0xa0] sm:$0xff] %vm455, %v443
      %477 = vst.msk [vmem:[%s221 + $0xa8] sm:$0xff] %vm455, %v444
      %478 = vst.msk [vmem:[%s221 + $0xb0] sm:$0xff] %vm455, %v445
      %479 = vst.msk [vmem:[%s221 + $0xb8] sm:$0xff] %vm455, %v446
      %480 = vst.msk [vmem:[%s221 + $0xc0] sm:$0xff] %vm455, %v447
      %481 = vst.msk [vmem:[%s221 + $0xc8] sm:$0xff] %vm455, %v448
      %482 = vst.msk [vmem:[%s221 + $0xd0] sm:$0xff] %vm455, %v449
      %483 = vst.msk [vmem:[%s221 + $0xd8] sm:$0xff] %vm455, %v450
      %484 = vst.msk [vmem:[%s221 + $0xe0] sm:$0xff] %vm455, %v451
      %485 = vst.msk [vmem:[%s221 + $0xe8] sm:$0xff] %vm455, %v452
      %486 = vst.msk [vmem:[%s221 + $0xf0] sm:$0xff] %vm455, %v453
      %487 = vst.msk [vmem:[%s221 + $0xf8] sm:$0xff] %vm455, %v454
      %s488 = smul.u32 32, %s15
      %p489 = scmp.lt.s32.totalorder %s488, 63
      %s490 = scalar_select %p489, %s488, 63
      %s491 = smul.addr %s490, 8
      %s492 = scalar_lea.vmem %s4, %s491
      // Predicated region
      $region37: #{bottleneck_forward.7} parent=35 // pred_check
        %p493 = pneg %p127
      $region38: #{bottleneck_forward.7} parent=35 // pred_check_branch
        %495 = sbr.rel (%p493) target = $region40
      $region39: #{bottleneck_forward.7} parent=35 // pred_region
        %s496 = smul.u32 32, %s15
      $region40: #{bottleneck_forward.7} parent=35 // pred_fallthru
        _
    $region36: #{bottleneck_forward.7} parent=5 // pred_fallthru
      _
    %p497 = scmp.le.s32.totalorder 2, %s10
    // Predicated region
    $region41: #{bottleneck_forward.7} parent=5 // pred_check
      %p498 = pneg %p497
    $region42: #{bottleneck_forward.7} parent=5 // pred_check_branch
      %500 = sbr.rel (%p498) target = $region44
    $region43: #{bottleneck_forward.7} parent=5 // pred_region
      %s501 = ssub.s32 %s10, 2
      // Predicated region
      $region45: #{bottleneck_forward.7} parent=43 // pred_check
        %p502 = pneg %p133
      $region46: #{bottleneck_forward.7} parent=43 // pred_check_branch
        %504 = sbr.rel (%p502) target = $region48
      $region47: #{bottleneck_forward.7} parent=43 // pred_region
        %s505 = smul.u32 32, %s16
        %p506 = scmp.lt.s32.totalorder %s505, 63
        %s507 = scalar_select %p506, %s505, 63
        %s508 = smul.addr %s507, 8
        %s509 = scalar_lea.vmem %s4, %s508
      $region48: #{bottleneck_forward.7} parent=43 // pred_fallthru
        _
    $region44: #{bottleneck_forward.7} parent=5 // pred_fallthru
      _
  $region6: #{bottleneck_forward.7} parent=0 // loop_footer
    %s14 = sadd.s32 1, %s10
  $region7: #{bottleneck_forward.7} parent=0 // loop_footer_branch
    %9 = sbr.rel target = $region3
  $region8: #{bottleneck_forward.7} parent=0 // loop_exit
    _

// kernel: bottleneck_forward.5
$region0: #{bottleneck_forward.5}
  #allocation0 [shape = 'u32[]', space=smem, size = 0x4, offset = 0x4, fixed_abs, tag = 'smem constant byte address 0x4 - core index']
  #allocation1 [shape = 'u32[72,128]{1,0:T(1,128)}', space=vmem, size = 0x9000, scoped, tag = 'internal scratch']
  #allocation2 [shape = 'f32[18,18,4]{2,1,0:T(8,128)}', space=vmem, size = 0x36000, scoped, tag = 'scratch operand']
  %s0 = inlined_call_operand.vmem [shape: f32[2,16,16,4], index: 0, kind: input, shape index: {}]
  %s1 = inlined_call_operand.vmem [shape: f32[1,4], index: 1, kind: input, shape index: {}]
  %s2 = inlined_call_operand.vmem [shape: f32[1,4], index: 2, kind: input, shape index: {}]
  %s3 = inlined_call_operand.vmem [shape: bf16[36,4], index: 3, kind: input, shape index: {}]
  %s4 = inlined_call_operand.vmem [shape: f32[2,256,4], index: 4, kind: output, shape index: {0}]
  %s5 = inlined_call_operand.vmem [shape: f32[2,2,4], index: 5, kind: output, shape index: {1}]
  %6 = xla_tuple %s4, %s5
  %s7 = sld [smem:[#allocation0]]
  $region57: #{bottleneck_forward.5} parent=0
    _
  %s9 = ssub.s32 1, %s7
  %s10 = scalar_select 0, %s9, %s7
  loop: start=0, step=1, limit=4
  $region2: #{bottleneck_forward.5} parent=0 // loop_pre_header
    _
  $region3: #{bottleneck_forward.5} parent=0 // loop_header
    %s12 = sphi 0, %s16
    %p13 = scmp.ge.s32.totalorder %s12, 4
    %s22 = sphi 0, %s24
    %s25 = sphi 0, %s22
    %s26 = sphi 0, %s25
    %s42 = sphi 0, %s26
    %s46 = sphi 0, %s46
    %s48 = sphi 0, %s46
    %s49 = sphi 0, %s48
    %s63 = sphi 0, %s49
    %s67 = sphi 0, %s67
    %s69 = sphi 0, %s67
    %s70 = sphi 0, %s69
    %s84 = sphi 0, %s70
    %s88 = sphi 0, %s88
    %s90 = sphi 0, %s88
    %s91 = sphi 0, %s90
    %s105 = sphi 0, %s91
    %s111 = sphi 0, %s113
    %s114 = sphi 0, %s111
    %s115 = sphi 0, %s114
    %s131 = sphi 0, %s115
    %s137 = sphi 0, %s139
    %s140 = sphi 0, %s137
    %s141 = sphi 0, %s140
    %s157 = sphi 0, %s141
  $region4: #{bottleneck_forward.5} parent=0 // loop_header_branch
    %15 = sbr.rel (%p13) target = $region8
  $region5: #{bottleneck_forward.5} parent=0 // loop_body
    %s17 = ssub.s32 %s12, 1
    %s18 = ssub.s32 %s12, 2
    %s19 = sadd.s32 %s12, 1
    %s20 = ssub.s32 %s12, %s19
    %p21 = scmp.eq.s32.totalorder %s20, 0
    %s23 = sadd.s32 %s22, 1
    %s24 = scalar_select %p21, %s22, %s23
    %p27 = pneg %p21
    %p28 = scmp.eq.s32.totalorder %s12, 1
    %p29 = por %p27, %p28
    %p30 = scmp.ne.s32.totalorder %s22, %s25
    %p31 = scmp.eq.s32.totalorder %s12, 0
    %p32 = por %p30, %p31
    %p33 = scmp.ne.s32.totalorder %s22, %s25
    %p34 = scmp.eq.s32.totalorder %s17, 1
    %p35 = por %p33, %p34
    %p36 = scmp.ne.s32.totalorder %s25, %s26
    %p37 = scmp.eq.s32.totalorder %s17, 0
    %p38 = por %p36, %p37
    %p39 = scmp.ne.s32.totalorder %s25, %s26
    %p40 = scmp.eq.s32.totalorder %s18, 1
    %p41 = por %p39, %p40
    %p43 = scmp.ne.s32.totalorder %s26, %s42
    %p44 = scmp.eq.s32.totalorder %s18, 0
    %p45 = por %p43, %p44
    %s47 = sadd.s32 %s46, 1
    %p50 = scmp.eq.s32.totalorder %s12, 1
    %p51 = scmp.ne.s32.totalorder %s46, %s48
    %p52 = scmp.eq.s32.totalorder %s12, 0
    %p53 = por %p51, %p52
    %p54 = scmp.ne.s32.totalorder %s46, %s48
    %p55 = scmp.eq.s32.totalorder %s17, 1
    %p56 = por %p54, %p55
    %p57 = scmp.ne.s32.totalorder %s48, %s49
    %p58 = scmp.eq.s32.totalorder %s17, 0
    %p59 = por %p57, %p58
    %p60 = scmp.ne.s32.totalorder %s48, %s49
    %p61 = scmp.eq.s32.totalorder %s18, 1
    %p62 = por %p60, %p61
    %p64 = scmp.ne.s32.totalorder %s49, %s63
    %p65 = scmp.eq.s32.totalorder %s18, 0
    %p66 = por %p64, %p65
    %s68 = sadd.s32 %s67, 1
    %p71 = scmp.eq.s32.totalorder %s12, 1
    %p72 = scmp.ne.s32.totalorder %s67, %s69
    %p73 = scmp.eq.s32.totalorder %s12, 0
    %p74 = por %p72, %p73
    %p75 = scmp.ne.s32.totalorder %s67, %s69
    %p76 = scmp.eq.s32.totalorder %s17, 1
    %p77 = por %p75, %p76
    %p78 = scmp.ne.s32.totalorder %s69, %s70
    %p79 = scmp.eq.s32.totalorder %s17, 0
    %p80 = por %p78, %p79
    %p81 = scmp.ne.s32.totalorder %s69, %s70
    %p82 = scmp.eq.s32.totalorder %s18, 1
    %p83 = por %p81, %p82
    %p85 = scmp.ne.s32.totalorder %s70, %s84
    %p86 = scmp.eq.s32.totalorder %s18, 0
    %p87 = por %p85, %p86
    %s89 = sadd.s32 %s88, 1
    %p92 = scmp.eq.s32.totalorder %s12, 1
    %p93 = scmp.ne.s32.totalorder %s88, %s90
    %p94 = scmp.eq.s32.totalorder %s12, 0
    %p95 = por %p93, %p94
    %p96 = scmp.ne.s32.totalorder %s88, %s90
    %p97 = scmp.eq.s32.totalorder %s17, 1
    %p98 = por %p96, %p97
    %p99 = scmp.ne.s32.totalorder %s90, %s91
    %p100 = scmp.eq.s32.totalorder %s17, 0
    %p101 = por %p99, %p100
    %p102 = scmp.ne.s32.totalorder %s90, %s91
    %p103 = scmp.eq.s32.totalorder %s18, 1
    %p104 = por %p102, %p103
    %p106 = scmp.ne.s32.totalorder %s91, %s105
    %p107 = scmp.eq.s32.totalorder %s18, 0
    %p108 = por %p106, %p107
    %s109 = ssub.s32 %s12, %s19
    %p110 = scmp.eq.s32.totalorder %s109, 0
    %s112 = sadd.s32 %s111, 1
    %s113 = scalar_select %p110, %s111, %s112
    %p116 = pneg %p110
    %p117 = scmp.eq.s32.totalorder %s12, 1
    %p118 = por %p116, %p117
    %p119 = scmp.ne.s32.totalorder %s111, %s114
    %p120 = scmp.eq.s32.totalorder %s12, 0
    %p121 = por %p119, %p120
    %p122 = scmp.ne.s32.totalorder %s111, %s114
    %p123 = scmp.eq.s32.totalorder %s17, 1
    %p124 = por %p122, %p123
    %p125 = scmp.ne.s32.totalorder %s114, %s115
    %p126 = scmp.eq.s32.totalorder %s17, 0
    %p127 = por %p125, %p126
    %p128 = scmp.ne.s32.totalorder %s114, %s115
    %p129 = scmp.eq.s32.totalorder %s18, 1
    %p130 = por %p128, %p129
    %p132 = scmp.ne.s32.totalorder %s115, %s131
    %p133 = scmp.eq.s32.totalorder %s18, 0
    %p134 = por %p132, %p133
    %s135 = ssub.s32 %s12, %s19
    %p136 = scmp.eq.s32.totalorder %s135, 0
    %s138 = sadd.s32 %s137, 1
    %s139 = scalar_select %p136, %s137, %s138
    %p142 = pneg %p136
    %p143 = scmp.eq.s32.totalorder %s12, 1
    %p144 = por %p142, %p143
    %p145 = scmp.ne.s32.totalorder %s137, %s140
    %p146 = scmp.eq.s32.totalorder %s12, 0
    %p147 = por %p145, %p146
    %p148 = scmp.ne.s32.totalorder %s137, %s140
    %p149 = scmp.eq.s32.totalorder %s17, 1
    %p150 = por %p148, %p149
    %p151 = scmp.ne.s32.totalorder %s140, %s141
    %p152 = scmp.eq.s32.totalorder %s17, 0
    %p153 = por %p151, %p152
    %p154 = scmp.ne.s32.totalorder %s140, %s141
    %p155 = scmp.eq.s32.totalorder %s18, 1
    %p156 = por %p154, %p155
    %p158 = scmp.ne.s32.totalorder %s141, %s157
    %p159 = scmp.eq.s32.totalorder %s18, 0
    %p160 = por %p158, %p159
    %p161 = scmp.le.s32.totalorder 1, %s12
    %p162 = scmp.lt.s32.totalorder %s12, 3
    %p163 = pnand %p161, %p162
    %p164 = pneg %p163
    // Predicated region
    $region9: #{bottleneck_forward.5} parent=5 // pred_check
      _
    $region10: #{bottleneck_forward.5} parent=5 // pred_check_branch
      %166 = sbr.rel (%p163) target = $region12
    $region11: #{bottleneck_forward.5} parent=5 // pred_region
      %s167 = ssub.s32 %s12, 1
      // Predicated region
      $region13: #{bottleneck_forward.5} parent=11 // pred_check
        %p168 = pneg %p59
      $region14: #{bottleneck_forward.5} parent=11 // pred_check_branch
        %170 = sbr.rel (%p168) target = $region16
      $region15: #{bottleneck_forward.5} parent=11 // pred_region
        _
      $region16: #{bottleneck_forward.5} parent=11 // pred_fallthru
        _
      // Predicated region
      $region17: #{bottleneck_forward.5} parent=11 // pred_check
        %p171 = pneg %p80
      $region18: #{bottleneck_forward.5} parent=11 // pred_check_branch
        %173 = sbr.rel (%p171) target = $region20
      $region19: #{bottleneck_forward.5} parent=11 // pred_region
        _
      $region20: #{bottleneck_forward.5} parent=11 // pred_fallthru
        _
      // Predicated region
      $region21: #{bottleneck_forward.5} parent=11 // pred_check
        %p174 = pneg %p101
      $region22: #{bottleneck_forward.5} parent=11 // pred_check_branch
        %176 = sbr.rel (%p174) target = $region24
      $region23: #{bottleneck_forward.5} parent=11 // pred_region
        _
      $region24: #{bottleneck_forward.5} parent=11 // pred_fallthru
        _
    $region12: #{bottleneck_forward.5} parent=5 // pred_fallthru
      _
    %p177 = scmp.lt.s32.totalorder %s12, 2
    // Predicated region
    $region25: #{bottleneck_forward.5} parent=5 // pred_check
      %p178 = pneg %p177
    $region26: #{bottleneck_forward.5} parent=5 // pred_check_branch
      %180 = sbr.rel (%p178) target = $region28
    $region27: #{bottleneck_forward.5} parent=5 // pred_region
      // Predicated region
      $region29: #{bottleneck_forward.5} parent=27 // pred_check
        %p181 = pneg %p32
      $region30: #{bottleneck_forward.5} parent=27 // pred_check_branch
        %183 = sbr.rel (%p181) target = $region32
      $region31: #{bottleneck_forward.5} parent=27 // pred_region
        %p184 = scmp.lt.s32.totalorder %s12, 1
        %s185 = scalar_select %p184, %s12, 1
        %s186 = smul.addr %s185, 32
        %s187 = smul.addr %s186, 8
        %s188 = scalar_lea.vmem %s0, %s187
      $region32: #{bottleneck_forward.5} parent=27 // pred_fallthru
        _
    $region28: #{bottleneck_forward.5} parent=5 // pred_fallthru
      _
    %p189 = scmp.le.s32.totalorder 1, %s12
    %p190 = scmp.lt.s32.totalorder %s12, 3
    %p191 = pnand %p189, %p190
    %p192 = pneg %p191
    // Predicated region
    $region33: #{bottleneck_forward.5} parent=5 // pred_check
      _
    $region34: #{bottleneck_forward.5} parent=5 // pred_check_branch
      %194 = sbr.rel (%p191) target = $region36
    $region35: #{bottleneck_forward.5} parent=5 // pred_region
      %s195 = ssub.s32 %s12, 1
      %p196 = scmp.lt.s32.totalorder %s17, 1
      %s197 = scalar_select %p196, %s17, 1
      %s198 = smul.addr %s197, 32
      %s199 = smul.addr %s198, 8
      %s200 = scalar_lea.vmem %s0, %s199
      %p201 = pneg %p38
      %p202 = pneg %p35
      %p203 = pneg %p59
      %p204 = pneg %p56
      %p205 = pneg %p80
      %p206 = pneg %p77
      %p207 = pneg %p101
      %p208 = pneg %p98
      %p209 = pneg %p127
      %p210 = pneg %p124
      %p211 = scmp.lt.s32.totalorder %s17, 1
      %s212 = scalar_select %p211, %s17, 1
      %s213 = smul.addr %s212, 32
      %s214 = smul.addr %s213, 8
      %s215 = scalar_lea.vmem %s4, %s214
      %p216 = pneg %p153
      %p217 = pneg %p150
      %p218 = scmp.lt.s32.totalorder %s17, 1
      %s219 = scalar_select %p218, %s17, 1
      %s220 = smul.addr %s219, 2
      %s221 = scalar_lea.vmem %s5, %s220
      %p222 = scmp.lt.s32.totalorder %s17, 1
      %s223 = scalar_select %p222, %s17, 1
      %s224 = smul.addr %s223, 32
      %s225 = smul.addr %s224, 8
      %s226 = scalar_lea.vmem %s0, %s225
      %p227 = scmp.lt.s32.totalorder %s17, 1
      %s228 = scalar_select %p227, %s17, 1
      %s229 = smul.addr %s228, 32
      %s230 = smul.addr %s229, 8
      %s231 = scalar_lea.vmem %s4, %s230
      %p232 = scmp.lt.s32.totalorder %s17, 1
      %s233 = scalar_select %p232, %s17, 1
      %s234 = smul.addr %s233, 2
      %s235 = scalar_lea.vmem %s5, %s234
      %v237 = vld [vmem:[%s226] sm:$0xff]
      %v238 = vld [vmem:[%s226 + $0x8] sm:$0xff]
      %v239 = vld [vmem:[%s226 + $0x10] sm:$0xff]
      %v240 = vld [vmem:[%s226 + $0x18] sm:$0xff]
      %v241 = vld [vmem:[%s226 + $0x20] sm:$0xff]
      %v242 = vld [vmem:[%s226 + $0x28] sm:$0xff]
      %v243 = vld [vmem:[%s226 + $0x30] sm:$0xff]
      %v244 = vld [vmem:[%s226 + $0x38] sm:$0xff]
      %v245 = vld [vmem:[%s226 + $0x40] sm:$0xff]
      %v246 = vld [vmem:[%s226 + $0x48] sm:$0xff]
      %v247 = vld [vmem:[%s226 + $0x50] sm:$0xff]
      %v248 = vld [vmem:[%s226 + $0x58] sm:$0xff]
      %v249 = vld [vmem:[%s226 + $0x60] sm:$0xff]
      %v250 = vld [vmem:[%s226 + $0x68] sm:$0xff]
      %v251 = vld [vmem:[%s226 + $0x70] sm:$0xff]
      %v252 = vld [vmem:[%s226 + $0x78] sm:$0xff]
      %v253 = vld [vmem:[%s226 + $0x80] sm:$0xff]
      %v254 = vld [vmem:[%s226 + $0x88] sm:$0xff]
      %v255 = vld [vmem:[%s226 + $0x90] sm:$0xff]
      %v256 = vld [vmem:[%s226 + $0x98] sm:$0xff]
      %v257 = vld [vmem:[%s226 + $0xa0] sm:$0xff]
      %v258 = vld [vmem:[%s226 + $0xa8] sm:$0xff]
      %v259 = vld [vmem:[%s226 + $0xb0] sm:$0xff]
      %v260 = vld [vmem:[%s226 + $0xb8] sm:$0xff]
      %v261 = vld [vmem:[%s226 + $0xc0] sm:$0xff]
      %v262 = vld [vmem:[%s226 + $0xc8] sm:$0xff]
      %v263 = vld [vmem:[%s226 + $0xd0] sm:$0xff]
      %v264 = vld [vmem:[%s226 + $0xd8] sm:$0xff]
      %v265 = vld [vmem:[%s226 + $0xe0] sm:$0xff]
      %v266 = vld [vmem:[%s226 + $0xe8] sm:$0xff]
      %v267 = vld [vmem:[%s226 + $0xf0] sm:$0xff]
      %v268 = vld [vmem:[%s226 + $0xf8] sm:$0xff]
      %v269 = vld [vmem:[%s1] sm:$0x1]
      %v271 = vperm.slane %v269, 0
      %v273 = vmul.f32 %v237, %v271
      %v274 = vmul.f32 %v238, %v271
      %v275 = vmul.f32 %v239, %v271
      %v276 = vmul.f32 %v240, %v271
      %v277 = vmul.f32 %v241, %v271
      %v278 = vmul.f32 %v242, %v271
      %v279 = vmul.f32 %v243, %v271
      %v280 = vmul.f32 %v244, %v271
      %v281 = vmul.f32 %v245, %v271
      %v282 = vmul.f32 %v246, %v271
      %v283 = vmul.f32 %v247, %v271
      %v284 = vmul.f32 %v248, %v271
      %v285 = vmul.f32 %v249, %v271
      %v286 = vmul.f32 %v250, %v271
      %v287 = vmul.f32 %v251, %v271
      %v288 = vmul.f32 %v252, %v271
      %v289 = vmul.f32 %v253, %v271
      %v290 = vmul.f32 %v254, %v271
      %v291 = vmul.f32 %v255, %v271
      %v292 = vmul.f32 %v256, %v271
      %v293 = vmul.f32 %v257, %v271
      %v294 = vmul.f32 %v258, %v271
      %v295 = vmul.f32 %v259, %v271
      %v296 = vmul.f32 %v260, %v271
      %v297 = vmul.f32 %v261, %v271
      %v298 = vmul.f32 %v262, %v271
      %v299 = vmul.f32 %v263, %v271
      %v300 = vmul.f32 %v264, %v271
      %v301 = vmul.f32 %v265, %v271
      %v302 = vmul.f32 %v266, %v271
      %v303 = vmul.f32 %v267, %v271
      %v304 = vmul.f32 %v268, %v271
      %v305 = vld [vmem:[%s2] sm:$0x1]
      %v307 = vperm.slane %v305, 0
      %v309 = vadd.f32 %v273, %v307
      %v310 = vadd.f32 %v274, %v307
      %v311 = vadd.f32 %v275, %v307
      %v312 = vadd.f32 %v276, %v307
      %v313 = vadd.f32 %v277, %v307
      %v314 = vadd.f32 %v278, %v307
      %v315 = vadd.f32 %v279, %v307
      %v316 = vadd.f32 %v280, %v307
      %v317 = vadd.f32 %v281, %v307
      %v318 = vadd.f32 %v282, %v307
      %v319 = vadd.f32 %v283, %v307
      %v320 = vadd.f32 %v284, %v307
      %v321 = vadd.f32 %v285, %v307
      %v322 = vadd.f32 %v286, %v307
      %v323 = vadd.f32 %v287, %v307
      %v324 = vadd.f32 %v288, %v307
      %v325 = vadd.f32 %v289, %v307
      %v326 = vadd.f32 %v290, %v307
      %v327 = vadd.f32 %v291, %v307
      %v328 = vadd.f32 %v292, %v307
      %v329 = vadd.f32 %v293, %v307
      %v330 = vadd.f32 %v294, %v307
      %v331 = vadd.f32 %v295, %v307
      %v332 = vadd.f32 %v296, %v307
      %v333 = vadd.f32 %v297, %v307
      %v334 = vadd.f32 %v298, %v307
      %v335 = vadd.f32 %v299, %v307
      %v336 = vadd.f32 %v300, %v307
      %v337 = vadd.f32 %v301, %v307
      %v338 = vadd.f32 %v302, %v307
      %v339 = vadd.f32 %v303, %v307
      %v340 = vadd.f32 %v304, %v307
      %v341 = vmax.f32 %v309, 0.0
      %v342 = vmax.f32 %v310, 0.0
      %v343 = vmax.f32 %v311, 0.0
      %v344 = vmax.f32 %v312, 0.0
      %v345 = vmax.f32 %v313, 0.0
      %v346 = vmax.f32 %v314, 0.0
      %v347 = vmax.f32 %v315, 0.0
      %v348 = vmax.f32 %v316, 0.0
      %v349 = vmax.f32 %v317, 0.0
      %v350 = vmax.f32 %v318, 0.0
      %v351 = vmax.f32 %v319, 0.0
      %v352 = vmax.f32 %v320, 0.0
      %v353 = vmax.f32 %v321, 0.0
      %v354 = vmax.f32 %v322, 0.0
      %v355 = vmax.f32 %v323, 0.0
      %v356 = vmax.f32 %v324, 0.0
      %v357 = vmax.f32 %v325, 0.0
      %v358 = vmax.f32 %v326, 0.0
      %v359 = vmax.f32 %v327, 0.0
      %v360 = vmax.f32 %v328, 0.0
      %v361 = vmax.f32 %v329, 0.0
      %v362 = vmax.f32 %v330, 0.0
      %v363 = vmax.f32 %v331, 0.0
      %v364 = vmax.f32 %v332, 0.0
      %v365 = vmax.f32 %v333, 0.0
      %v366 = vmax.f32 %v334, 0.0
      %v367 = vmax.f32 %v335, 0.0
      %v368 = vmax.f32 %v336, 0.0
      %v369 = vmax.f32 %v337, 0.0
      %v370 = vmax.f32 %v338, 0.0
      %v371 = vmax.f32 %v339, 0.0
      %v372 = vmax.f32 %v340, 0.0
      %vm373 = vcmask 31744
      %374 = vst.msk [vmem:[#allocation2] sm:$0xff] %vm373, 0.0
      %375 = vst.msk [vmem:[#allocation2 + $0x8] sm:$0xff] %vm373, 0.0
      %vm376 = vcmask 25600
      %377 = vst.msk [vmem:[#allocation2 + $0x10] sm:$0x3] %vm376, 0.0
      %378 = vst.msk [vmem:[#allocation2 + $0x18] sm:$0xff] %vm373, 0.0
      %379 = vst.msk [vmem:[#allocation2 + $0x20] sm:$0xff] %vm373, 0.0
      %380 = vst.msk [vmem:[#allocation2 + $0x28] sm:$0x3] %vm376, 0.0
      %381 = vst.msk [vmem:[#allocation2 + $0x30] sm:$0xff] %vm373, 0.0
      %382 = vst.msk [vmem:[#allocation2 + $0x38] sm:$0xff] %vm373, 0.0
      %383 = vst.msk [vmem:[#allocation2 + $0x40] sm:$0x3] %vm376, 0.0
      %384 = vst.msk [vmem:[#allocation2 + $0x48] sm:$0xff] %vm373, 0.0
      %385 = vst.msk [vmem:[#allocation2 + $0x50] sm:$0xff] %vm373, 0.0
      %386 = vst.msk [vmem:[#allocation2 + $0x58] sm:$0x3] %vm376, 0.0
      %387 = vst.msk [vmem:[#allocation2 + $0x60] sm:$0xff] %vm373, 0.0
      %388 = vst.msk [vmem:[#allocation2 + $0x68] sm:$0xff] %vm373, 0.0
      %389 = vst.msk [vmem:[#allocation2 + $0x70] sm:$0x3] %vm376, 0.0
      %390 = vst.msk [vmem:[#allocation2 + $0x78] sm:$0xff] %vm373, 0.0
      %391 = vst.msk [vmem:[#allocation2 + $0x80] sm:$0xff] %vm373, 0.0
      %392 = vst.msk [vmem:[#allocation2 + $0x88] sm:$0x3] %vm376, 0.0
      %393 = vst.msk [vmem:[#allocation2 + $0x90] sm:$0xff] %vm373, 0.0
      %394 = vst.msk [vmem:[#allocation2 + $0x98] sm:$0xff] %vm373, 0.0
      %395 = vst.msk [vmem:[#allocation2 + $0xa0] sm:$0x3] %vm376, 0.0
      %396 = vst.msk [vmem:[#allocation2 + $0xa8] sm:$0xff] %vm373, 0.0
      %397 = vst.msk [vmem:[#allocation2 + $0xb0] sm:$0xff] %vm373, 0.0
      %398 = vst.msk [vmem:[#allocation2 + $0xb8] sm:$0x3] %vm376, 0.0
      %399 = vst.msk [vmem:[#allocation2 + $0xc0] sm:$0xff] %vm373, 0.0
      %400 = vst.msk [vmem:[#allocation2 + $0xc8] sm:$0xff] %vm373, 0.0
      %401 = vst.msk [vmem:[#allocation2 + $0xd0] sm:$0x3] %vm376, 0.0
      %402 = vst.msk [vmem:[#allocation2 + $0xd8] sm:$0xff] %vm373, 0.0
      %403 = vst.msk [vmem:[#allocation2 + $0xe0] sm:$0xff] %vm373, 0.0
      %404 = vst.msk [vmem:[#allocation2 + $0xe8] sm:$0x3] %vm376, 0.0
      %405 = vst.msk [vmem:[#allocation2 + $0xf0] sm:$0xff] %vm373, 0.0
      %406 = vst.msk [vmem:[#allocation2 + $0xf8] sm:$0xff] %vm373, 0.0
      %407 = vst.msk [vmem:[#allocation2 + $0x100] sm:$0x3] %vm376, 0.0
      %408 = vst.msk [vmem:[#allocation2 + $0x108] sm:$0xff] %vm373, 0.0
      %409 = vst.msk [vmem:[#allocation2 + $0x110] sm:$0xff] %vm373, 0.0
      %410 = vst.msk [vmem:[#allocation2 + $0x118] sm:$0x3] %vm376, 0.0
      %411 = vst.msk [vmem:[#allocation2 + $0x120] sm:$0xff] %vm373, 0.0
      %412 = vst.msk [vmem:[#allocation2 + $0x128] sm:$0xff] %vm373, 0.0
      %413 = vst.msk [vmem:[#allocation2 + $0x130] sm:$0x3] %vm376, 0.0
      %414 = vst.msk [vmem:[#allocation2 + $0x138] sm:$0xff] %vm373, 0.0
      %415 = vst.msk [vmem:[#allocation2 + $0x140] sm:$0xff] %vm373, 0.0
      %416 = vst.msk [vmem:[#allocation2 + $0x148] sm:$0x3] %vm376, 0.0
      %417 = vst.msk [vmem:[#allocation2 + $0x150] sm:$0xff] %vm373, 0.0
      %418 = vst.msk [vmem:[#allocation2 + $0x158] sm:$0xff] %vm373, 0.0
      %419 = vst.msk [vmem:[#allocation2 + $0x160] sm:$0x3] %vm376, 0.0
      %420 = vst.msk [vmem:[#allocation2 + $0x168] sm:$0xff] %vm373, 0.0
      %421 = vst.msk [vmem:[#allocation2 + $0x170] sm:$0xff] %vm373, 0.0
      %422 = vst.msk [vmem:[#allocation2 + $0x178] sm:$0x3] %vm376, 0.0
      %423 = vst.msk [vmem:[#allocation2 + $0x180] sm:$0xff] %vm373, 0.0
      %424 = vst.msk [vmem:[#allocation2 + $0x188] sm:$0xff] %vm373, 0.0
      %425 = vst.msk [vmem:[#allocation2 + $0x190] sm:$0x3] %vm376, 0.0
      %426 = vst.msk [vmem:[#allocation2 + $0x198] sm:$0xff] %vm373, 0.0
      %427 = vst.msk [vmem:[#allocation2 + $0x1a0] sm:$0xff] %vm373, 0.0
      %428 = vst.msk [vmem:[#allocation2 + $0x1a8] sm:$0x3] %vm376, 0.0
      %s429 = scalar_lea.vmem [#allocation2], 24
      %430 = vst.msk [vmem:[%s429 + $0x1] sm:$0xff] %vm373, %v341
      %431 = vst.msk [vmem:[%s429 + $0x9] sm:$0xff] %vm373, %v342
      %432 = vst.msk [vmem:[%s429 + $0x19] sm:$0xff] %vm373, %v343
      %433 = vst.msk [vmem:[%s429 + $0x21] sm:$0xff] %vm373, %v344
      %434 = vst.msk [vmem:[%s429 + $0x31] sm:$0xff] %vm373, %v345
      %435 = vst.msk [vmem:[%s429 + $0x39] sm:$0xff] %vm373, %v346
      %436 = vst.msk [vmem:[%s429 + $0x49] sm:$0xff] %vm373, %v347
      %437 = vst.msk [vmem:[%s429 + $0x51] sm:$0xff] %vm373, %v348
      %438 = vst.msk [vmem:[%s429 + $0x61] sm:$0xff] %vm373, %v349
      %439 = vst.msk [vmem:[%s429 + $0x69] sm:$0xff] %vm373, %v350
      %440 = vst.msk [vmem:[%s429 + $0x79] sm:$0xff] %vm373, %v351
      %441 = vst.msk [vmem:[%s429 + $0x81] sm:$0xff] %vm373, %v352
      %442 = vst.msk [vmem:[%s429 + $0x91] sm:$0xff] %vm373, %v353
      %443 = vst.msk [vmem:[%s429 + $0x99] sm:$0xff] %vm373, %v354
      %444 = vst.msk [vmem:[%s429 + $0xa9] sm:$0xff] %vm373, %v355
      %445 = vst.msk [vmem:[%s429 + $0xb1] sm:$0xff] %vm373, %v356
      %446 = vst.msk [vmem:[%s429 + $0xc1] sm:$0xff] %vm373, %v357
      %447 = vst.msk [vmem:[%s429 + $0xc9] sm:$0xff] %vm373, %v358
      %448 = vst.msk [vmem:[%s429 + $0xd9] sm:$0xff] %vm373, %v359
      %449 = vst.msk [vmem:[%s429 + $0xe1] sm:$0xff] %vm373, %v360
      %450 = vst.msk [vmem:[%s429 + $0xf1] sm:$0xff] %vm373, %v361
      %451 = vst.msk [vmem:[%s429 + $0xf9] sm:$0xff] %vm373, %v362
      %452 = vst.msk [vmem:[%s429 + $0x109] sm:$0xff] %vm373, %v363
      %453 = vst.msk [vmem:[%s429 + $0x111] sm:$0xff] %vm373, %v364
      %454 = vst.msk [vmem:[%s429 + $0x121] sm:$0xff] %vm373, %v365
      %455 = vst.msk [vmem:[%s429 + $0x129] sm:$0xff] %vm373, %v366
      %456 = vst.msk [vmem:[%s429 + $0x139] sm:$0xff] %vm373, %v367
      %457 = vst.msk [vmem:[%s429 + $0x141] sm:$0xff] %vm373, %v368
      %458 = vst.msk [vmem:[%s429 + $0x151] sm:$0xff] %vm373, %v369
      %459 = vst.msk [vmem:[%s429 + $0x159] sm:$0xff] %vm373, %v370
      %460 = vst.msk [vmem:[%s429 + $0x169] sm:$0xff] %vm373, %v371
      %461 = vst.msk [vmem:[%s429 + $0x171] sm:$0xff] %vm373, %v372
      %v462 = vld [vmem:[#allocation2] sm:$0xff]
      %v463 = vld [vmem:[#allocation2 + $0x8] sm:$0xff]
      %v464 = vld [vmem:[#allocation2 + $0x18] sm:$0xff]
      %v465 = vld [vmem:[#allocation2 + $0x20] sm:$0xff]
      %v466 = vld [vmem:[#allocation2 + $0x30] sm:$0xff]
      %v467 = vld [vmem:[#allocation2 + $0x38] sm:$0xff]
      %v468 = vld [vmem:[#allocation2 + $0x48] sm:$0xff]
      %v469 = vld [vmem:[#allocation2 + $0x50] sm:$0xff]
      %v470 = vld [vmem:[#allocation2 + $0x60] sm:$0xff]
      %v471 = vld [vmem:[#allocation2 + $0x68] sm:$0xff]
      %v472 = vld [vmem:[#allocation2 + $0x78] sm:$0xff]
      %v473 = vld [vmem:[#allocation2 + $0x80] sm:$0xff]
      %v474 = vld [vmem:[#allocation2 + $0x90] sm:$0xff]
      %v475 = vld [vmem:[#allocation2 + $0x98] sm:$0xff]
      %v476 = vld [vmem:[#allocation2 + $0xa8] sm:$0xff]
      %v477 = vld [vmem:[#allocation2 + $0xb0] sm:$0xff]
      %v478 = vld [vmem:[#allocation2 + $0xc0] sm:$0xff]
      %v479 = vld [vmem:[#allocation2 + $0xc8] sm:$0xff]
      %v480 = vld [vmem:[#allocation2 + $0xd8] sm:$0xff]
      %v481 = vld [vmem:[#allocation2 + $0xe0] sm:$0xff]
      %v482 = vld [vmem:[#allocation2 + $0xf0] sm:$0xff]
      %v483 = vld [vmem:[#allocation2 + $0xf8] sm:$0xff]
      %v484 = vld [vmem:[#allocation2 + $0x108] sm:$0xff]
      %v485 = vld [vmem:[#allocation2 + $0x110] sm:$0xff]
      %v486 = vld [vmem:[#allocation2 + $0x120] sm:$0xff]
      %v487 = vld [vmem:[#allocation2 + $0x128] sm:$0xff]
      %v488 = vld [vmem:[#allocation2 + $0x138] sm:$0xff]
      %v489 = vld [vmem:[#allocation2 + $0x140] sm:$0xff]
      %v490 = vld [vmem:[#allocation2 + $0x150] sm:$0xff]
      %v491 = vld [vmem:[#allocation2 + $0x158] sm:$0xff]
      %v492 = vld [vmem:[#allocation2 + $0x168] sm:$0xff]
      %v493 = vld [vmem:[#allocation2 + $0x170] sm:$0xff]
      %v494 = vld [vmem:[#allocation2 + $0x1] sm:$0xff]
      %v495 = vld [vmem:[#allocation2 + $0x9] sm:$0xff]
      %v496 = vld [vmem:[#allocation2 + $0x19] sm:$0xff]
      %v497 = vld [vmem:[#allocation2 + $0x21] sm:$0xff]
      %v498 = vld [vmem:[#allocation2 + $0x31] sm:$0xff]
      %v499 = vld [vmem:[#allocation2 + $0x39] sm:$0xff]
      %v500 = vld [vmem:[#allocation2 + $0x49] sm:$0xff]
      %v501 = vld [vmem:[#allocation2 + $0x51] sm:$0xff]
      %v502 = vld [vmem:[#allocation2 + $0x61] sm:$0xff]
      %v503 = vld [vmem:[#allocation2 + $0x69] sm:$0xff]
      %v504 = vld [vmem:[#allocation2 + $0x79] sm:$0xff]
      %v505 = vld [vmem:[#allocation2 + $0x81] sm:$0xff]
      %v506 = vld [vmem:[#allocation2 + $0x91] sm:$0xff]
      %v507 = vld [vmem:[#allocation2 + $0x99] sm:$0xff]
      %v508 = vld [vmem:[#allocation2 + $0xa9] sm:$0xff]
      %v509 = vld [vmem:[#allocation2 + $0xb1] sm:$0xff]
      %v510 = vld [vmem:[#allocation2 + $0xc1] sm:$0xff]
      %v511 = vld [vmem:[#allocation2 + $0xc9] sm:$0xff]
      %v512 = vld [vmem:[#allocation2 + $0xd9] sm:$0xff]
      %v513 = vld [vmem:[#allocation2 + $0xe1] sm:$0xff]
      %v514 = vld [vmem:[#allocation2 + $0xf1] sm:$0xff]
      %v515 = vld [vmem:[#allocation2 + $0xf9] sm:$0xff]
      %v516 = vld [vmem:[#allocation2 + $0x109] sm:$0xff]
      %v517 = vld [vmem:[#allocation2 + $0x111] sm:$0xff]
      %v518 = vld [vmem:[#allocation2 + $0x121] sm:$0xff]
      %v519 = vld [vmem:[#allocation2 + $0x129] sm:$0xff]
      %v520 = vld [vmem:[#allocation2 + $0x139] sm:$0xff]
      %v521 = vld [vmem:[#allocation2 + $0x141] sm:$0xff]
      %v522 = vld [vmem:[#allocation2 + $0x151] sm:$0xff]
      %v523 = vld [vmem:[#allocation2 + $0x159] sm:$0xff]
      %v524 = vld [vmem:[#allocation2 + $0x169] sm:$0xff]
      %v525 = vld [vmem:[#allocation2 + $0x171] sm:$0xff]
      %v526 = vld [vmem:[#allocation2 + $0x2] sm:$0xff]
      %v527 = vld [vmem:[#allocation2 + $0xa] sm:$0xff]
      %v528 = vld [vmem:[#allocation2 + $0x1a] sm:$0xff]
      %v529 = vld [vmem:[#allocation2 + $0x22] sm:$0xff]
      %v530 = vld [vmem:[#allocation2 + $0x32] sm:$0xff]
      %v531 = vld [vmem:[#allocation2 + $0x3a] sm:$0xff]
      %v532 = vld [vmem:[#allocation2 + $0x4a] sm:$0xff]
      %v533 = vld [vmem:[#allocation2 + $0x52] sm:$0xff]
      %v534 = vld [vmem:[#allocation2 + $0x62] sm:$0xff]
      %v535 = vld [vmem:[#allocation2 + $0x6a] sm:$0xff]
      %v536 = vld [vmem:[#allocation2 + $0x7a] sm:$0xff]
      %v537 = vld [vmem:[#allocation2 + $0x82] sm:$0xff]
      %v538 = vld [vmem:[#allocation2 + $0x92] sm:$0xff]
      %v539 = vld [vmem:[#allocation2 + $0x9a] sm:$0xff]
      %v540 = vld [vmem:[#allocation2 + $0xaa] sm:$0xff]
      %v541 = vld [vmem:[#allocation2 + $0xb2] sm:$0xff]
      %v542 = vld [vmem:[#allocation2 + $0xc2] sm:$0xff]
      %v543 = vld [vmem:[#allocation2 + $0xca] sm:$0xff]
      %v544 = vld [vmem:[#allocation2 + $0xda] sm:$0xff]
      %v545 = vld [vmem:[#allocation2 + $0xe2] sm:$0xff]
      %v546 = vld [vmem:[#allocation2 + $0xf2] sm:$0xff]
      %v547 = vld [vmem:[#allocation2 + $0xfa] sm:$0xff]
      %v548 = vld [vmem:[#allocation2 + $0x10a] sm:$0xff]
      %v549 = vld [vmem:[#allocation2 + $0x112] sm:$0xff]
      %v550 = vld [vmem:[#allocation2 + $0x122] sm:$0xff]
      %v551 = vld [vmem:[#allocation2 + $0x12a] sm:$0xff]
      %v552 = vld [vmem:[#allocation2 + $0x13a] sm:$0xff]
      %v553 = vld [vmem:[#allocation2 + $0x142] sm:$0xff]
      %v554 = vld [vmem:[#allocation2 + $0x152] sm:$0xff]
      %v555 = vld [vmem:[#allocation2 + $0x15a] sm:$0xff]
      %v556 = vld [vmem:[#allocation2 + $0x16a] sm:$0xff]
      %v557 = vld [vmem:[#allocation2 + $0x172] sm:$0xff]
      %v558 = vld [vmem:[%s429] sm:$0xff]
      %v559 = vld [vmem:[%s429 + $0x8] sm:$0xff]
      %v560 = vld [vmem:[%s429 + $0x18] sm:$0xff]
      %v561 = vld [vmem:[%s429 + $0x20] sm:$0xff]
      %v562 = vld [vmem:[%s429 + $0x30] sm:$0xff]
      %v563 = vld [vmem:[%s429 + $0x38] sm:$0xff]
      %v564 = vld [vmem:[%s429 + $0x48] sm:$0xff]
      %v565 = vld [vmem:[%s429 + $0x50] sm:$0xff]
      %v566 = vld [vmem:[%s429 + $0x60] sm:$0xff]
      %v567 = vld [vmem:[%s429 + $0x68] sm:$0xff]
      %v568 = vld [vmem:[%s429 + $0x78] sm:$0xff]
      %v569 = vld [vmem:[%s429 + $0x80] sm:$0xff]
      %v570 = vld [vmem:[%s429 + $0x90] sm:$0xff]
      %v571 = vld [vmem:[%s429 + $0x98] sm:$0xff]
      %v572 = vld [vmem:[%s429 + $0xa8] sm:$0xff]
      %v573 = vld [vmem:[%s429 + $0xb0] sm:$0xff]
      %v574 = vld [vmem:[%s429 + $0xc0] sm:$0xff]
      %v575 = vld [vmem:[%s429 + $0xc8] sm:$0xff]
      %v576 = vld [vmem:[%s429 + $0xd8] sm:$0xff]
      %v577 = vld [vmem:[%s429 + $0xe0] sm:$0xff]
      %v578 = vld [vmem:[%s429 + $0xf0] sm:$0xff]
      %v579 = vld [vmem:[%s429 + $0xf8] sm:$0xff]
      %v580 = vld [vmem:[%s429 + $0x108] sm:$0xff]
      %v581 = vld [vmem:[%s429 + $0x110] sm:$0xff]
      %v582 = vld [vmem:[%s429 + $0x120] sm:$0xff]
      %v583 = vld [vmem:[%s429 + $0x128] sm:$0xff]
      %v584 = vld [vmem:[%s429 + $0x138] sm:$0xff]
      %v585 = vld [vmem:[%s429 + $0x140] sm:$0xff]
      %v586 = vld [vmem:[%s429 + $0x150] sm:$0xff]
      %v587 = vld [vmem:[%s429 + $0x158] sm:$0xff]
      %v588 = vld [vmem:[%s429 + $0x168] sm:$0xff]
      %v589 = vld [vmem:[%s429 + $0x170] sm:$0xff]
      %v590 = vld [vmem:[%s429 + $0x1] sm:$0xff]
      %v591 = vld [vmem:[%s429 + $0x9] sm:$0xff]
      %v592 = vld [vmem:[%s429 + $0x19] sm:$0xff]
      %v593 = vld [vmem:[%s429 + $0x21] sm:$0xff]
      %v594 = vld [vmem:[%s429 + $0x31] sm:$0xff]
      %v595 = vld [vmem:[%s429 + $0x39] sm:$0xff]
      %v596 = vld [vmem:[%s429 + $0x49] sm:$0xff]
      %v597 = vld [vmem:[%s429 + $0x51] sm:$0xff]
      %v598 = vld [vmem:[%s429 + $0x61] sm:$0xff]
      %v599 = vld [vmem:[%s429 + $0x69] sm:$0xff]
      %v600 = vld [vmem:[%s429 + $0x79] sm:$0xff]
      %v601 = vld [vmem:[%s429 + $0x81] sm:$0xff]
      %v602 = vld [vmem:[%s429 + $0x91] sm:$0xff]
      %v603 = vld [vmem:[%s429 + $0x99] sm:$0xff]
      %v604 = vld [vmem:[%s429 + $0xa9] sm:$0xff]
      %v605 = vld [vmem:[%s429 + $0xb1] sm:$0xff]
      %v606 = vld [vmem:[%s429 + $0xc1] sm:$0xff]
      %v607 = vld [vmem:[%s429 + $0xc9] sm:$0xff]
      %v608 = vld [vmem:[%s429 + $0xd9] sm:$0xff]
      %v609 = vld [vmem:[%s429 + $0xe1] sm:$0xff]
      %v610 = vld [vmem:[%s429 + $0xf1] sm:$0xff]
      %v611 = vld [vmem:[%s429 + $0xf9] sm:$0xff]
      %v612 = vld [vmem:[%s429 + $0x109] sm:$0xff]
      %v613 = vld [vmem:[%s429 + $0x111] sm:$0xff]
      %v614 = vld [vmem:[%s429 + $0x121] sm:$0xff]
      %v615 = vld [vmem:[%s429 + $0x129] sm:$0xff]
      %v616 = vld [vmem:[%s429 + $0x139] sm:$0xff]
      %v617 = vld [vmem:[%s429 + $0x141] sm:$0xff]
      %v618 = vld [vmem:[%s429 + $0x151] sm:$0xff]
      %v619 = vld [vmem:[%s429 + $0x159] sm:$0xff]
      %v620 = vld [vmem:[%s429 + $0x169] sm:$0xff]
      %v621 = vld [vmem:[%s429 + $0x171] sm:$0xff]
      %v622 = vld [vmem:[%s429 + $0x2] sm:$0xff]
      %v623 = vld [vmem:[%s429 + $0xa] sm:$0xff]
      %v624 = vld [vmem:[%s429 + $0x1a] sm:$0xff]
      %v625 = vld [vmem:[%s429 + $0x22] sm:$0xff]
      %v626 = vld [vmem:[%s429 + $0x32] sm:$0xff]
      %v627 = vld [vmem:[%s429 + $0x3a] sm:$0xff]
      %v628 = vld [vmem:[%s429 + $0x4a] sm:$0xff]
      %v629 = vld [vmem:[%s429 + $0x52] sm:$0xff]
      %v630 = vld [vmem:[%s429 + $0x62] sm:$0xff]
      %v631 = vld [vmem:[%s429 + $0x6a] sm:$0xff]
      %v632 = vld [vmem:[%s429 + $0x7a] sm:$0xff]
      %v633 = vld [vmem:[%s429 + $0x82] sm:$0xff]
      %v634 = vld [vmem:[%s429 + $0x92] sm:$0xff]
      %v635 = vld [vmem:[%s429 + $0x9a] sm:$0xff]
      %v636 = vld [vmem:[%s429 + $0xaa] sm:$0xff]
      %v637 = vld [vmem:[%s429 + $0xb2] sm:$0xff]
      %v638 = vld [vmem:[%s429 + $0xc2] sm:$0xff]
      %v639 = vld [vmem:[%s429 + $0xca] sm:$0xff]
      %v640 = vld [vmem:[%s429 + $0xda] sm:$0xff]
      %v641 = vld [vmem:[%s429 + $0xe2] sm:$0xff]
      %v642 = vld [vmem:[%s429 + $0xf2] sm:$0xff]
      %v643 = vld [vmem:[%s429 + $0xfa] sm:$0xff]
      %v644 = vld [vmem:[%s429 + $0x10a] sm:$0xff]
      %v645 = vld [vmem:[%s429 + $0x112] sm:$0xff]
      %v646 = vld [vmem:[%s429 + $0x122] sm:$0xff]
      %v647 = vld [vmem:[%s429 + $0x12a] sm:$0xff]
      %v648 = vld [vmem:[%s429 + $0x13a] sm:$0xff]
      %v649 = vld [vmem:[%s429 + $0x142] sm:$0xff]
      %v650 = vld [vmem:[%s429 + $0x152] sm:$0xff]
      %v651 = vld [vmem:[%s429 + $0x15a] sm:$0xff]
      %v652 = vld [vmem:[%s429 + $0x16a] sm:$0xff]
      %v653 = vld [vmem:[%s429 + $0x172] sm:$0xff]
      %s654 = scalar_lea.vmem [#allocation2], 48
      %v655 = vld [vmem:[%s654] sm:$0xff]
      %v656 = vld [vmem:[%s654 + $0x8] sm:$0xff]
      %v657 = vld [vmem:[%s654 + $0x18] sm:$0xff]
      %v658 = vld [vmem:[%s654 + $0x20] sm:$0xff]
      %v659 = vld [vmem:[%s654 + $0x30] sm:$0xff]
      %v660 = vld [vmem:[%s654 + $0x38] sm:$0xff]
      %v661 = vld [vmem:[%s654 + $0x48] sm:$0xff]
      %v662 = vld [vmem:[%s654 + $0x50] sm:$0xff]
      %v663 = vld [vmem:[%s654 + $0x60] sm:$0xff]
      %v664 = vld [vmem:[%s654 + $0x68] sm:$0xff]
      %v665 = vld [vmem:[%s654 + $0x78] sm:$0xff]
      %v666 = vld [vmem:[%s654 + $0x80] sm:$0xff]
      %v667 = vld [vmem:[%s654 + $0x90] sm:$0xff]
      %v668 = vld [vmem:[%s654 + $0x98] sm:$0xff]
      %v669 = vld [vmem:[%s654 + $0xa8] sm:$0xff]
      %v670 = vld [vmem:[%s654 + $0xb0] sm:$0xff]
      %v671 = vld [vmem:[%s654 + $0xc0] sm:$0xff]
      %v672 = vld [vmem:[%s654 + $0xc8] sm:$0xff]
      %v673 = vld [vmem:[%s654 + $0xd8] sm:$0xff]
      %v674 = vld [vmem:[%s654 + $0xe0] sm:$0xff]
      %v675 = vld [vmem:[%s654 + $0xf0] sm:$0xff]
      %v676 = vld [vmem:[%s654 + $0xf8] sm:$0xff]
      %v677 = vld [vmem:[%s654 + $0x108] sm:$0xff]
      %v678 = vld [vmem:[%s654 + $0x110] sm:$0xff]
      %v679 = vld [vmem:[%s654 + $0x120] sm:$0xff]
      %v680 = vld [vmem:[%s654 + $0x128] sm:$0xff]
      %v681 = vld [vmem:[%s654 + $0x138] sm:$0xff]
      %v682 = vld [vmem:[%s654 + $0x140] sm:$0xff]
      %v683 = vld [vmem:[%s654 + $0x150] sm:$0xff]
      %v684 = vld [vmem:[%s654 + $0x158] sm:$0xff]
      %v685 = vld [vmem:[%s654 + $0x168] sm:$0xff]
      %v686 = vld [vmem:[%s654 + $0x170] sm:$0xff]
      %v687 = vld [vmem:[%s654 + $0x1] sm:$0xff]
      %v688 = vld [vmem:[%s654 + $0x9] sm:$0xff]
      %v689 = vld [vmem:[%s654 + $0x19] sm:$0xff]
      %v690 = vld [vmem:[%s654 + $0x21] sm:$0xff]
      %v691 = vld [vmem:[%s654 + $0x31] sm:$0xff]
      %v692 = vld [vmem:[%s654 + $0x39] sm:$0xff]
      %v693 = vld [vmem:[%s654 + $0x49] sm:$0xff]
      %v694 = vld [vmem:[%s654 + $0x51] sm:$0xff]
      %v695 = vld [vmem:[%s654 + $0x61] sm:$0xff]
      %v696 = vld [vmem:[%s654 + $0x69] sm:$0xff]
      %v697 = vld [vmem:[%s654 + $0x79] sm:$0xff]
      %v698 = vld [vmem:[%s654 + $0x81] sm:$0xff]
      %v699 = vld [vmem:[%s654 + $0x91] sm:$0xff]
      %v700 = vld [vmem:[%s654 + $0x99] sm:$0xff]
      %v701 = vld [vmem:[%s654 + $0xa9] sm:$0xff]
      %v702 = vld [vmem:[%s654 + $0xb1] sm:$0xff]
      %v703 = vld [vmem:[%s654 + $0xc1] sm:$0xff]
      %v704 = vld [vmem:[%s654 + $0xc9] sm:$0xff]
      %v705 = vld [vmem:[%s654 + $0xd9] sm:$0xff]
      %v706 = vld [vmem:[%s654 + $0xe1] sm:$0xff]
      %v707 = vld [vmem:[%s654 + $0xf1] sm:$0xff]
      %v708 = vld [vmem:[%s654 + $0xf9] sm:$0xff]
      %v709 = vld [vmem:[%s654 + $0x109] sm:$0xff]
      %v710 = vld [vmem:[%s654 + $0x111] sm:$0xff]
      %v711 = vld [vmem:[%s654 + $0x121] sm:$0xff]
      %v712 = vld [vmem:[%s654 + $0x129] sm:$0xff]
      %v713 = vld [vmem:[%s654 + $0x139] sm:$0xff]
      %v714 = vld [vmem:[%s654 + $0x141] sm:$0xff]
      %v715 = vld [vmem:[%s654 + $0x151] sm:$0xff]
      %v716 = vld [vmem:[%s654 + $0x159] sm:$0xff]
      %v717 = vld [vmem:[%s654 + $0x169] sm:$0xff]
      %v718 = vld [vmem:[%s654 + $0x171] sm:$0xff]
      %v719 = vld [vmem:[%s654 + $0x2] sm:$0xff]
      %v720 = vld [vmem:[%s654 + $0xa] sm:$0xff]
      %v721 = vld [vmem:[%s654 + $0x1a] sm:$0xff]
      %v722 = vld [vmem:[%s654 + $0x22] sm:$0xff]
      %v723 = vld [vmem:[%s654 + $0x32] sm:$0xff]
      %v724 = vld [vmem:[%s654 + $0x3a] sm:$0xff]
      %v725 = vld [vmem:[%s654 + $0x4a] sm:$0xff]
      %v726 = vld [vmem:[%s654 + $0x52] sm:$0xff]
      %v727 = vld [vmem:[%s654 + $0x62] sm:$0xff]
      %v728 = vld [vmem:[%s654 + $0x6a] sm:$0xff]
      %v729 = vld [vmem:[%s654 + $0x7a] sm:$0xff]
      %v730 = vld [vmem:[%s654 + $0x82] sm:$0xff]
      %v731 = vld [vmem:[%s654 + $0x92] sm:$0xff]
      %v732 = vld [vmem:[%s654 + $0x9a] sm:$0xff]
      %v733 = vld [vmem:[%s654 + $0xaa] sm:$0xff]
      %v734 = vld [vmem:[%s654 + $0xb2] sm:$0xff]
      %v735 = vld [vmem:[%s654 + $0xc2] sm:$0xff]
      %v736 = vld [vmem:[%s654 + $0xca] sm:$0xff]
      %v737 = vld [vmem:[%s654 + $0xda] sm:$0xff]
      %v738 = vld [vmem:[%s654 + $0xe2] sm:$0xff]
      %v739 = vld [vmem:[%s654 + $0xf2] sm:$0xff]
      %v740 = vld [vmem:[%s654 + $0xfa] sm:$0xff]
      %v741 = vld [vmem:[%s654 + $0x10a] sm:$0xff]
      %v742 = vld [vmem:[%s654 + $0x112] sm:$0xff]
      %v743 = vld [vmem:[%s654 + $0x122] sm:$0xff]
      %v744 = vld [vmem:[%s654 + $0x12a] sm:$0xff]
      %v745 = vld [vmem:[%s654 + $0x13a] sm:$0xff]
      %v746 = vld [vmem:[%s654 + $0x142] sm:$0xff]
      %v747 = vld [vmem:[%s654 + $0x152] sm:$0xff]
      %v748 = vld [vmem:[%s654 + $0x15a] sm:$0xff]
      %v749 = vld [vmem:[%s654 + $0x16a] sm:$0xff]
      %v750 = vld [vmem:[%s654 + $0x172] sm:$0xff]
      %783 = vrot.lane.b32.xlu0 %v494, 4
      %v784 = vpop.permute.xlu0 %783
      %785 = vrot.lane.b32.xlu0 %v495, 4
      %v786 = vpop.permute.xlu0 %785
      %787 = vrot.lane.b32.xlu0 %v496, 4
      %v788 = vpop.permute.xlu0 %787
      %789 = vrot.lane.b32.xlu0 %v497, 4
      %v790 = vpop.permute.xlu0 %789
      %791 = vrot.lane.b32.xlu0 %v498, 4
      %v792 = vpop.permute.xlu0 %791
      %793 = vrot.lane.b32.xlu0 %v499, 4
      %v794 = vpop.permute.xlu0 %793
      %795 = vrot.lane.b32.xlu0 %v500, 4
      %v796 = vpop.permute.xlu0 %795
      %797 = vrot.lane.b32.xlu0 %v501, 4
      %v798 = vpop.permute.xlu0 %797
      %799 = vrot.lane.b32.xlu0 %v502, 4
      %v800 = vpop.permute.xlu0 %799
      %801 = vrot.lane.b32.xlu0 %v503, 4
      %v802 = vpop.permute.xlu0 %801
      %803 = vrot.lane.b32.xlu0 %v504, 4
      %v804 = vpop.permute.xlu0 %803
      %805 = vrot.lane.b32.xlu0 %v505, 4
      %v806 = vpop.permute.xlu0 %805
      %807 = vrot.lane.b32.xlu0 %v506, 4
      %v808 = vpop.permute.xlu0 %807
      %809 = vrot.lane.b32.xlu0 %v507, 4
      %v810 = vpop.permute.xlu0 %809
      %811 = vrot.lane.b32.xlu0 %v508, 4
      %v812 = vpop.permute.xlu0 %811
      %813 = vrot.lane.b32.xlu0 %v509, 4
      %v814 = vpop.permute.xlu0 %813
      %815 = vrot.lane.b32.xlu0 %v510, 4
      %v816 = vpop.permute.xlu0 %815
      %817 = vrot.lane.b32.xlu0 %v511, 4
      %v818 = vpop.permute.xlu0 %817
      %819 = vrot.lane.b32.xlu0 %v512, 4
      %v820 = vpop.permute.xlu0 %819
      %821 = vrot.lane.b32.xlu0 %v513, 4
      %v822 = vpop.permute.xlu0 %821
      %823 = vrot.lane.b32.xlu0 %v514, 4
      %v824 = vpop.permute.xlu0 %823
      %825 = vrot.lane.b32.xlu0 %v515, 4
      %v826 = vpop.permute.xlu0 %825
      %827 = vrot.lane.b32.xlu0 %v516, 4
      %v828 = vpop.permute.xlu0 %827
      %829 = vrot.lane.b32.xlu0 %v517, 4
      %v830 = vpop.permute.xlu0 %829
      %831 = vrot.lane.b32.xlu0 %v518, 4
      %v832 = vpop.permute.xlu0 %831
      %833 = vrot.lane.b32.xlu0 %v519, 4
      %v834 = vpop.permute.xlu0 %833
      %835 = vrot.lane.b32.xlu0 %v520, 4
      %v836 = vpop.permute.xlu0 %835
      %837 = vrot.lane.b32.xlu0 %v521, 4
      %v838 = vpop.permute.xlu0 %837
      %839 = vrot.lane.b32.xlu0 %v522, 4
      %v840 = vpop.permute.xlu0 %839
      %841 = vrot.lane.b32.xlu0 %v523, 4
      %v842 = vpop.permute.xlu0 %841
      %843 = vrot.lane.b32.xlu0 %v524, 4
      %v844 = vpop.permute.xlu0 %843
      %845 = vrot.lane.b32.xlu0 %v525, 4
      %v846 = vpop.permute.xlu0 %845
      %911 = vrot.lane.b32.xlu0 %v526, 8
      %v912 = vpop.permute.xlu0 %911
      %913 = vrot.lane.b32.xlu0 %v527, 8
      %v914 = vpop.permute.xlu0 %913
      %915 = vrot.lane.b32.xlu0 %v528, 8
      %v916 = vpop.permute.xlu0 %915
      %917 = vrot.lane.b32.xlu0 %v529, 8
      %v918 = vpop.permute.xlu0 %917
      %919 = vrot.lane.b32.xlu0 %v530, 8
      %v920 = vpop.permute.xlu0 %919
      %921 = vrot.lane.b32.xlu0 %v531, 8
      %v922 = vpop.permute.xlu0 %921
      %923 = vrot.lane.b32.xlu0 %v532, 8
      %v924 = vpop.permute.xlu0 %923
      %925 = vrot.lane.b32.xlu0 %v533, 8
      %v926 = vpop.permute.xlu0 %925
      %927 = vrot.lane.b32.xlu0 %v534, 8
      %v928 = vpop.permute.xlu0 %927
      %929 = vrot.lane.b32.xlu0 %v535, 8
      %v930 = vpop.permute.xlu0 %929
      %931 = vrot.lane.b32.xlu0 %v536, 8
      %v932 = vpop.permute.xlu0 %931
      %933 = vrot.lane.b32.xlu0 %v537, 8
      %v934 = vpop.permute.xlu0 %933
      %935 = vrot.lane.b32.xlu0 %v538, 8
      %v936 = vpop.permute.xlu0 %935
      %937 = vrot.lane.b32.xlu0 %v539, 8
      %v938 = vpop.permute.xlu0 %937
      %939 = vrot.lane.b32.xlu0 %v540, 8
      %v940 = vpop.permute.xlu0 %939
      %941 = vrot.lane.b32.xlu0 %v541, 8
      %v942 = vpop.permute.xlu0 %941
      %943 = vrot.lane.b32.xlu0 %v542, 8
      %v944 = vpop.permute.xlu0 %943
      %945 = vrot.lane.b32.xlu0 %v543, 8
      %v946 = vpop.permute.xlu0 %945
      %947 = vrot.lane.b32.xlu0 %v544, 8
      %v948 = vpop.permute.xlu0 %947
      %949 = vrot.lane.b32.xlu0 %v545, 8
      %v950 = vpop.permute.xlu0 %949
      %951 = vrot.lane.b32.xlu0 %v546, 8
      %v952 = vpop.permute.xlu0 %951
      %953 = vrot.lane.b32.xlu0 %v547, 8
      %v954 = vpop.permute.xlu0 %953
      %955 = vrot.lane.b32.xlu0 %v548, 8
      %v956 = vpop.permute.xlu0 %955
      %957 = vrot.lane.b32.xlu0 %v549, 8
      %v958 = vpop.permute.xlu0 %957
      %959 = vrot.lane.b32.xlu0 %v550, 8
      %v960 = vpop.permute.xlu0 %959
      %961 = vrot.lane.b32.xlu0 %v551, 8
      %v962 = vpop.permute.xlu0 %961
      %963 = vrot.lane.b32.xlu0 %v552, 8
      %v964 = vpop.permute.xlu0 %963
      %965 = vrot.lane.b32.xlu0 %v553, 8
      %v966 = vpop.permute.xlu0 %965
      %967 = vrot.lane.b32.xlu0 %v554, 8
      %v968 = vpop.permute.xlu0 %967
      %969 = vrot.lane.b32.xlu0 %v555, 8
      %v970 = vpop.permute.xlu0 %969
      %971 = vrot.lane.b32.xlu0 %v556, 8
      %v972 = vpop.permute.xlu0 %971
      %973 = vrot.lane.b32.xlu0 %v557, 8
      %v974 = vpop.permute.xlu0 %973
      %1039 = vrot.lane.b32.xlu0 %v558, 12
      %v1040 = vpop.permute.xlu0 %1039
      %1041 = vrot.lane.b32.xlu0 %v559, 12
      %v1042 = vpop.permute.xlu0 %1041
      %1043 = vrot.lane.b32.xlu0 %v560, 12
      %v1044 = vpop.permute.xlu0 %1043
      %1045 = vrot.lane.b32.xlu0 %v561, 12
      %v1046 = vpop.permute.xlu0 %1045
      %1047 = vrot.lane.b32.xlu0 %v562, 12
      %v1048 = vpop.permute.xlu0 %1047
      %1049 = vrot.lane.b32.xlu0 %v563, 12
      %v1050 = vpop.permute.xlu0 %1049
      %1051 = vrot.lane.b32.xlu0 %v564, 12
      %v1052 = vpop.permute.xlu0 %1051
      %1053 = vrot.lane.b32.xlu0 %v565, 12
      %v1054 = vpop.permute.xlu0 %1053
      %1055 = vrot.lane.b32.xlu0 %v566, 12
      %v1056 = vpop.permute.xlu0 %1055
      %1057 = vrot.lane.b32.xlu0 %v567, 12
      %v1058 = vpop.permute.xlu0 %1057
      %1059 = vrot.lane.b32.xlu0 %v568, 12
      %v1060 = vpop.permute.xlu0 %1059
      %1061 = vrot.lane.b32.xlu0 %v569, 12
      %v1062 = vpop.permute.xlu0 %1061
      %1063 = vrot.lane.b32.xlu0 %v570, 12
      %v1064 = vpop.permute.xlu0 %1063
      %1065 = vrot.lane.b32.xlu0 %v571, 12
      %v1066 = vpop.permute.xlu0 %1065
      %1067 = vrot.lane.b32.xlu0 %v572, 12
      %v1068 = vpop.permute.xlu0 %1067
      %1069 = vrot.lane.b32.xlu0 %v573, 12
      %v1070 = vpop.permute.xlu0 %1069
      %1071 = vrot.lane.b32.xlu0 %v574, 12
      %v1072 = vpop.permute.xlu0 %1071
      %1073 = vrot.lane.b32.xlu0 %v575, 12
      %v1074 = vpop.permute.xlu0 %1073
      %1075 = vrot.lane.b32.xlu0 %v576, 12
      %v1076 = vpop.permute.xlu0 %1075
      %1077 = vrot.lane.b32.xlu0 %v577, 12
      %v1078 = vpop.permute.xlu0 %1077
      %1079 = vrot.lane.b32.xlu0 %v578, 12
      %v1080 = vpop.permute.xlu0 %1079
      %1081 = vrot.lane.b32.xlu0 %v579, 12
      %v1082 = vpop.permute.xlu0 %1081
      %1083 = vrot.lane.b32.xlu0 %v580, 12
      %v1084 = vpop.permute.xlu0 %1083
      %1085 = vrot.lane.b32.xlu0 %v581, 12
      %v1086 = vpop.permute.xlu0 %1085
      %1087 = vrot.lane.b32.xlu0 %v582, 12
      %v1088 = vpop.permute.xlu0 %1087
      %1089 = vrot.lane.b32.xlu0 %v583, 12
      %v1090 = vpop.permute.xlu0 %1089
      %1091 = vrot.lane.b32.xlu0 %v584, 12
      %v1092 = vpop.permute.xlu0 %1091
      %1093 = vrot.lane.b32.xlu0 %v585, 12
      %v1094 = vpop.permute.xlu0 %1093
      %1095 = vrot.lane.b32.xlu0 %v586, 12
      %v1096 = vpop.permute.xlu0 %1095
      %1097 = vrot.lane.b32.xlu0 %v587, 12
      %v1098 = vpop.permute.xlu0 %1097
      %1099 = vrot.lane.b32.xlu0 %v588, 12
      %v1100 = vpop.permute.xlu0 %1099
      %1101 = vrot.lane.b32.xlu0 %v589, 12
      %v1102 = vpop.permute.xlu0 %1101
      %1167 = vrot.lane.b32.xlu0 %v590, 16
      %v1168 = vpop.permute.xlu0 %1167
      %1169 = vrot.lane.b32.xlu0 %v591, 16
      %v1170 = vpop.permute.xlu0 %1169
      %1171 = vrot.lane.b32.xlu0 %v592, 16
      %v1172 = vpop.permute.xlu0 %1171
      %1173 = vrot.lane.b32.xlu0 %v593, 16
      %v1174 = vpop.permute.xlu0 %1173
      %1175 = vrot.lane.b32.xlu0 %v594, 16
      %v1176 = vpop.permute.xlu0 %1175
      %1177 = vrot.lane.b32.xlu0 %v595, 16
      %v1178 = vpop.permute.xlu0 %1177
      %1179 = vrot.lane.b32.xlu0 %v596, 16
      %v1180 = vpop.permute.xlu0 %1179
      %1181 = vrot.lane.b32.xlu0 %v597, 16
      %v1182 = vpop.permute.xlu0 %1181
      %1183 = vrot.lane.b32.xlu0 %v598, 16
      %v1184 = vpop.permute.xlu0 %1183
      %1185 = vrot.lane.b32.xlu0 %v599, 16
      %v1186 = vpop.permute.xlu0 %1185
      %1187 = vrot.lane.b32.xlu0 %v600, 16
      %v1188 = vpop.permute.xlu0 %1187
      %1189 = vrot.lane.b32.xlu0 %v601, 16
      %v1190 = vpop.permute.xlu0 %1189
      %1191 = vrot.lane.b32.xlu0 %v602, 16
      %v1192 = vpop.permute.xlu0 %1191
      %1193 = vrot.lane.b32.xlu0 %v603, 16
      %v1194 = vpop.permute.xlu0 %1193
      %1195 = vrot.lane.b32.xlu0 %v604, 16
      %v1196 = vpop.permute.xlu0 %1195
      %1197 = vrot.lane.b32.xlu0 %v605, 16
      %v1198 = vpop.permute.xlu0 %1197
      %1199 = vrot.lane.b32.xlu0 %v606, 16
      %v1200 = vpop.permute.xlu0 %1199
      %1201 = vrot.lane.b32.xlu0 %v607, 16
      %v1202 = vpop.permute.xlu0 %1201
      %1203 = vrot.lane.b32.xlu0 %v608, 16
      %v1204 = vpop.permute.xlu0 %1203
      %1205 = vrot.lane.b32.xlu0 %v609, 16
      %v1206 = vpop.permute.xlu0 %1205
      %1207 = vrot.lane.b32.xlu0 %v610, 16
      %v1208 = vpop.permute.xlu0 %1207
      %1209 = vrot.lane.b32.xlu0 %v611, 16
      %v1210 = vpop.permute.xlu0 %1209
      %1211 = vrot.lane.b32.xlu0 %v612, 16
      %v1212 = vpop.permute.xlu0 %1211
      %1213 = vrot.lane.b32.xlu0 %v613, 16
      %v1214 = vpop.permute.xlu0 %1213
      %1215 = vrot.lane.b32.xlu0 %v614, 16
      %v1216 = vpop.permute.xlu0 %1215
      %1217 = vrot.lane.b32.xlu0 %v615, 16
      %v1218 = vpop.permute.xlu0 %1217
      %1219 = vrot.lane.b32.xlu0 %v616, 16
      %v1220 = vpop.permute.xlu0 %1219
      %1221 = vrot.lane.b32.xlu0 %v617, 16
      %v1222 = vpop.permute.xlu0 %1221
      %1223 = vrot.lane.b32.xlu0 %v618, 16
      %v1224 = vpop.permute.xlu0 %1223
      %1225 = vrot.lane.b32.xlu0 %v619, 16
      %v1226 = vpop.permute.xlu0 %1225
      %1227 = vrot.lane.b32.xlu0 %v620, 16
      %v1228 = vpop.permute.xlu0 %1227
      %1229 = vrot.lane.b32.xlu0 %v621, 16
      %v1230 = vpop.permute.xlu0 %1229
      %1295 = vrot.lane.b32.xlu0 %v622, 20
      %v1296 = vpop.permute.xlu0 %1295
      %1297 = vrot.lane.b32.xlu0 %v623, 20
      %v1298 = vpop.permute.xlu0 %1297
      %1299 = vrot.lane.b32.xlu0 %v624, 20
      %v1300 = vpop.permute.xlu0 %1299
      %1301 = vrot.lane.b32.xlu0 %v625, 20
      %v1302 = vpop.permute.xlu0 %1301
      %1303 = vrot.lane.b32.xlu0 %v626, 20
      %v1304 = vpop.permute.xlu0 %1303
      %1305 = vrot.lane.b32.xlu0 %v627, 20
      %v1306 = vpop.permute.xlu0 %1305
      %1307 = vrot.lane.b32.xlu0 %v628, 20
      %v1308 = vpop.permute.xlu0 %1307
      %1309 = vrot.lane.b32.xlu0 %v629, 20
      %v1310 = vpop.permute.xlu0 %1309
      %1311 = vrot.lane.b32.xlu0 %v630, 20
      %v1312 = vpop.permute.xlu0 %1311
      %1313 = vrot.lane.b32.xlu0 %v631, 20
      %v1314 = vpop.permute.xlu0 %1313
      %1315 = vrot.lane.b32.xlu0 %v632, 20
      %v1316 = vpop.permute.xlu0 %1315
      %1317 = vrot.lane.b32.xlu0 %v633, 20
      %v1318 = vpop.permute.xlu0 %1317
      %1319 = vrot.lane.b32.xlu0 %v634, 20
      %v1320 = vpop.permute.xlu0 %1319
      %1321 = vrot.lane.b32.xlu0 %v635, 20
      %v1322 = vpop.permute.xlu0 %1321
      %1323 = vrot.lane.b32.xlu0 %v636, 20
      %v1324 = vpop.permute.xlu0 %1323
      %1325 = vrot.lane.b32.xlu0 %v637, 20
      %v1326 = vpop.permute.xlu0 %1325
      %1327 = vrot.lane.b32.xlu0 %v638, 20
      %v1328 = vpop.permute.xlu0 %1327
      %1329 = vrot.lane.b32.xlu0 %v639, 20
      %v1330 = vpop.permute.xlu0 %1329
      %1331 = vrot.lane.b32.xlu0 %v640, 20
      %v1332 = vpop.permute.xlu0 %1331
      %1333 = vrot.lane.b32.xlu0 %v641, 20
      %v1334 = vpop.permute.xlu0 %1333
      %1335 = vrot.lane.b32.xlu0 %v642, 20
      %v1336 = vpop.permute.xlu0 %1335
      %1337 = vrot.lane.b32.xlu0 %v643, 20
      %v1338 = vpop.permute.xlu0 %1337
      %1339 = vrot.lane.b32.xlu0 %v644, 20
      %v1340 = vpop.permute.xlu0 %1339
      %1341 = vrot.lane.b32.xlu0 %v645, 20
      %v1342 = vpop.permute.xlu0 %1341
      %1343 = vrot.lane.b32.xlu0 %v646, 20
      %v1344 = vpop.permute.xlu0 %1343
      %1345 = vrot.lane.b32.xlu0 %v647, 20
      %v1346 = vpop.permute.xlu0 %1345
      %1347 = vrot.lane.b32.xlu0 %v648, 20
      %v1348 = vpop.permute.xlu0 %1347
      %1349 = vrot.lane.b32.xlu0 %v649, 20
      %v1350 = vpop.permute.xlu0 %1349
      %1351 = vrot.lane.b32.xlu0 %v650, 20
      %v1352 = vpop.permute.xlu0 %1351
      %1353 = vrot.lane.b32.xlu0 %v651, 20
      %v1354 = vpop.permute.xlu0 %1353
      %1355 = vrot.lane.b32.xlu0 %v652, 20
      %v1356 = vpop.permute.xlu0 %1355
      %1357 = vrot.lane.b32.xlu0 %v653, 20
      %v1358 = vpop.permute.xlu0 %1357
      %1423 = vrot.lane.b32.xlu0 %v655, 24
      %v1424 = vpop.permute.xlu0 %1423
      %1425 = vrot.lane.b32.xlu0 %v656, 24
      %v1426 = vpop.permute.xlu0 %1425
      %1427 = vrot.lane.b32.xlu0 %v657, 24
      %v1428 = vpop.permute.xlu0 %1427
      %1429 = vrot.lane.b32.xlu0 %v658, 24
      %v1430 = vpop.permute.xlu0 %1429
      %1431 = vrot.lane.b32.xlu0 %v659, 24
      %v1432 = vpop.permute.xlu0 %1431
      %1433 = vrot.lane.b32.xlu0 %v660, 24
      %v1434 = vpop.permute.xlu0 %1433
      %1435 = vrot.lane.b32.xlu0 %v661, 24
      %v1436 = vpop.permute.xlu0 %1435
      %1437 = vrot.lane.b32.xlu0 %v662, 24
      %v1438 = vpop.permute.xlu0 %1437
      %1439 = vrot.lane.b32.xlu0 %v663, 24
      %v1440 = vpop.permute.xlu0 %1439
      %1441 = vrot.lane.b32.xlu0 %v664, 24
      %v1442 = vpop.permute.xlu0 %1441
      %1443 = vrot.lane.b32.xlu0 %v665, 24
      %v1444 = vpop.permute.xlu0 %1443
      %1445 = vrot.lane.b32.xlu0 %v666, 24
      %v1446 = vpop.permute.xlu0 %1445
      %1447 = vrot.lane.b32.xlu0 %v667, 24
      %v1448 = vpop.permute.xlu0 %1447
      %1449 = vrot.lane.b32.xlu0 %v668, 24
      %v1450 = vpop.permute.xlu0 %1449
      %1451 = vrot.lane.b32.xlu0 %v669, 24
      %v1452 = vpop.permute.xlu0 %1451
      %1453 = vrot.lane.b32.xlu0 %v670, 24
      %v1454 = vpop.permute.xlu0 %1453
      %1455 = vrot.lane.b32.xlu0 %v671, 24
      %v1456 = vpop.permute.xlu0 %1455
      %1457 = vrot.lane.b32.xlu0 %v672, 24
      %v1458 = vpop.permute.xlu0 %1457
      %1459 = vrot.lane.b32.xlu0 %v673, 24
      %v1460 = vpop.permute.xlu0 %1459
      %1461 = vrot.lane.b32.xlu0 %v674, 24
      %v1462 = vpop.permute.xlu0 %1461
      %1463 = vrot.lane.b32.xlu0 %v675, 24
      %v1464 = vpop.permute.xlu0 %1463
      %1465 = vrot.lane.b32.xlu0 %v676, 24
      %v1466 = vpop.permute.xlu0 %1465
      %1467 = vrot.lane.b32.xlu0 %v677, 24
      %v1468 = vpop.permute.xlu0 %1467
      %1469 = vrot.lane.b32.xlu0 %v678, 24
      %v1470 = vpop.permute.xlu0 %1469
      %1471 = vrot.lane.b32.xlu0 %v679, 24
      %v1472 = vpop.permute.xlu0 %1471
      %1473 = vrot.lane.b32.xlu0 %v680, 24
      %v1474 = vpop.permute.xlu0 %1473
      %1475 = vrot.lane.b32.xlu0 %v681, 24
      %v1476 = vpop.permute.xlu0 %1475
      %1477 = vrot.lane.b32.xlu0 %v682, 24
      %v1478 = vpop.permute.xlu0 %1477
      %1479 = vrot.lane.b32.xlu0 %v683, 24
      %v1480 = vpop.permute.xlu0 %1479
      %1481 = vrot.lane.b32.xlu0 %v684, 24
      %v1482 = vpop.permute.xlu0 %1481
      %1483 = vrot.lane.b32.xlu0 %v685, 24
      %v1484 = vpop.permute.xlu0 %1483
      %1485 = vrot.lane.b32.xlu0 %v686, 24
      %v1486 = vpop.permute.xlu0 %1485
      %1551 = vrot.lane.b32.xlu0 %v687, 28
      %v1552 = vpop.permute.xlu0 %1551
      %1553 = vrot.lane.b32.xlu0 %v688, 28
      %v1554 = vpop.permute.xlu0 %1553
      %1555 = vrot.lane.b32.xlu0 %v689, 28
      %v1556 = vpop.permute.xlu0 %1555
      %1557 = vrot.lane.b32.xlu0 %v690, 28
      %v1558 = vpop.permute.xlu0 %1557
      %1559 = vrot.lane.b32.xlu0 %v691, 28
      %v1560 = vpop.permute.xlu0 %1559
      %1561 = vrot.lane.b32.xlu0 %v692, 28
      %v1562 = vpop.permute.xlu0 %1561
      %1563 = vrot.lane.b32.xlu0 %v693, 28
      %v1564 = vpop.permute.xlu0 %1563
      %1565 = vrot.lane.b32.xlu0 %v694, 28
      %v1566 = vpop.permute.xlu0 %1565
      %1567 = vrot.lane.b32.xlu0 %v695, 28
      %v1568 = vpop.permute.xlu0 %1567
      %1569 = vrot.lane.b32.xlu0 %v696, 28
      %v1570 = vpop.permute.xlu0 %1569
      %1571 = vrot.lane.b32.xlu0 %v697, 28
      %v1572 = vpop.permute.xlu0 %1571
      %1573 = vrot.lane.b32.xlu0 %v698, 28
      %v1574 = vpop.permute.xlu0 %1573
      %1575 = vrot.lane.b32.xlu0 %v699, 28
      %v1576 = vpop.permute.xlu0 %1575
      %1577 = vrot.lane.b32.xlu0 %v700, 28
      %v1578 = vpop.permute.xlu0 %1577
      %1579 = vrot.lane.b32.xlu0 %v701, 28
      %v1580 = vpop.permute.xlu0 %1579
      %1581 = vrot.lane.b32.xlu0 %v702, 28
      %v1582 = vpop.permute.xlu0 %1581
      %1583 = vrot.lane.b32.xlu0 %v703, 28
      %v1584 = vpop.permute.xlu0 %1583
      %1585 = vrot.lane.b32.xlu0 %v704, 28
      %v1586 = vpop.permute.xlu0 %1585
      %1587 = vrot.lane.b32.xlu0 %v705, 28
      %v1588 = vpop.permute.xlu0 %1587
      %1589 = vrot.lane.b32.xlu0 %v706, 28
      %v1590 = vpop.permute.xlu0 %1589
      %1591 = vrot.lane.b32.xlu0 %v707, 28
      %v1592 = vpop.permute.xlu0 %1591
      %1593 = vrot.lane.b32.xlu0 %v708, 28
      %v1594 = vpop.permute.xlu0 %1593
      %1595 = vrot.lane.b32.xlu0 %v709, 28
      %v1596 = vpop.permute.xlu0 %1595
      %1597 = vrot.lane.b32.xlu0 %v710, 28
      %v1598 = vpop.permute.xlu0 %1597
      %1599 = vrot.lane.b32.xlu0 %v711, 28
      %v1600 = vpop.permute.xlu0 %1599
      %1601 = vrot.lane.b32.xlu0 %v712, 28
      %v1602 = vpop.permute.xlu0 %1601
      %1603 = vrot.lane.b32.xlu0 %v713, 28
      %v1604 = vpop.permute.xlu0 %1603
      %1605 = vrot.lane.b32.xlu0 %v714, 28
      %v1606 = vpop.permute.xlu0 %1605
      %1607 = vrot.lane.b32.xlu0 %v715, 28
      %v1608 = vpop.permute.xlu0 %1607
      %1609 = vrot.lane.b32.xlu0 %v716, 28
      %v1610 = vpop.permute.xlu0 %1609
      %1611 = vrot.lane.b32.xlu0 %v717, 28
      %v1612 = vpop.permute.xlu0 %1611
      %1613 = vrot.lane.b32.xlu0 %v718, 28
      %v1614 = vpop.permute.xlu0 %1613
      %1679 = vrot.lane.b32.xlu0 %v719, 32
      %v1680 = vpop.permute.xlu0 %1679
      %1681 = vrot.lane.b32.xlu0 %v720, 32
      %v1682 = vpop.permute.xlu0 %1681
      %1683 = vrot.lane.b32.xlu0 %v721, 32
      %v1684 = vpop.permute.xlu0 %1683
      %1685 = vrot.lane.b32.xlu0 %v722, 32
      %v1686 = vpop.permute.xlu0 %1685
      %1687 = vrot.lane.b32.xlu0 %v723, 32
      %v1688 = vpop.permute.xlu0 %1687
      %1689 = vrot.lane.b32.xlu0 %v724, 32
      %v1690 = vpop.permute.xlu0 %1689
      %1691 = vrot.lane.b32.xlu0 %v725, 32
      %v1692 = vpop.permute.xlu0 %1691
      %1693 = vrot.lane.b32.xlu0 %v726, 32
      %v1694 = vpop.permute.xlu0 %1693
      %1695 = vrot.lane.b32.xlu0 %v727, 32
      %v1696 = vpop.permute.xlu0 %1695
      %1697 = vrot.lane.b32.xlu0 %v728, 32
      %v1698 = vpop.permute.xlu0 %1697
      %1699 = vrot.lane.b32.xlu0 %v729, 32
      %v1700 = vpop.permute.xlu0 %1699
      %1701 = vrot.lane.b32.xlu0 %v730, 32
      %v1702 = vpop.permute.xlu0 %1701
      %1703 = vrot.lane.b32.xlu0 %v731, 32
      %v1704 = vpop.permute.xlu0 %1703
      %1705 = vrot.lane.b32.xlu0 %v732, 32
      %v1706 = vpop.permute.xlu0 %1705
      %1707 = vrot.lane.b32.xlu0 %v733, 32
      %v1708 = vpop.permute.xlu0 %1707
      %1709 = vrot.lane.b32.xlu0 %v734, 32
      %v1710 = vpop.permute.xlu0 %1709
      %1711 = vrot.lane.b32.xlu0 %v735, 32
      %v1712 = vpop.permute.xlu0 %1711
      %1713 = vrot.lane.b32.xlu0 %v736, 32
      %v1714 = vpop.permute.xlu0 %1713
      %1715 = vrot.lane.b32.xlu0 %v737, 32
      %v1716 = vpop.permute.xlu0 %1715
      %1717 = vrot.lane.b32.xlu0 %v738, 32
      %v1718 = vpop.permute.xlu0 %1717
      %1719 = vrot.lane.b32.xlu0 %v739, 32
      %v1720 = vpop.permute.xlu0 %1719
      %1721 = vrot.lane.b32.xlu0 %v740, 32
      %v1722 = vpop.permute.xlu0 %1721
      %1723 = vrot.lane.b32.xlu0 %v741, 32
      %v1724 = vpop.permute.xlu0 %1723
      %1725 = vrot.lane.b32.xlu0 %v742, 32
      %v1726 = vpop.permute.xlu0 %1725
      %1727 = vrot.lane.b32.xlu0 %v743, 32
      %v1728 = vpop.permute.xlu0 %1727
      %1729 = vrot.lane.b32.xlu0 %v744, 32
      %v1730 = vpop.permute.xlu0 %1729
      %1731 = vrot.lane.b32.xlu0 %v745, 32
      %v1732 = vpop.permute.xlu0 %1731
      %1733 = vrot.lane.b32.xlu0 %v746, 32
      %v1734 = vpop.permute.xlu0 %1733
      %1735 = vrot.lane.b32.xlu0 %v747, 32
      %v1736 = vpop.permute.xlu0 %1735
      %1737 = vrot.lane.b32.xlu0 %v748, 32
      %v1738 = vpop.permute.xlu0 %1737
      %1739 = vrot.lane.b32.xlu0 %v749, 32
      %v1740 = vpop.permute.xlu0 %1739
      %1741 = vrot.lane.b32.xlu0 %v750, 32
      %v1742 = vpop.permute.xlu0 %1741
      %v1775 = vsel %vm373, %v462, %v784
      %v1776 = vsel %vm373, %v463, %v786
      %v1777 = vsel %vm373, %v464, %v788
      %v1778 = vsel %vm373, %v465, %v790
      %v1779 = vsel %vm373, %v466, %v792
      %v1780 = vsel %vm373, %v467, %v794
      %v1781 = vsel %vm373, %v468, %v796
      %v1782 = vsel %vm373, %v469, %v798
      %v1783 = vsel %vm373, %v470, %v800
      %v1784 = vsel %vm373, %v471, %v802
      %v1785 = vsel %vm373, %v472, %v804
      %v1786 = vsel %vm373, %v473, %v806
      %v1787 = vsel %vm373, %v474, %v808
      %v1788 = vsel %vm373, %v475, %v810
      %v1789 = vsel %vm373, %v476, %v812
      %v1790 = vsel %vm373, %v477, %v814
      %v1791 = vsel %vm373, %v478, %v816
      %v1792 = vsel %vm373, %v479, %v818
      %v1793 = vsel %vm373, %v480, %v820
      %v1794 = vsel %vm373, %v481, %v822
      %v1795 = vsel %vm373, %v482, %v824
      %v1796 = vsel %vm373, %v483, %v826
      %v1797 = vsel %vm373, %v484, %v828
      %v1798 = vsel %vm373, %v485, %v830
      %v1799 = vsel %vm373, %v486, %v832
      %v1800 = vsel %vm373, %v487, %v834
      %v1801 = vsel %vm373, %v488, %v836
      %v1802 = vsel %vm373, %v489, %v838
      %v1803 = vsel %vm373, %v490, %v840
      %v1804 = vsel %vm373, %v491, %v842
      %v1805 = vsel %vm373, %v492, %v844
      %v1806 = vsel %vm373, %v493, %v846
      %vm1807 = vcmask 64512
      %v1808 = vsel %vm1807, %v1775, %v912
      %v1809 = vsel %vm1807, %v1776, %v914
      %v1810 = vsel %vm1807, %v1777, %v916
      %v1811 = vsel %vm1807, %v1778, %v918
      %v1812 = vsel %vm1807, %v1779, %v920
      %v1813 = vsel %vm1807, %v1780, %v922
      %v1814 = vsel %vm1807, %v1781, %v924
      %v1815 = vsel %vm1807, %v1782, %v926
      %v1816 = vsel %vm1807, %v1783, %v928
      %v1817 = vsel %vm1807, %v1784, %v930
      %v1818 = vsel %vm1807, %v1785, %v932
      %v1819 = vsel %vm1807, %v1786, %v934
      %v1820 = vsel %vm1807, %v1787, %v936
      %v1821 = vsel %vm1807, %v1788, %v938
      %v1822 = vsel %vm1807, %v1789, %v940
      %v1823 = vsel %vm1807, %v1790, %v942
      %v1824 = vsel %vm1807, %v1791, %v944
      %v1825 = vsel %vm1807, %v1792, %v946
      %v1826 = vsel %vm1807, %v1793, %v948
      %v1827 = vsel %vm1807, %v1794, %v950
      %v1828 = vsel %vm1807, %v1795, %v952
      %v1829 = vsel %vm1807, %v1796, %v954
      %v1830 = vsel %vm1807, %v1797, %v956
      %v1831 = vsel %vm1807, %v1798, %v958
      %v1832 = vsel %vm1807, %v1799, %v960
      %v1833 = vsel %vm1807, %v1800, %v962
      %v1834 = vsel %vm1807, %v1801, %v964
      %v1835 = vsel %vm1807, %v1802, %v966
      %v1836 = vsel %vm1807, %v1803, %v968
      %v1837 = vsel %vm1807, %v1804, %v970
      %v1838 = vsel %vm1807, %v1805, %v972
      %v1839 = vsel %vm1807, %v1806, %v974
      %vm1840 = vcmask 97280
      %v1841 = vsel %vm1840, %v1808, %v1040
      %v1842 = vsel %vm1840, %v1809, %v1042
      %v1843 = vsel %vm1840, %v1810, %v1044
      %v1844 = vsel %vm1840, %v1811, %v1046
      %v1845 = vsel %vm1840, %v1812, %v1048
      %v1846 = vsel %vm1840, %v1813, %v1050
      %v1847 = vsel %vm1840, %v1814, %v1052
      %v1848 = vsel %vm1840, %v1815, %v1054
      %v1849 = vsel %vm1840, %v1816, %v1056
      %v1850 = vsel %vm1840, %v1817, %v1058
      %v1851 = vsel %vm1840, %v1818, %v1060
      %v1852 = vsel %vm1840, %v1819, %v1062
      %v1853 = vsel %vm1840, %v1820, %v1064
      %v1854 = vsel %vm1840, %v1821, %v1066
      %v1855 = vsel %vm1840, %v1822, %v1068
      %v1856 = vsel %vm1840, %v1823, %v1070
      %v1857 = vsel %vm1840, %v1824, %v1072
      %v1858 = vsel %vm1840, %v1825, %v1074
      %v1859 = vsel %vm1840, %v1826, %v1076
      %v1860 = vsel %vm1840, %v1827, %v1078
      %v1861 = vsel %vm1840, %v1828, %v1080
      %v1862 = vsel %vm1840, %v1829, %v1082
      %v1863 = vsel %vm1840, %v1830, %v1084
      %v1864 = vsel %vm1840, %v1831, %v1086
      %v1865 = vsel %vm1840, %v1832, %v1088
      %v1866 = vsel %vm1840, %v1833, %v1090
      %v1867 = vsel %vm1840, %v1834, %v1092
      %v1868 = vsel %vm1840, %v1835, %v1094
      %v1869 = vsel %vm1840, %v1836, %v1096
      %v1870 = vsel %vm1840, %v1837, %v1098
      %v1871 = vsel %vm1840, %v1838, %v1100
      %v1872 = vsel %vm1840, %v1839, %v1102
      %vm1873 = vcmask 130048
      %v1874 = vsel %vm1873, %v1841, %v1168
      %v1875 = vsel %vm1873, %v1842, %v1170
      %v1876 = vsel %vm1873, %v1843, %v1172
      %v1877 = vsel %vm1873, %v1844, %v1174
      %v1878 = vsel %vm1873, %v1845, %v1176
      %v1879 = vsel %vm1873, %v1846, %v1178
      %v1880 = vsel %vm1873, %v1847, %v1180
      %v1881 = vsel %vm1873, %v1848, %v1182
      %v1882 = vsel %vm1873, %v1849, %v1184
      %v1883 = vsel %vm1873, %v1850, %v1186
      %v1884 = vsel %vm1873, %v1851, %v1188
      %v1885 = vsel %vm1873, %v1852, %v1190
      %v1886 = vsel %vm1873, %v1853, %v1192
      %v1887 = vsel %vm1873, %v1854, %v1194
      %v1888 = vsel %vm1873, %v1855, %v1196
      %v1889 = vsel %vm1873, %v1856, %v1198
      %v1890 = vsel %vm1873, %v1857, %v1200
      %v1891 = vsel %vm1873, %v1858, %v1202
      %v1892 = vsel %vm1873, %v1859, %v1204
      %v1893 = vsel %vm1873, %v1860, %v1206
      %v1894 = vsel %vm1873, %v1861, %v1208
      %v1895 = vsel %vm1873, %v1862, %v1210
      %v1896 = vsel %vm1873, %v1863, %v1212
      %v1897 = vsel %vm1873, %v1864, %v1214
      %v1898 = vsel %vm1873, %v1865, %v1216
      %v1899 = vsel %vm1873, %v1866, %v1218
      %v1900 = vsel %vm1873, %v1867, %v1220
      %v1901 = vsel %vm1873, %v1868, %v1222
      %v1902 = vsel %vm1873, %v1869, %v1224
      %v1903 = vsel %vm1873, %v1870, %v1226
      %v1904 = vsel %vm1873, %v1871, %v1228
      %v1905 = vsel %vm1873, %v1872, %v1230
      %vm1906 = vcmask 162816
      %v1907 = vsel %vm1906, %v1874, %v1296
      %v1908 = vsel %vm1906, %v1875, %v1298
      %v1909 = vsel %vm1906, %v1876, %v1300
      %v1910 = vsel %vm1906, %v1877, %v1302
      %v1911 = vsel %vm1906, %v1878, %v1304
      %v1912 = vsel %vm1906, %v1879, %v1306
      %v1913 = vsel %vm1906, %v1880, %v1308
      %v1914 = vsel %vm1906, %v1881, %v1310
      %v1915 = vsel %vm1906, %v1882, %v1312
      %v1916 = vsel %vm1906, %v1883, %v1314
      %v1917 = vsel %vm1906, %v1884, %v1316
      %v1918 = vsel %vm1906, %v1885, %v1318
      %v1919 = vsel %vm1906, %v1886, %v1320
      %v1920 = vsel %vm1906, %v1887, %v1322
      %v1921 = vsel %vm1906, %v1888, %v1324
      %v1922 = vsel %vm1906, %v1889, %v1326
      %v1923 = vsel %vm1906, %v1890, %v1328
      %v1924 = vsel %vm1906, %v1891, %v1330
      %v1925 = vsel %vm1906, %v1892, %v1332
      %v1926 = vsel %vm1906, %v1893, %v1334
      %v1927 = vsel %vm1906, %v1894, %v1336
      %v1928 = vsel %vm1906, %v1895, %v1338
      %v1929 = vsel %vm1906, %v1896, %v1340
      %v1930 = vsel %vm1906, %v1897, %v1342
      %v1931 = vsel %vm1906, %v1898, %v1344
      %v1932 = vsel %vm1906, %v1899, %v1346
      %v1933 = vsel %vm1906, %v1900, %v1348
      %v1934 = vsel %vm1906, %v1901, %v1350
      %v1935 = vsel %vm1906, %v1902, %v1352
      %v1936 = vsel %vm1906, %v1903, %v1354
      %v1937 = vsel %vm1906, %v1904, %v1356
      %v1938 = vsel %vm1906, %v1905, %v1358
      %vm1939 = vcmask 195584
      %v1940 = vsel %vm1939, %v1907, %v1424
      %v1941 = vsel %vm1939, %v1908, %v1426
      %v1942 = vsel %vm1939, %v1909, %v1428
      %v1943 = vsel %vm1939, %v1910, %v1430
      %v1944 = vsel %vm1939, %v1911, %v1432
      %v1945 = vsel %vm1939, %v1912, %v1434
      %v1946 = vsel %vm1939, %v1913, %v1436
      %v1947 = vsel %vm1939, %v1914, %v1438
      %v1948 = vsel %vm1939, %v1915, %v1440
      %v1949 = vsel %vm1939, %v1916, %v1442
      %v1950 = vsel %vm1939, %v1917, %v1444
      %v1951 = vsel %vm1939, %v1918, %v1446
      %v1952 = vsel %vm1939, %v1919, %v1448
      %v1953 = vsel %vm1939, %v1920, %v1450
      %v1954 = vsel %vm1939, %v1921, %v1452
      %v1955 = vsel %vm1939, %v1922, %v1454
      %v1956 = vsel %vm1939, %v1923, %v1456
      %v1957 = vsel %vm1939, %v1924, %v1458
      %v1958 = vsel %vm1939, %v1925, %v1460
      %v1959 = vsel %vm1939, %v1926, %v1462
      %v1960 = vsel %vm1939, %v1927, %v1464
      %v1961 = vsel %vm1939, %v1928, %v1466
      %v1962 = vsel %vm1939, %v1929, %v1468
      %v1963 = vsel %vm1939, %v1930, %v1470
      %v1964 = vsel %vm1939, %v1931, %v1472
      %v1965 = vsel %vm1939, %v1932, %v1474
      %v1966 = vsel %vm1939, %v1933, %v1476
      %v1967 = vsel %vm1939, %v1934, %v1478
      %v1968 = vsel %vm1939, %v1935, %v1480
      %v1969 = vsel %vm1939, %v1936, %v1482
      %v1970 = vsel %vm1939, %v1937, %v1484
      %v1971 = vsel %vm1939, %v1938, %v1486
      %vm1972 = vcmask 228352
      %v1973 = vsel %vm1972, %v1940, %v1552
      %v1974 = vsel %vm1972, %v1941, %v1554
      %v1975 = vsel %vm1972, %v1942, %v1556
      %v1976 = vsel %vm1972, %v1943, %v1558
      %v1977 = vsel %vm1972, %v1944, %v1560
      %v1978 = vsel %vm1972, %v1945, %v1562
      %v1979 = vsel %vm1972, %v1946, %v1564
      %v1980 = vsel %vm1972, %v1947, %v1566
      %v1981 = vsel %vm1972, %v1948, %v1568
      %v1982 = vsel %vm1972, %v1949, %v1570
      %v1983 = vsel %vm1972, %v1950, %v1572
      %v1984 = vsel %vm1972, %v1951, %v1574
      %v1985 = vsel %vm1972, %v1952, %v1576
      %v1986 = vsel %vm1972, %v1953, %v1578
      %v1987 = vsel %vm1972, %v1954, %v1580
      %v1988 = vsel %vm1972, %v1955, %v1582
      %v1989 = vsel %vm1972, %v1956, %v1584
      %v1990 = vsel %vm1972, %v1957, %v1586
      %v1991 = vsel %vm1972, %v1958, %v1588
      %v1992 = vsel %vm1972, %v1959, %v1590
      %v1993 = vsel %vm1972, %v1960, %v1592
      %v1994 = vsel %vm1972, %v1961, %v1594
      %v1995 = vsel %vm1972, %v1962, %v1596
      %v1996 = vsel %vm1972, %v1963, %v1598
      %v1997 = vsel %vm1972, %v1964, %v1600
      %v1998 = vsel %vm1972, %v1965, %v1602
      %v1999 = vsel %vm1972, %v1966, %v1604
      %v2000 = vsel %vm1972, %v1967, %v1606
      %v2001 = vsel %vm1972, %v1968, %v1608
      %v2002 = vsel %vm1972, %v1969, %v1610
      %v2003 = vsel %vm1972, %v1970, %v1612
      %v2004 = vsel %vm1972, %v1971, %v1614
      %vm2005 = vcmask 261120
      %v2006 = vsel %vm2005, %v1973, %v1680
      %v2007 = vsel %vm2005, %v1974, %v1682
      %v2008 = vsel %vm2005, %v1975, %v1684
      %v2009 = vsel %vm2005, %v1976, %v1686
      %v2010 = vsel %vm2005, %v1977, %v1688
      %v2011 = vsel %vm2005, %v1978, %v1690
      %v2012 = vsel %vm2005, %v1979, %v1692
      %v2013 = vsel %vm2005, %v1980, %v1694
      %v2014 = vsel %vm2005, %v1981, %v1696
      %v2015 = vsel %vm2005, %v1982, %v1698
      %v2016 = vsel %vm2005, %v1983, %v1700
      %v2017 = vsel %vm2005, %v1984, %v1702
      %v2018 = vsel %vm2005, %v1985, %v1704
      %v2019 = vsel %vm2005, %v1986, %v1706
      %v2020 = vsel %vm2005, %v1987, %v1708
      %v2021 = vsel %vm2005, %v1988, %v1710
      %v2022 = vsel %vm2005, %v1989, %v1712
      %v2023 = vsel %vm2005, %v1990, %v1714
      %v2024 = vsel %vm2005, %v1991, %v1716
      %v2025 = vsel %vm2005, %v1992, %v1718
      %v2026 = vsel %vm2005, %v1993, %v1720
      %v2027 = vsel %vm2005, %v1994, %v1722
      %v2028 = vsel %vm2005, %v1995, %v1724
      %v2029 = vsel %vm2005, %v1996, %v1726
      %v2030 = vsel %vm2005, %v1997, %v1728
      %v2031 = vsel %vm2005, %v1998, %v1730
      %v2032 = vsel %vm2005, %v1999, %v1732
      %v2033 = vsel %vm2005, %v2000, %v1734
      %v2034 = vsel %vm2005, %v2001, %v1736
      %v2035 = vsel %vm2005, %v2002, %v1738
      %v2036 = vsel %vm2005, %v2003, %v1740
      %v2037 = vsel %vm2005, %v2004, %v1742
      %v2038 = vpack.c.bf16 %v2007, %v2006
      %v2039 = vpack.c.bf16 %v2009, %v2008
      %v2040 = vpack.c.bf16 %v2011, %v2010
      %v2041 = vpack.c.bf16 %v2013, %v2012
      %v2042 = vpack.c.bf16 %v2015, %v2014
      %v2043 = vpack.c.bf16 %v2017, %v2016
      %v2044 = vpack.c.bf16 %v2019, %v2018
      %v2045 = vpack.c.bf16 %v2021, %v2020
      %v2046 = vpack.c.bf16 %v2023, %v2022
      %v2047 = vpack.c.bf16 %v2025, %v2024
      %v2048 = vpack.c.bf16 %v2027, %v2026
      %v2049 = vpack.c.bf16 %v2029, %v2028
      %v2050 = vpack.c.bf16 %v2031, %v2030
      %v2051 = vpack.c.bf16 %v2033, %v2032
      %v2052 = vpack.c.bf16 %v2035, %v2034
      %v2053 = vpack.c.bf16 %v2037, %v2036
      %v2054 = vld [vmem:[%s3] sm:$0xf]
      %v2055 = vld [vmem:[%s3 + $0x4] sm:$0xf]
      %v2056 = vld [vmem:[%s3 + $0x8] sm:$0xf]
      %v2057 = vld [vmem:[%s3 + $0xc] sm:$0xf]
      %v2058 = vld [vmem:[%s3 + $0x10] sm:$0x3]
      %v2064 = vunpack.c.l.b16 %v2054
      %v2065 = vunpack.c.l.b16 %v2055
      %v2066 = vunpack.c.l.b16 %v2056
      %v2067 = vunpack.c.l.b16 %v2057
      %v2068 = vunpack.c.l.b16 %v2058
      %v2069 = vpack.c.b16 %v2065, %v2064
      %v2070 = vpack.c.b16 %v2067, %v2066
      %v2071 = vpack.c.b16 %v2068, %v2068
      %vm2074 = vcmask 293888
      %v2076 = vsel %vm2074, %v2038, 0
      %v2079 = vsel %vm2074, %v2039, 0
      %v2082 = vsel %vm2074, %v2040, 0
      %v2085 = vsel %vm2074, %v2041, 0
      %v2088 = vsel %vm2074, %v2042, 0
      %v2091 = vsel %vm2074, %v2043, 0
      %v2094 = vsel %vm2074, %v2044, 0
      %v2097 = vsel %vm2074, %v2045, 0
      %v2100 = vsel %vm2074, %v2046, 0
      %v2103 = vsel %vm2074, %v2047, 0
      %v2106 = vsel %vm2074, %v2048, 0
      %v2109 = vsel %vm2074, %v2049, 0
      %v2112 = vsel %vm2074, %v2050, 0
      %v2115 = vsel %vm2074, %v2051, 0
      %v2118 = vsel %vm2074, %v2052, 0
      %v2121 = vsel %vm2074, %v2053, 0
      %vm2123 = vcmask 1041408
      %v2125 = vsel %vm2123, %v2071, 0
      %2127 = vmatpush.bf16.msra.mxu0 0
      %2128 = vmatpush.bf16.msra.mxu0 0
      %2129 = vmatpush.bf16.msra.mxu0 0
      %2130 = vmatpush.bf16.msra.mxu0 0
      %2131 = vmatpush.bf16.msra.mxu0 0
      %2132 = vmatpush.bf16.msra.mxu0 %v2125
      %2133 = vmatpush.bf16.msra.mxu0 %v2070
      %2134 = vmatpush.bf16.msra.mxu0 %v2069
      %2135 = vmatmul.bf16.gmra.mxu0 %v2076
      %v2136 = vpop.f32.mrf.mxu0
      %v2137 = vadd.f32 0.0, %v2136
      %v2138 = vpop.f32.mrf.mxu0
      %v2139 = vadd.f32 0.0, %v2138
      %2140 = vmatmul.bf16.gmra.mxu0 %v2079
      %v2141 = vpop.f32.mrf.mxu0
      %v2142 = vadd.f32 0.0, %v2141
      %v2143 = vpop.f32.mrf.mxu0
      %v2144 = vadd.f32 0.0, %v2143
      %2145 = vmatmul.bf16.gmra.mxu0 %v2082
      %v2146 = vpop.f32.mrf.mxu0
      %v2147 = vadd.f32 0.0, %v2146
      %v2148 = vpop.f32.mrf.mxu0
      %v2149 = vadd.f32 0.0, %v2148
      %2150 = vmatmul.bf16.gmra.mxu0 %v2085
      %v2151 = vpop.f32.mrf.mxu0
      %v2152 = vadd.f32 0.0, %v2151
      %v2153 = vpop.f32.mrf.mxu0
      %v2154 = vadd.f32 0.0, %v2153
      %2155 = vmatmul.bf16.gmra.mxu0 %v2088
      %v2156 = vpop.f32.mrf.mxu0
      %v2157 = vadd.f32 0.0, %v2156
      %v2158 = vpop.f32.mrf.mxu0
      %v2159 = vadd.f32 0.0, %v2158
      %2160 = vmatmul.bf16.gmra.mxu0 %v2091
      %v2161 = vpop.f32.mrf.mxu0
      %v2162 = vadd.f32 0.0, %v2161
      %v2163 = vpop.f32.mrf.mxu0
      %v2164 = vadd.f32 0.0, %v2163
      %2165 = vmatmul.bf16.gmra.mxu0 %v2094
      %v2166 = vpop.f32.mrf.mxu0
      %v2167 = vadd.f32 0.0, %v2166
      %v2168 = vpop.f32.mrf.mxu0
      %v2169 = vadd.f32 0.0, %v2168
      %2170 = vmatmul.bf16.gmra.mxu0 %v2097
      %v2171 = vpop.f32.mrf.mxu0
      %v2172 = vadd.f32 0.0, %v2171
      %v2173 = vpop.f32.mrf.mxu0
      %v2174 = vadd.f32 0.0, %v2173
      %2175 = vmatmul.bf16.gmra.mxu0 %v2100
      %v2176 = vpop.f32.mrf.mxu0
      %v2177 = vadd.f32 0.0, %v2176
      %v2178 = vpop.f32.mrf.mxu0
      %v2179 = vadd.f32 0.0, %v2178
      %2180 = vmatmul.bf16.gmra.mxu0 %v2103
      %v2181 = vpop.f32.mrf.mxu0
      %v2182 = vadd.f32 0.0, %v2181
      %v2183 = vpop.f32.mrf.mxu0
      %v2184 = vadd.f32 0.0, %v2183
      %2185 = vmatmul.bf16.gmra.mxu0 %v2106
      %v2186 = vpop.f32.mrf.mxu0
      %v2187 = vadd.f32 0.0, %v2186
      %v2188 = vpop.f32.mrf.mxu0
      %v2189 = vadd.f32 0.0, %v2188
      %2190 = vmatmul.bf16.gmra.mxu0 %v2109
      %v2191 = vpop.f32.mrf.mxu0
      %v2192 = vadd.f32 0.0, %v2191
      %v2193 = vpop.f32.mrf.mxu0
      %v2194 = vadd.f32 0.0, %v2193
      %2195 = vmatmul.bf16.gmra.mxu0 %v2112
      %v2196 = vpop.f32.mrf.mxu0
      %v2197 = vadd.f32 0.0, %v2196
      %v2198 = vpop.f32.mrf.mxu0
      %v2199 = vadd.f32 0.0, %v2198
      %2200 = vmatmul.bf16.gmra.mxu0 %v2115
      %v2201 = vpop.f32.mrf.mxu0
      %v2202 = vadd.f32 0.0, %v2201
      %v2203 = vpop.f32.mrf.mxu0
      %v2204 = vadd.f32 0.0, %v2203
      %2205 = vmatmul.bf16.gmra.mxu0 %v2118
      %v2206 = vpop.f32.mrf.mxu0
      %v2207 = vadd.f32 0.0, %v2206
      %v2208 = vpop.f32.mrf.mxu0
      %v2209 = vadd.f32 0.0, %v2208
      %2210 = vmatmul.bf16.gmra.mxu0 %v2121
      %v2211 = vpop.f32.mrf.mxu0
      %v2212 = vadd.f32 0.0, %v2211
      %v2213 = vpop.f32.mrf.mxu0
      %v2214 = vadd.f32 0.0, %v2213
      %2215 = vdwg.mxu0
      %2216 = vst.msk [vmem:[%s231] sm:$0xff] %vm373, %v2137
      %2217 = vst.msk [vmem:[%s231 + $0x8] sm:$0xff] %vm373, %v2139
      %2218 = vst.msk [vmem:[%s231 + $0x10] sm:$0xff] %vm373, %v2142
      %2219 = vst.msk [vmem:[%s231 + $0x18] sm:$0xff] %vm373, %v2144
      %2220 = vst.msk [vmem:[%s231 + $0x20] sm:$0xff] %vm373, %v2147
      %2221 = vst.msk [vmem:[%s231 + $0x28] sm:$0xff] %vm373, %v2149
      %2222 = vst.msk [vmem:[%s231 + $0x30] sm:$0xff] %vm373, %v2152
      %2223 = vst.msk [vmem:[%s231 + $0x38] sm:$0xff] %vm373, %v2154
      %2224 = vst.msk [vmem:[%s231 + $0x40] sm:$0xff] %vm373, %v2157
      %2225 = vst.msk [vmem:[%s231 + $0x48] sm:$0xff] %vm373, %v2159
      %2226 = vst.msk [vmem:[%s231 + $0x50] sm:$0xff] %vm373, %v2162
      %2227 = vst.msk [vmem:[%s231 + $0x58] sm:$0xff] %vm373, %v2164
      %2228 = vst.msk [vmem:[%s231 + $0x60] sm:$0xff] %vm373, %v2167
      %2229 = vst.msk [vmem:[%s231 + $0x68] sm:$0xff] %vm373, %v2169
      %2230 = vst.msk [vmem:[%s231 + $0x70] sm:$0xff] %vm373, %v2172
      %2231 = vst.msk [vmem:[%s231 + $0x78] sm:$0xff] %vm373, %v2174
      %2232 = vst.msk [vmem:[%s231 + $0x80] sm:$0xff] %vm373, %v2177
      %2233 = vst.msk [vmem:[%s231 + $0x88] sm:$0xff] %vm373, %v2179
      %2234 = vst.msk [vmem:[%s231 + $0x90] sm:$0xff] %vm373, %v2182
      %2235 = vst.msk [vmem:[%s231 + $0x98] sm:$0xff] %vm373, %v2184
      %2236 = vst.msk [vmem:[%s231 + $0xa0] sm:$0xff] %vm373, %v2187
      %2237 = vst.msk [vmem:[%s231 + $0xa8] sm:$0xff] %vm373, %v2189
      %2238 = vst.msk [vmem:[%s231 + $0xb0] sm:$0xff] %vm373, %v2192
      %2239 = vst.msk [vmem:[%s231 + $0xb8] sm:$0xff] %vm373, %v2194
      %2240 = vst.msk [vmem:[%s231 + $0xc0] sm:$0xff] %vm373, %v2197
      %2241 = vst.msk [vmem:[%s231 + $0xc8] sm:$0xff] %vm373, %v2199
      %2242 = vst.msk [vmem:[%s231 + $0xd0] sm:$0xff] %vm373, %v2202
      %2243 = vst.msk [vmem:[%s231 + $0xd8] sm:$0xff] %vm373, %v2204
      %2244 = vst.msk [vmem:[%s231 + $0xe0] sm:$0xff] %vm373, %v2207
      %2245 = vst.msk [vmem:[%s231 + $0xe8] sm:$0xff] %vm373, %v2209
      %2246 = vst.msk [vmem:[%s231 + $0xf0] sm:$0xff] %vm373, %v2212
      %2247 = vst.msk [vmem:[%s231 + $0xf8] sm:$0xff] %vm373, %v2214
      %v2248 = vsel %vm373, %v2137, 0.0
      %v2249 = vsel %vm373, %v2139, 0.0
      %v2250 = vadd.f32 %v2248, %v2249
      %v2251 = vsel %vm373, %v2142, 0.0
      %v2252 = vadd.f32 %v2250, %v2251
      %v2253 = vsel %vm373, %v2144, 0.0
      %v2254 = vadd.f32 %v2252, %v2253
      %v2255 = vsel %vm373, %v2147, 0.0
      %v2256 = vadd.f32 %v2254, %v2255
      %v2257 = vsel %vm373, %v2149, 0.0
      %v2258 = vadd.f32 %v2256, %v2257
      %v2259 = vsel %vm373, %v2152, 0.0
      %v2260 = vadd.f32 %v2258, %v2259
      %v2261 = vsel %vm373, %v2154, 0.0
      %v2262 = vadd.f32 %v2260, %v2261
      %v2263 = vsel %vm373, %v2157, 0.0
      %v2264 = vadd.f32 %v2262, %v2263
      %v2265 = vsel %vm373, %v2159, 0.0
      %v2266 = vadd.f32 %v2264, %v2265
      %v2267 = vsel %vm373, %v2162, 0.0
      %v2268 = vadd.f32 %v2266, %v2267
      %v2269 = vsel %vm373, %v2164, 0.0
      %v2270 = vadd.f32 %v2268, %v2269
      %v2271 = vsel %vm373, %v2167, 0.0
      %v2272 = vadd.f32 %v2270, %v2271
      %v2273 = vsel %vm373, %v2169, 0.0
      %v2274 = vadd.f32 %v2272, %v2273
      %v2275 = vsel %vm373, %v2172, 0.0
      %v2276 = vadd.f32 %v2274, %v2275
      %v2277 = vsel %vm373, %v2174, 0.0
      %v2278 = vadd.f32 %v2276, %v2277
      %v2279 = vsel %vm373, %v2177, 0.0
      %v2280 = vadd.f32 %v2278, %v2279
      %v2281 = vsel %vm373, %v2179, 0.0
      %v2282 = vadd.f32 %v2280, %v2281
      %v2283 = vsel %vm373, %v2182, 0.0
      %v2284 = vadd.f32 %v2282, %v2283
      %v2285 = vsel %vm373, %v2184, 0.0
      %v2286 = vadd.f32 %v2284, %v2285
      %v2287 = vsel %vm373, %v2187, 0.0
      %v2288 = vadd.f32 %v2286, %v2287
      %v2289 = vsel %vm373, %v2189, 0.0
      %v2290 = vadd.f32 %v2288, %v2289
      %v2291 = vsel %vm373, %v2192, 0.0
      %v2292 = vadd.f32 %v2290, %v2291
      %v2293 = vsel %vm373, %v2194, 0.0
      %v2294 = vadd.f32 %v2292, %v2293
      %v2295 = vsel %vm373, %v2197, 0.0
      %v2296 = vadd.f32 %v2294, %v2295
      %v2297 = vsel %vm373, %v2199, 0.0
      %v2298 = vadd.f32 %v2296, %v2297
      %v2299 = vsel %vm373, %v2202, 0.0
      %v2300 = vadd.f32 %v2298, %v2299
      %v2301 = vsel %vm373, %v2204, 0.0
      %v2302 = vadd.f32 %v2300, %v2301
      %v2303 = vsel %vm373, %v2207, 0.0
      %v2304 = vadd.f32 %v2302, %v2303
      %v2305 = vsel %vm373, %v2209, 0.0
      %v2306 = vadd.f32 %v2304, %v2305
      %v2307 = vsel %vm373, %v2212, 0.0
      %v2308 = vadd.f32 %v2306, %v2307
      %v2309 = vsel %vm373, %v2214, 0.0
      %v2310 = vadd.f32 %v2308, %v2309
      %v2311 = vrot.slane %v2310, 4
      %v2312 = vadd.f32 %v2310, %v2311
      %v2313 = vrot.slane %v2312, 2
      %v2314 = vadd.f32 %v2312, %v2313
      %v2315 = vrot.slane %v2314, 1
      %v2316 = vadd.f32 %v2314, %v2315
      %v2317 = vmul.f32 %v2137, %v2137
      %v2318 = vmul.f32 %v2139, %v2139
      %v2319 = vmul.f32 %v2142, %v2142
      %v2320 = vmul.f32 %v2144, %v2144
      %v2321 = vmul.f32 %v2147, %v2147
      %v2322 = vmul.f32 %v2149, %v2149
      %v2323 = vmul.f32 %v2152, %v2152
      %v2324 = vmul.f32 %v2154, %v2154
      %v2325 = vmul.f32 %v2157, %v2157
      %v2326 = vmul.f32 %v2159, %v2159
      %v2327 = vmul.f32 %v2162, %v2162
      %v2328 = vmul.f32 %v2164, %v2164
      %v2329 = vmul.f32 %v2167, %v2167
      %v2330 = vmul.f32 %v2169, %v2169
      %v2331 = vmul.f32 %v2172, %v2172
      %v2332 = vmul.f32 %v2174, %v2174
      %v2333 = vmul.f32 %v2177, %v2177
      %v2334 = vmul.f32 %v2179, %v2179
      %v2335 = vmul.f32 %v2182, %v2182
      %v2336 = vmul.f32 %v2184, %v2184
      %v2337 = vmul.f32 %v2187, %v2187
      %v2338 = vmul.f32 %v2189, %v2189
      %v2339 = vmul.f32 %v2192, %v2192
      %v2340 = vmul.f32 %v2194, %v2194
      %v2341 = vmul.f32 %v2197, %v2197
      %v2342 = vmul.f32 %v2199, %v2199
      %v2343 = vmul.f32 %v2202, %v2202
      %v2344 = vmul.f32 %v2204, %v2204
      %v2345 = vmul.f32 %v2207, %v2207
      %v2346 = vmul.f32 %v2209, %v2209
      %v2347 = vmul.f32 %v2212, %v2212
      %v2348 = vmul.f32 %v2214, %v2214
      %v2349 = vsel %vm373, %v2317, 0.0
      %v2350 = vsel %vm373, %v2318, 0.0
      %v2351 = vadd.f32 %v2349, %v2350
      %v2352 = vsel %vm373, %v2319, 0.0
      %v2353 = vadd.f32 %v2351, %v2352
      %v2354 = vsel %vm373, %v2320, 0.0
      %v2355 = vadd.f32 %v2353, %v2354
      %v2356 = vsel %vm373, %v2321, 0.0
      %v2357 = vadd.f32 %v2355, %v2356
      %v2358 = vsel %vm373, %v2322, 0.0
      %v2359 = vadd.f32 %v2357, %v2358
      %v2360 = vsel %vm373, %v2323, 0.0
      %v2361 = vadd.f32 %v2359, %v2360
      %v2362 = vsel %vm373, %v2324, 0.0
      %v2363 = vadd.f32 %v2361, %v2362
      %v2364 = vsel %vm373, %v2325, 0.0
      %v2365 = vadd.f32 %v2363, %v2364
      %v2366 = vsel %vm373, %v2326, 0.0
      %v2367 = vadd.f32 %v2365, %v2366
      %v2368 = vsel %vm373, %v2327, 0.0
      %v2369 = vadd.f32 %v2367, %v2368
      %v2370 = vsel %vm373, %v2328, 0.0
      %v2371 = vadd.f32 %v2369, %v2370
      %v2372 = vsel %vm373, %v2329, 0.0
      %v2373 = vadd.f32 %v2371, %v2372
      %v2374 = vsel %vm373, %v2330, 0.0
      %v2375 = vadd.f32 %v2373, %v2374
      %v2376 = vsel %vm373, %v2331, 0.0
      %v2377 = vadd.f32 %v2375, %v2376
      %v2378 = vsel %vm373, %v2332, 0.0
      %v2379 = vadd.f32 %v2377, %v2378
      %v2380 = vsel %vm373, %v2333, 0.0
      %v2381 = vadd.f32 %v2379, %v2380
      %v2382 = vsel %vm373, %v2334, 0.0
      %v2383 = vadd.f32 %v2381, %v2382
      %v2384 = vsel %vm373, %v2335, 0.0
      %v2385 = vadd.f32 %v2383, %v2384
      %v2386 = vsel %vm373, %v2336, 0.0
      %v2387 = vadd.f32 %v2385, %v2386
      %v2388 = vsel %vm373, %v2337, 0.0
      %v2389 = vadd.f32 %v2387, %v2388
      %v2390 = vsel %vm373, %v2338, 0.0
      %v2391 = vadd.f32 %v2389, %v2390
      %v2392 = vsel %vm373, %v2339, 0.0
      %v2393 = vadd.f32 %v2391, %v2392
      %v2394 = vsel %vm373, %v2340, 0.0
      %v2395 = vadd.f32 %v2393, %v2394
      %v2396 = vsel %vm373, %v2341, 0.0
      %v2397 = vadd.f32 %v2395, %v2396
      %v2398 = vsel %vm373, %v2342, 0.0
      %v2399 = vadd.f32 %v2397, %v2398
      %v2400 = vsel %vm373, %v2343, 0.0
      %v2401 = vadd.f32 %v2399, %v2400
      %v2402 = vsel %vm373, %v2344, 0.0
      %v2403 = vadd.f32 %v2401, %v2402
      %v2404 = vsel %vm373, %v2345, 0.0
      %v2405 = vadd.f32 %v2403, %v2404
      %v2406 = vsel %vm373, %v2346, 0.0
      %v2407 = vadd.f32 %v2405, %v2406
      %v2408 = vsel %vm373, %v2347, 0.0
      %v2409 = vadd.f32 %v2407, %v2408
      %v2410 = vsel %vm373, %v2348, 0.0
      %v2411 = vadd.f32 %v2409, %v2410
      %v2412 = vrot.slane %v2411, 4
      %v2413 = vadd.f32 %v2411, %v2412
      %v2414 = vrot.slane %v2413, 2
      %v2415 = vadd.f32 %v2413, %v2414
      %v2416 = vrot.slane %v2415, 1
      %v2417 = vadd.f32 %v2415, %v2416
      %vm2418 = vcmask 1040384
      %v2419 = vsel %vm2418, %v2316, %v2417
      %2420 = vst.msk [vmem:[%s235] sm:$0x3] %vm376, %v2419
      %p2421 = scmp.lt.s32.totalorder %s17, 1
      %s2422 = scalar_select %p2421, %s17, 1
      %s2423 = smul.addr %s2422, 32
      %s2424 = smul.addr %s2423, 8
      %s2425 = scalar_lea.vmem %s4, %s2424
      %p2426 = scmp.lt.s32.totalorder %s17, 1
      %s2427 = scalar_select %p2426, %s17, 1
      %s2428 = smul.addr %s2427, 2
      %s2429 = scalar_lea.vmem %s5, %s2428
      // Predicated region
      $region37: #{bottleneck_forward.5} parent=35 // pred_check
        %p2430 = pneg %p124
      $region38: #{bottleneck_forward.5} parent=35 // pred_check_branch
        %2432 = sbr.rel (%p2430) target = $region40
      $region39: #{bottleneck_forward.5} parent=35 // pred_region
        _
      $region40: #{bottleneck_forward.5} parent=35 // pred_fallthru
        _
      // Predicated region
      $region41: #{bottleneck_forward.5} parent=35 // pred_check
        %p2433 = pneg %p150
      $region42: #{bottleneck_forward.5} parent=35 // pred_check_branch
        %2435 = sbr.rel (%p2433) target = $region44
      $region43: #{bottleneck_forward.5} parent=35 // pred_region
        _
      $region44: #{bottleneck_forward.5} parent=35 // pred_fallthru
        _
    $region36: #{bottleneck_forward.5} parent=5 // pred_fallthru
      _
    %p2436 = scmp.le.s32.totalorder 2, %s12
    // Predicated region
    $region45: #{bottleneck_forward.5} parent=5 // pred_check
      %p2437 = pneg %p2436
    $region46: #{bottleneck_forward.5} parent=5 // pred_check_branch
      %2439 = sbr.rel (%p2437) target = $region48
    $region47: #{bottleneck_forward.5} parent=5 // pred_region
      %s2440 = ssub.s32 %s12, 2
      // Predicated region
      $region49: #{bottleneck_forward.5} parent=47 // pred_check
        %p2441 = pneg %p130
      $region50: #{bottleneck_forward.5} parent=47 // pred_check_branch
        %2443 = sbr.rel (%p2441) target = $region52
      $region51: #{bottleneck_forward.5} parent=47 // pred_region
        %p2444 = scmp.lt.s32.totalorder %s18, 1
        %s2445 = scalar_select %p2444, %s18, 1
        %s2446 = smul.addr %s2445, 32
        %s2447 = smul.addr %s2446, 8
        %s2448 = scalar_lea.vmem %s4, %s2447
      $region52: #{bottleneck_forward.5} parent=47 // pred_fallthru
        _
      // Predicated region
      $region53: #{bottleneck_forward.5} parent=47 // pred_check
        %p2449 = pneg %p156
      $region54: #{bottleneck_forward.5} parent=47 // pred_check_branch
        %2451 = sbr.rel (%p2449) target = $region56
      $region55: #{bottleneck_forward.5} parent=47 // pred_region
        %p2452 = scmp.lt.s32.totalorder %s18, 1
        %s2453 = scalar_select %p2452, %s18, 1
        %s2454 = smul.addr %s2453, 2
        %s2455 = scalar_lea.vmem %s5, %s2454
      $region56: #{bottleneck_forward.5} parent=47 // pred_fallthru
        _
    $region48: #{bottleneck_forward.5} parent=5 // pred_fallthru
      _
  $region6: #{bottleneck_forward.5} parent=0 // loop_footer
    %s16 = sadd.s32 1, %s12
  $region7: #{bottleneck_forward.5} parent=0 // loop_footer_branch
    %11 = sbr.rel target = $region3
  $region8: #{bottleneck_forward.5} parent=0 // loop_exit
    _

</llo_original>
